<compile_context>
chip_gen: v7x
topology: tpu7x:2x2x1
jax: 0.10.0
libtpu: 0.0.40
codegen_flags: <defaults>
</compile_context>

<pallas_src>
import functools

import jax
import jax.numpy as jnp
from jax.experimental import pallas as pl
from jax.experimental.pallas import tpu as pltpu


_SLOPE = 0.2
_BN_EPS = 1e-5
_VMEM_LIMIT = 32 * 1024 * 1024   # safe on v5e/v6e (128 MiB) and v7x (64 MiB)


def _round_up(x, m):
    return ((x + m - 1) // m) * m


def _tile_m(m):
    """Pick an M tile: big enough to pipeline, small enough for VMEM on v7x."""
    if m >= 1024:
        return 512
    if m >= 256:
        return 256
    return _round_up(max(m, 1), 8)   # single tile, sublane aligned


# ----------------------------- Pallas kernels ------------------------------ #

def _matmul_leaky_kernel(p_ref, w_ref, o_ref, *, slope, apply_act):
    # p: (tm, K) bf16, w: (K, C) bf16 -> o: (tm, C) f32, MXU with f32 accumulate.
    acc = jnp.dot(p_ref[...], w_ref[...], preferred_element_type=jnp.float32)
    if apply_act:
        acc = jnp.where(acc >= 0.0, acc, slope * acc)   # LeakyReLU(0.2) in f32
    o_ref[...] = acc


def _matmul_stats_kernel(p_ref, w_ref, o_ref, st_ref):
    # Conv matmul tile + fused per-channel partial BatchNorm stats (one pass).
    acc = jnp.dot(p_ref[...], w_ref[...], preferred_element_type=jnp.float32)
    o_ref[...] = acc
    s = jnp.sum(acc, axis=0, keepdims=True)              # (1, C)
    sq = jnp.sum(acc * acc, axis=0, keepdims=True)       # (1, C)
    st_ref[...] = jnp.concatenate([s, sq], axis=0)[None]  # (1, 2, C)


def _scale_shift_leaky_kernel(x_ref, sc_ref, sh_ref, o_ref, *, slope):
    # y = x * scale + shift ; LeakyReLU(0.2). All f32 (v5e-safe elementwise).
    y = x_ref[...] * sc_ref[...] + sh_ref[...]
    o_ref[...] = jnp.where(y >= 0.0, y, slope * y)


# ------------------------------- wrappers ---------------------------------- #

def _pallas_conv_matmul(patches, w_kc, *, leaky, with_stats):
    """Tiled (over M) matmul. Returns padded (Mp, C) f32 output (+ partial stats)."""
    M, K = patches.shape
    C = w_kc.shape[1]
    tm = _tile_m(M)
    Mp = _round_up(M, tm)
    if Mp != M:
        patches = jnp.pad(patches, ((0, Mp - M), (0, 0)))
    n_mt = Mp // tm

    p_bf = patches.astype(jnp.bfloat16)
    w_bf = w_kc.astype(jnp.bfloat16)

    in_specs = [pl.BlockSpec((tm, K), lambda i: (i, 0)),   # M-tiled patches
                pl.BlockSpec((K, C), lambda i: (0, 0))]    # resident weights
    cparams = pltpu.CompilerParams(
        dimension_semantics=("parallel",),
        vmem_limit_bytes=_VMEM_LIMIT)

    if with_stats:
        out, stats = pl.pallas_call(
            _matmul_stats_kernel,
            grid=(n_mt,),
            in_specs=in_specs,
            out_specs=(pl.BlockSpec((tm, C), lambda i: (i, 0)),
                       pl.BlockSpec((1, 2, C), lambda i: (i, 0, 0))),
            out_shape=(jax.ShapeDtypeStruct((Mp, C), jnp.float32),
                       jax.ShapeDtypeStruct((n_mt, 2, C), jnp.float32)),
            compiler_params=cparams,
        )(p_bf, w_bf)
        return out, stats

    out = pl.pallas_call(
        functools.partial(_matmul_leaky_kernel, slope=_SLOPE, apply_act=leaky),
        grid=(n_mt,),
        in_specs=in_specs,
        out_specs=pl.BlockSpec((tm, C), lambda i: (i, 0)),
        out_shape=jax.ShapeDtypeStruct((Mp, C), jnp.float32),
        compiler_params=cparams,
    )(p_bf, w_bf)
    return out, None


def _pallas_scale_shift_leaky(x2d, scale, shift):
    """Tiled per-channel affine + LeakyReLU over an (M, C) activation."""
    M, C = x2d.shape
    tm = _tile_m(M)
    Mp = _round_up(M, tm)
    if Mp != M:
        x2d = jnp.pad(x2d, ((0, Mp - M), (0, 0)))
    n_mt = Mp // tm
    sc = scale.reshape(1, C).astype(jnp.float32)
    sh = shift.reshape(1, C).astype(jnp.float32)
    out = pl.pallas_call(
        functools.partial(_scale_shift_leaky_kernel, slope=_SLOPE),
        grid=(n_mt,),
        in_specs=[pl.BlockSpec((tm, C), lambda i: (i, 0)),
                  pl.BlockSpec((1, C), lambda i: (0, 0)),
                  pl.BlockSpec((1, C), lambda i: (0, 0))],
        out_specs=pl.BlockSpec((tm, C), lambda i: (i, 0)),
        out_shape=jax.ShapeDtypeStruct((Mp, C), jnp.float32),
        compiler_params=pltpu.CompilerParams(
            dimension_semantics=("parallel",),
            vmem_limit_bytes=_VMEM_LIMIT),
    )(x2d, sc, sh)
    return out[:M]


def _im2col(x_nhwc, kh, kw, stride, pad):
    """Extract conv patches. Returns (N*OH*OW, KH*KW*Cin), plus OH, OW."""
    N, H, W, C = x_nhwc.shape
    xp = jnp.pad(x_nhwc, ((0, 0), (pad, pad), (pad, pad), (0, 0)))
    OH = (H + 2 * pad - kh) // stride + 1
    OW = (W + 2 * pad - kw) // stride + 1
    cols = []
    for i in range(kh):
        for j in range(kw):
            cols.append(xp[:, i:i + stride * OH:stride, j:j + stride * OW:stride, :])
    p = jnp.stack(cols, axis=3)                      # (N, OH, OW, KH*KW, C)
    return p.reshape(N * OH * OW, kh * kw * C), OH, OW


def _conv_block(x_nhwc, w_oihw, stride, pad, *, leaky, bn_params=None):
    """Conv2d (no bias) via im2col + tiled Pallas matmul, optional fused BN+Leaky."""
    Cout, Cin, KH, KW = w_oihw.shape
    patches, OH, OW = _im2col(x_nhwc, KH, KW, stride, pad)
    M = patches.shape[0]                              # true N*OH*OW (BN divisor)
    # reorder weight to match patch flatten order (KH, KW, Cin) -> (K, Cout)
    wm = jnp.transpose(w_oihw, (2, 3, 1, 0)).reshape(KH * KW * Cin, Cout)

    # lane-pad the final Cout=1 conv so the MXU / store path is lane-dense
    Cp = Cout
    if Cout < 8:
        Cp = 128
        wm = jnp.pad(wm, ((0, 0), (0, Cp - Cout)))

    if bn_params is None:
        out, _ = _pallas_conv_matmul(patches, wm, leaky=leaky, with_stats=False)
    else:
        gamma, beta = bn_params
        out, stats = _pallas_conv_matmul(patches, wm, leaky=False, with_stats=True)
        # tiny cross-tile reduction + per-channel scale/shift in XLA glue
        sums = jnp.sum(stats, axis=0)                 # (2, Cout)
        mean = sums[0] / M                            # padded rows contribute 0
        var = jnp.maximum(sums[1] / M - mean * mean, 0.0)   # biased batch var
        inv = jax.lax.rsqrt(var + _BN_EPS)
        scale = gamma.astype(jnp.float32) * inv
        shift = beta.astype(jnp.float32) - mean * scale
        out = _pallas_scale_shift_leaky(out, scale, shift)

    out = out[:M, :Cout]                              # drop M padding / lane padding
    N = x_nhwc.shape[0]
    return out.reshape(N, OH, OW, Cout)


# --------------------------- Discriminator forward -------------------------- #

def discriminator_forward(x_nchw, params):
    x = jnp.transpose(x_nchw, (0, 2, 3, 1)).astype(jnp.float32)   # NCHW -> NHWC

    # Conv(1->ndf, 4, 2, 1) + LeakyReLU(0.2)           (leaky fused in matmul)
    x = _conv_block(x, params["w1"], 2, 1, leaky=True)

    # Conv(ndf->2ndf, 4, 2, 1) + BatchNorm + LeakyReLU (stats fused in matmul)
    x = _conv_block(x, params["w2"], 2, 1, leaky=True,
                    bn_params=(params["g2"], params["b2"]))

    # Conv(2ndf->4ndf, 3, 2, 1) + BatchNorm + LeakyReLU
    x = _conv_block(x, params["w3"], 2, 1, leaky=True,
                    bn_params=(params["g3"], params["b3"]))

    # Conv(4ndf->1, 4, 1, 0), no activation (Cout lane-padded to 128 internally)
    x = _conv_block(x, params["w4"], 1, 0, leaky=False)

    # output.view(-1, 1).squeeze(1)  ->  (N,)
    return x.reshape(-1)


def init_params(key, inp_c=1, ndf=32):
    k1, k2, k3, k4 = jax.random.split(key, 4)
    std = 0.02
    return {
        "w1": std * jax.random.normal(k1, (ndf, inp_c, 4, 4), jnp.float32),
        "w2": std * jax.random.normal(k2, (ndf * 2, ndf, 4, 4), jnp.float32),
        "g2": jnp.ones((ndf * 2,), jnp.float32),
        "b2": jnp.zeros((ndf * 2,), jnp.float32),
        "w3": std * jax.random.normal(k3, (ndf * 4, ndf * 2, 3, 3), jnp.float32),
        "g3": jnp.ones((ndf * 4,), jnp.float32),
        "b3": jnp.zeros((ndf * 4,), jnp.float32),
        "w4": std * jax.random.normal(k4, (1, ndf * 4, 4, 4), jnp.float32),
    }


if __name__ == "__main__":
    key = jax.random.PRNGKey(0)
    k_in, k_par = jax.random.split(key)

    inp_c, ndf, N, H, W = 1, 32, 2, 32, 32          # 32x32 -> 16 -> 8 -> 4 -> 1x1
    x = jax.random.normal(k_in, (N, inp_c, H, W), jnp.float32)   # NCHW, like PyTorch
    params = init_params(k_par, inp_c=inp_c, ndf=ndf)

    fwd = jax.jit(discriminator_forward)
    out = fwd(x, params)
    jax.block_until_ready(out)
    assert out.shape == (N,)
    print("KERNEL_OK")
</pallas_src>

<mosaic_0001>
module attributes {stable_mosaic.version = 11 : i64} {
  func.func @_matmul_leaky_kernel(%arg0: i32, %arg1: memref<256x16xbf16, #tpu.memory_space<vmem>>, %arg2: memref<16x32xbf16, #tpu.memory_space<vmem>>, %arg3: memref<256x32xf32, #tpu.memory_space<vmem>>) attributes {dimension_semantics = [#tpu.dimension_semantics<parallel>], iteration_bounds = array<i64: 2>, scalar_prefetch = 0 : i64, scratch_operands = 0 : i64, tpu.core_type = #tpu.core_type<tc>, window_params = [{transform_indices = @transform_0, window_bounds = array<i64: 256, 16>}, {pipeline_mode = #tpu.pipeline_mode<synchronous>, transform_indices = @transform_1, window_bounds = array<i64: 16, 32>}, {transform_indices = @transform_2, window_bounds = array<i64: 256, 32>}]} {
    %c0 = arith.constant 0 : index
    %c0_0 = arith.constant 0 : index
    %0 = vector.load %arg1[%c0, %c0_0] : memref<256x16xbf16, #tpu.memory_space<vmem>>, vector<256x16xbf16>
    %c0_1 = arith.constant 0 : index
    %c0_2 = arith.constant 0 : index
    %1 = vector.load %arg2[%c0_1, %c0_2] : memref<16x32xbf16, #tpu.memory_space<vmem>>, vector<16x32xbf16>
    %cst = arith.constant dense<0.000000e+00> : vector<256x32xf32>
    %2 = tpu.matmul %0, %1, %cst {dimension_numbers = #tpu.dot_dimension_numbers<[1], [0], [0], [1], [0, 0, 1, 1], [], []>} : vector<256x16xbf16>, vector<16x32xbf16>, vector<256x32xf32> -> vector<256x32xf32>
    %cst_3 = arith.constant 0.000000e+00 : f32
    %3 = vector.broadcast %cst_3 : f32 to vector<256x32xf32>
    %4 = arith.cmpf oge, %2, %3 : vector<256x32xf32>
    %cst_4 = arith.constant 2.000000e-01 : f32
    %5 = vector.broadcast %cst_4 : f32 to vector<256x32xf32>
    %6 = arith.mulf %5, %2 : vector<256x32xf32>
    %7 = arith.select %4, %2, %6 : vector<256x32xi1>, vector<256x32xf32>
    %c0_5 = arith.constant 0 : index
    %c0_6 = arith.constant 0 : index
    %8 = vector.load %arg3[%c0_5, %c0_6] : memref<256x32xf32, #tpu.memory_space<vmem>>, vector<256x32xf32>
    tpu.vector_store %arg3[%c0_5, %c0_6], %7 {strides = array<i32>} : memref<256x32xf32, #tpu.memory_space<vmem>>, vector<256x32xf32>,
    return
  }
  func.func @transform_0(%arg0: i32) -> (i32, i32) {
    %c0_i32 = arith.constant 0 : i32
    %c0_i32_0 = arith.constant 0 : i32
    return %arg0, %c0_i32 : i32, i32
  }
  func.func @transform_1(%arg0: i32) -> (i32, i32) {
    %c0_i32 = arith.constant 0 : i32
    %c0_i32_0 = arith.constant 0 : i32
    %c0_i32_1 = arith.constant 0 : i32
    return %c0_i32, %c0_i32_0 : i32, i32
  }
  func.func @transform_2(%arg0: i32) -> (i32, i32) {
    %c0_i32 = arith.constant 0 : i32
    %c0_i32_0 = arith.constant 0 : i32
    return %arg0, %c0_i32 : i32, i32
  }
}

module attributes {stable_mosaic.version = 11 : i64} {
  func.func @_scale_shift_leaky_kernel(%arg0: i32, %arg1: memref<128x64xf32, #tpu.memory_space<vmem>>, %arg2: memref<1x64xf32, #tpu.memory_space<vmem>>, %arg3: memref<1x64xf32, #tpu.memory_space<vmem>>, %arg4: memref<128x64xf32, #tpu.memory_space<vmem>>) attributes {dimension_semantics = [#tpu.dimension_semantics<parallel>], iteration_bounds = array<i64: 1>, scalar_prefetch = 0 : i64, scratch_operands = 0 : i64, tpu.core_type = #tpu.core_type<tc>, window_params = [{transform_indices = @transform_0, window_bounds = array<i64: 128, 64>}, {pipeline_mode = #tpu.pipeline_mode<synchronous>, transform_indices = @transform_1, window_bounds = array<i64: 1, 64>}, {pipeline_mode = #tpu.pipeline_mode<synchronous>, transform_indices = @transform_2, window_bounds = array<i64: 1, 64>}, {transform_indices = @transform_3, window_bounds = array<i64: 128, 64>}]} {
    %c0 = arith.constant 0 : index
    %c0_0 = arith.constant 0 : index
    %0 = vector.load %arg1[%c0, %c0_0] : memref<128x64xf32, #tpu.memory_space<vmem>>, vector<128x64xf32>
    %c0_1 = arith.constant 0 : index
    %c0_2 = arith.constant 0 : index
    %1 = vector.load %arg2[%c0_1, %c0_2] : memref<1x64xf32, #tpu.memory_space<vmem>>, vector<1x64xf32>
    %2 = vector.broadcast %1 : vector<1x64xf32> to vector<128x64xf32>
    %3 = arith.mulf %0, %2 : vector<128x64xf32>
    %c0_3 = arith.constant 0 : index
    %c0_4 = arith.constant 0 : index
    %4 = vector.load %arg3[%c0_3, %c0_4] : memref<1x64xf32, #tpu.memory_space<vmem>>, vector<1x64xf32>
    %5 = vector.broadcast %4 : vector<1x64xf32> to vector<128x64xf32>
    %6 = arith.addf %3, %5 : vector<128x64xf32>
    %cst = arith.constant 0.000000e+00 : f32
    %7 = vector.broadcast %cst : f32 to vector<128x64xf32>
    %8 = arith.cmpf oge, %6, %7 : vector<128x64xf32>
    %cst_5 = arith.constant 2.000000e-01 : f32
    %9 = vector.broadcast %cst_5 : f32 to vector<128x64xf32>
    %10 = arith.mulf %9, %6 : vector<128x64xf32>
    %11 = arith.select %8, %6, %10 : vector<128x64xi1>, vector<128x64xf32>
    %c0_6 = arith.constant 0 : index
    %c0_7 = arith.constant 0 : index
    %12 = vector.load %arg4[%c0_6, %c0_7] : memref<128x64xf32, #tpu.memory_space<vmem>>, vector<128x64xf32>
    tpu.vector_store %arg4[%c0_6, %c0_7], %11 {strides = array<i32>} : memref<128x64xf32, #tpu.memory_space<vmem>>, vector<128x64xf32>,
    return
  }
  func.func @transform_0(%arg0: i32) -> (i32, i32) {
    %c0_i32 = arith.constant 0 : i32
    %c0_i32_0 = arith.constant 0 : i32
    return %arg0, %c0_i32 : i32, i32
  }
  func.func @transform_1(%arg0: i32) -> (i32, i32) {
    %c0_i32 = arith.constant 0 : i32
    %c0_i32_0 = arith.constant 0 : i32
    %c0_i32_1 = arith.constant 0 : i32
    return %c0_i32, %c0_i32_0 : i32, i32
  }
  func.func @transform_2(%arg0: i32) -> (i32, i32) {
    %c0_i32 = arith.constant 0 : i32
    %c0_i32_0 = arith.constant 0 : i32
    %c0_i32_1 = arith.constant 0 : i32
    return %c0_i32, %c0_i32_0 : i32, i32
  }
  func.func @transform_3(%arg0: i32) -> (i32, i32) {
    %c0_i32 = arith.constant 0 : i32
    %c0_i32_0 = arith.constant 0 : i32
    return %arg0, %c0_i32 : i32, i32
  }
}

module attributes {stable_mosaic.version = 11 : i64} {
  func.func @_matmul_stats_kernel(%arg0: i32, %arg1: memref<128x512xbf16, #tpu.memory_space<vmem>>, %arg2: memref<512x64xbf16, #tpu.memory_space<vmem>>, %arg3: memref<128x64xf32, #tpu.memory_space<vmem>>, %arg4: memref<1x2x64xf32, #tpu.memory_space<vmem>>) attributes {dimension_semantics = [#tpu.dimension_semantics<parallel>], iteration_bounds = array<i64: 1>, scalar_prefetch = 0 : i64, scratch_operands = 0 : i64, tpu.core_type = #tpu.core_type<tc>, window_params = [{transform_indices = @transform_0, window_bounds = array<i64: 128, 512>}, {pipeline_mode = #tpu.pipeline_mode<synchronous>, transform_indices = @transform_1, window_bounds = array<i64: 512, 64>}, {transform_indices = @transform_2, window_bounds = array<i64: 128, 64>}, {transform_indices = @transform_3, window_bounds = array<i64: 1, 2, 64>}]} {
    %c0 = arith.constant 0 : index
    %c0_0 = arith.constant 0 : index
    %0 = vector.load %arg1[%c0, %c0_0] : memref<128x512xbf16, #tpu.memory_space<vmem>>, vector<128x512xbf16>
    %c0_1 = arith.constant 0 : index
    %c0_2 = arith.constant 0 : index
    %1 = vector.load %arg2[%c0_1, %c0_2] : memref<512x64xbf16, #tpu.memory_space<vmem>>, vector<512x64xbf16>
    %cst = arith.constant dense<0.000000e+00> : vector<128x64xf32>
    %2 = tpu.matmul %0, %1, %cst {dimension_numbers = #tpu.dot_dimension_numbers<[1], [0], [0], [1], [0, 0, 1, 1], [], []>} : vector<128x512xbf16>, vector<512x64xbf16>, vector<128x64xf32> -> vector<128x64xf32>
    %c0_3 = arith.constant 0 : index
    %c0_4 = arith.constant 0 : index
    %3 = vector.load %arg3[%c0_3, %c0_4] : memref<128x64xf32, #tpu.memory_space<vmem>>, vector<128x64xf32>
    tpu.vector_store %arg3[%c0_3, %c0_4], %2 {strides = array<i32>} : memref<128x64xf32, #tpu.memory_space<vmem>>, vector<128x64xf32>,
    %cst_5 = arith.constant dense<0.000000e+00> : vector<64xf32>
    %4 = vector.multi_reduction <add>, %2, %cst_5 [0] : vector<128x64xf32> to vector<64xf32>
    %5 = vector.shape_cast %4 : vector<64xf32> to vector<1x64xf32>
    %6 = arith.mulf %2, %2 : vector<128x64xf32>
    %cst_6 = arith.constant dense<0.000000e+00> : vector<64xf32>
    %7 = vector.multi_reduction <add>, %6, %cst_6 [0] : vector<128x64xf32> to vector<64xf32>
    %8 = vector.shape_cast %7 : vector<64xf32> to vector<1x64xf32>
    %9 = tpu.concatenate %5, %8 in 0 : vector<1x64xf32>, vector<1x64xf32> -> vector<2x64xf32>
    %10 = vector.shape_cast %9 : vector<2x64xf32> to vector<1x2x64xf32>
    %c0_7 = arith.constant 0 : index
    %c0_8 = arith.constant 0 : index
    %c0_9 = arith.constant 0 : index
    %11 = vector.load %arg4[%c0_7, %c0_8, %c0_9] : memref<1x2x64xf32, #tpu.memory_space<vmem>>, vector<1x2x64xf32>
    tpu.vector_store %arg4[%c0_7, %c0_8, %c0_9], %10 {strides = array<i32>} : memref<1x2x64xf32, #tpu.memory_space<vmem>>, vector<1x2x64xf32>,
    return
  }
  func.func @transform_0(%arg0: i32) -> (i32, i32) {
    %c0_i32 = arith.constant 0 : i32
    %c0_i32_0 = arith.constant 0 : i32
    return %arg0, %c0_i32 : i32, i32
  }
  func.func @transform_1(%arg0: i32) -> (i32, i32) {
    %c0_i32 = arith.constant 0 : i32
    %c0_i32_0 = arith.constant 0 : i32
    %c0_i32_1 = arith.constant 0 : i32
    return %c0_i32, %c0_i32_0 : i32, i32
  }
  func.func @transform_2(%arg0: i32) -> (i32, i32) {
    %c0_i32 = arith.constant 0 : i32
    %c0_i32_0 = arith.constant 0 : i32
    return %arg0, %c0_i32 : i32, i32
  }
  func.func @transform_3(%arg0: i32) -> (i32, i32, i32) {
    %c0_i32 = arith.constant 0 : i32
    %c0_i32_0 = arith.constant 0 : i32
    %c0_i32_1 = arith.constant 0 : i32
    return %arg0, %c0_i32, %c0_i32_0 : i32, i32, i32
  }
}

module attributes {stable_mosaic.version = 11 : i64} {
  func.func @_matmul_stats_kernel(%arg0: i32, %arg1: memref<32x576xbf16, #tpu.memory_space<vmem>>, %arg2: memref<576x128xbf16, #tpu.memory_space<vmem>>, %arg3: memref<32x128xf32, #tpu.memory_space<vmem>>, %arg4: memref<1x2x128xf32, #tpu.memory_space<vmem>>) attributes {dimension_semantics = [#tpu.dimension_semantics<parallel>], iteration_bounds = array<i64: 1>, scalar_prefetch = 0 : i64, scratch_operands = 0 : i64, tpu.core_type = #tpu.core_type<tc>, window_params = [{transform_indices = @transform_0, window_bounds = array<i64: 32, 576>}, {pipeline_mode = #tpu.pipeline_mode<synchronous>, transform_indices = @transform_1, window_bounds = array<i64: 576, 128>}, {transform_indices = @transform_2, window_bounds = array<i64: 32, 128>}, {transform_indices = @transform_3, window_bounds = array<i64: 1, 2, 128>}]} {
    %c0 = arith.constant 0 : index
    %c0_0 = arith.constant 0 : index
    %0 = vector.load %arg1[%c0, %c0_0] : memref<32x576xbf16, #tpu.memory_space<vmem>>, vector<32x576xbf16>
    %c0_1 = arith.constant 0 : index
    %c0_2 = arith.constant 0 : index
    %1 = vector.load %arg2[%c0_1, %c0_2] : memref<576x128xbf16, #tpu.memory_space<vmem>>, vector<576x128xbf16>
    %cst = arith.constant dense<0.000000e+00> : vector<32x128xf32>
    %2 = tpu.matmul %0, %1, %cst {dimension_numbers = #tpu.dot_dimension_numbers<[1], [0], [0], [1], [0, 0, 1, 1], [], []>} : vector<32x576xbf16>, vector<576x128xbf16>, vector<32x128xf32> -> vector<32x128xf32>
    %c0_3 = arith.constant 0 : index
    %c0_4 = arith.constant 0 : index
    %3 = vector.load %arg3[%c0_3, %c0_4] : memref<32x128xf32, #tpu.memory_space<vmem>>, vector<32x128xf32>
    tpu.vector_store %arg3[%c0_3, %c0_4], %2 {strides = array<i32>} : memref<32x128xf32, #tpu.memory_space<vmem>>, vector<32x128xf32>,
    %cst_5 = arith.constant dense<0.000000e+00> : vector<128xf32>
    %4 = vector.multi_reduction <add>, %2, %cst_5 [0] : vector<32x128xf32> to vector<128xf32>
    %5 = vector.shape_cast %4 : vector<128xf32> to vector<1x128xf32>
    %6 = arith.mulf %2, %2 : vector<32x128xf32>
    %cst_6 = arith.constant dense<0.000000e+00> : vector<128xf32>
    %7 = vector.multi_reduction <add>, %6, %cst_6 [0] : vector<32x128xf32> to vector<128xf32>
    %8 = vector.shape_cast %7 : vector<128xf32> to vector<1x128xf32>
    %9 = tpu.concatenate %5, %8 in 0 : vector<1x128xf32>, vector<1x128xf32> -> vector<2x128xf32>
    %10 = vector.shape_cast %9 : vector<2x128xf32> to vector<1x2x128xf32>
    %c0_7 = arith.constant 0 : index
    %c0_8 = arith.constant 0 : index
    %c0_9 = arith.constant 0 : index
    %11 = vector.load %arg4[%c0_7, %c0_8, %c0_9] : memref<1x2x128xf32, #tpu.memory_space<vmem>>, vector<1x2x128xf32>
    tpu.vector_store %arg4[%c0_7, %c0_8, %c0_9], %10 {strides = array<i32>} : memref<1x2x128xf32, #tpu.memory_space<vmem>>, vector<1x2x128xf32>,
    return
  }
  func.func @transform_0(%arg0: i32) -> (i32, i32) {
    %c0_i32 = arith.constant 0 : i32
    %c0_i32_0 = arith.constant 0 : i32
    return %arg0, %c0_i32 : i32, i32
  }
  func.func @transform_1(%arg0: i32) -> (i32, i32) {
    %c0_i32 = arith.constant 0 : i32
    %c0_i32_0 = arith.constant 0 : i32
    %c0_i32_1 = arith.constant 0 : i32
    return %c0_i32, %c0_i32_0 : i32, i32
  }
  func.func @transform_2(%arg0: i32) -> (i32, i32) {
    %c0_i32 = arith.constant 0 : i32
    %c0_i32_0 = arith.constant 0 : i32
    return %arg0, %c0_i32 : i32, i32
  }
  func.func @transform_3(%arg0: i32) -> (i32, i32, i32) {
    %c0_i32 = arith.constant 0 : i32
    %c0_i32_0 = arith.constant 0 : i32
    %c0_i32_1 = arith.constant 0 : i32
    return %arg0, %c0_i32, %c0_i32_0 : i32, i32, i32
  }
}

module attributes {stable_mosaic.version = 11 : i64} {
  func.func @_scale_shift_leaky_kernel(%arg0: i32, %arg1: memref<32x128xf32, #tpu.memory_space<vmem>>, %arg2: memref<1x128xf32, #tpu.memory_space<vmem>>, %arg3: memref<1x128xf32, #tpu.memory_space<vmem>>, %arg4: memref<32x128xf32, #tpu.memory_space<vmem>>) attributes {dimension_semantics = [#tpu.dimension_semantics<parallel>], iteration_bounds = array<i64: 1>, scalar_prefetch = 0 : i64, scratch_operands = 0 : i64, tpu.core_type = #tpu.core_type<tc>, window_params = [{transform_indices = @transform_0, window_bounds = array<i64: 32, 128>}, {pipeline_mode = #tpu.pipeline_mode<synchronous>, transform_indices = @transform_1, window_bounds = array<i64: 1, 128>}, {pipeline_mode = #tpu.pipeline_mode<synchronous>, transform_indices = @transform_2, window_bounds = array<i64: 1, 128>}, {transform_indices = @transform_3, window_bounds = array<i64: 32, 128>}]} {
    %c0 = arith.constant 0 : index
    %c0_0 = arith.constant 0 : index
    %0 = vector.load %arg1[%c0, %c0_0] : memref<32x128xf32, #tpu.memory_space<vmem>>, vector<32x128xf32>
    %c0_1 = arith.constant 0 : index
    %c0_2 = arith.constant 0 : index
    %1 = vector.load %arg2[%c0_1, %c0_2] : memref<1x128xf32, #tpu.memory_space<vmem>>, vector<1x128xf32>
    %2 = vector.broadcast %1 : vector<1x128xf32> to vector<32x128xf32>
    %3 = arith.mulf %0, %2 : vector<32x128xf32>
    %c0_3 = arith.constant 0 : index
    %c0_4 = arith.constant 0 : index
    %4 = vector.load %arg3[%c0_3, %c0_4] : memref<1x128xf32, #tpu.memory_space<vmem>>, vector<1x128xf32>
    %5 = vector.broadcast %4 : vector<1x128xf32> to vector<32x128xf32>
    %6 = arith.addf %3, %5 : vector<32x128xf32>
    %cst = arith.constant 0.000000e+00 : f32
    %7 = vector.broadcast %cst : f32 to vector<32x128xf32>
    %8 = arith.cmpf oge, %6, %7 : vector<32x128xf32>
    %cst_5 = arith.constant 2.000000e-01 : f32
    %9 = vector.broadcast %cst_5 : f32 to vector<32x128xf32>
    %10 = arith.mulf %9, %6 : vector<32x128xf32>
    %11 = arith.select %8, %6, %10 : vector<32x128xi1>, vector<32x128xf32>
    %c0_6 = arith.constant 0 : index
    %c0_7 = arith.constant 0 : index
    %12 = vector.load %arg4[%c0_6, %c0_7] : memref<32x128xf32, #tpu.memory_space<vmem>>, vector<32x128xf32>
    tpu.vector_store %arg4[%c0_6, %c0_7], %11 {strides = array<i32>} : memref<32x128xf32, #tpu.memory_space<vmem>>, vector<32x128xf32>,
    return
  }
  func.func @transform_0(%arg0: i32) -> (i32, i32) {
    %c0_i32 = arith.constant 0 : i32
    %c0_i32_0 = arith.constant 0 : i32
    return %arg0, %c0_i32 : i32, i32
  }
  func.func @transform_1(%arg0: i32) -> (i32, i32) {
    %c0_i32 = arith.constant 0 : i32
    %c0_i32_0 = arith.constant 0 : i32
    %c0_i32_1 = arith.constant 0 : i32
    return %c0_i32, %c0_i32_0 : i32, i32
  }
  func.func @transform_2(%arg0: i32) -> (i32, i32) {
    %c0_i32 = arith.constant 0 : i32
    %c0_i32_0 = arith.constant 0 : i32
    %c0_i32_1 = arith.constant 0 : i32
    return %c0_i32, %c0_i32_0 : i32, i32
  }
  func.func @transform_3(%arg0: i32) -> (i32, i32) {
    %c0_i32 = arith.constant 0 : i32
    %c0_i32_0 = arith.constant 0 : i32
    return %arg0, %c0_i32 : i32, i32
  }
}

module attributes {stable_mosaic.version = 11 : i64} {
  func.func @_matmul_leaky_kernel(%arg0: i32, %arg1: memref<8x2048xbf16, #tpu.memory_space<vmem>>, %arg2: memref<2048x128xbf16, #tpu.memory_space<vmem>>, %arg3: memref<8x128xf32, #tpu.memory_space<vmem>>) attributes {dimension_semantics = [#tpu.dimension_semantics<parallel>], iteration_bounds = array<i64: 1>, scalar_prefetch = 0 : i64, scratch_operands = 0 : i64, tpu.core_type = #tpu.core_type<tc>, window_params = [{transform_indices = @transform_0, window_bounds = array<i64: 8, 2048>}, {pipeline_mode = #tpu.pipeline_mode<synchronous>, transform_indices = @transform_1, window_bounds = array<i64: 2048, 128>}, {transform_indices = @transform_2, window_bounds = array<i64: 8, 128>}]} {
    %c0 = arith.constant 0 : index
    %c0_0 = arith.constant 0 : index
    %0 = vector.load %arg1[%c0, %c0_0] : memref<8x2048xbf16, #tpu.memory_space<vmem>>, vector<8x2048xbf16>
    %c0_1 = arith.constant 0 : index
    %c0_2 = arith.constant 0 : index
    %1 = vector.load %arg2[%c0_1, %c0_2] : memref<2048x128xbf16, #tpu.memory_space<vmem>>, vector<2048x128xbf16>
    %cst = arith.constant dense<0.000000e+00> : vector<8x128xf32>
    %2 = tpu.matmul %0, %1, %cst {dimension_numbers = #tpu.dot_dimension_numbers<[1], [0], [0], [1], [0, 0, 1, 1], [], []>} : vector<8x2048xbf16>, vector<2048x128xbf16>, vector<8x128xf32> -> vector<8x128xf32>
    %c0_3 = arith.constant 0 : index
    %c0_4 = arith.constant 0 : index
    %3 = vector.load %arg3[%c0_3, %c0_4] : memref<8x128xf32, #tpu.memory_space<vmem>>, vector<8x128xf32>
    tpu.vector_store %arg3[%c0_3, %c0_4], %2 {strides = array<i32>} : memref<8x128xf32, #tpu.memory_space<vmem>>, vector<8x128xf32>,
    return
  }
  func.func @transform_0(%arg0: i32) -> (i32, i32) {
    %c0_i32 = arith.constant 0 : i32
    %c0_i32_0 = arith.constant 0 : i32
    return %arg0, %c0_i32 : i32, i32
  }
  func.func @transform_1(%arg0: i32) -> (i32, i32) {
    %c0_i32 = arith.constant 0 : i32
    %c0_i32_0 = arith.constant 0 : i32
    %c0_i32_1 = arith.constant 0 : i32
    return %c0_i32, %c0_i32_0 : i32, i32
  }
  func.func @transform_2(%arg0: i32) -> (i32, i32) {
    %c0_i32 = arith.constant 0 : i32
    %c0_i32_0 = arith.constant 0 : i32
    return %arg0, %c0_i32 : i32, i32
  }
}

</mosaic_0001>

<llo_original>
// kernel: discriminator_forward.6
$region0: #{discriminator_forward.6}
  #allocation0 [shape = 'u32[]', space=smem, size = 0x4, offset = 0x4, fixed_abs, tag = 'smem constant byte address 0x4 - core index']
  #allocation1 [shape = 'u32[144,128]{1,0:T(1,128)}', space=vmem, size = 0x12000, scoped, tag = 'internal scratch']
  %s0 = inlined_call_operand.vmem [shape: bf16[512,16], index: 0, kind: input, shape index: {}]
  %s1 = inlined_call_operand.vmem [shape: bf16[16,32], index: 1, kind: input, shape index: {}]
  %s2 = inlined_call_operand.vmem [shape: f32[512,32], index: 2, kind: output, shape index: {}]
  %s3 = sld [smem:[#allocation0]]
  $region41: #{discriminator_forward.6} parent=0
    _
  %s5 = ssub.s32 1, %s3
  %s6 = scalar_select 0, %s5, %s3
  loop: start=0, step=1, limit=4
  $region2: #{discriminator_forward.6} parent=0 // loop_pre_header
    _
  $region3: #{discriminator_forward.6} parent=0 // loop_header
    %s8 = sphi 0, %s12
    %p9 = scmp.ge.s32.totalorder %s8, 4
    %s18 = sphi 0, %s20
    %s21 = sphi 0, %s18
    %s22 = sphi 0, %s21
    %s38 = sphi 0, %s22
    %s42 = sphi 0, %s42
    %s44 = sphi 0, %s42
    %s45 = sphi 0, %s44
    %s59 = sphi 0, %s45
    %s65 = sphi 0, %s67
    %s68 = sphi 0, %s65
    %s69 = sphi 0, %s68
    %s85 = sphi 0, %s69
  $region4: #{discriminator_forward.6} parent=0 // loop_header_branch
    %11 = sbr.rel (%p9) target = $region8
  $region5: #{discriminator_forward.6} parent=0 // loop_body
    %s13 = ssub.s32 %s8, 1
    %s14 = ssub.s32 %s8, 2
    %s15 = sadd.s32 %s8, 1
    %s16 = ssub.s32 %s8, %s15
    %p17 = scmp.eq.s32.totalorder %s16, 0
    %s19 = sadd.s32 %s18, 1
    %s20 = scalar_select %p17, %s18, %s19
    %p23 = pneg %p17
    %p24 = scmp.eq.s32.totalorder %s8, 1
    %p25 = por %p23, %p24
    %p26 = scmp.ne.s32.totalorder %s18, %s21
    %p27 = scmp.eq.s32.totalorder %s8, 0
    %p28 = por %p26, %p27
    %p29 = scmp.ne.s32.totalorder %s18, %s21
    %p30 = scmp.eq.s32.totalorder %s13, 1
    %p31 = por %p29, %p30
    %p32 = scmp.ne.s32.totalorder %s21, %s22
    %p33 = scmp.eq.s32.totalorder %s13, 0
    %p34 = por %p32, %p33
    %p35 = scmp.ne.s32.totalorder %s21, %s22
    %p36 = scmp.eq.s32.totalorder %s14, 1
    %p37 = por %p35, %p36
    %p39 = scmp.ne.s32.totalorder %s22, %s38
    %p40 = scmp.eq.s32.totalorder %s14, 0
    %p41 = por %p39, %p40
    %s43 = sadd.s32 %s42, 1
    %p46 = scmp.eq.s32.totalorder %s8, 1
    %p47 = scmp.ne.s32.totalorder %s42, %s44
    %p48 = scmp.eq.s32.totalorder %s8, 0
    %p49 = por %p47, %p48
    %p50 = scmp.ne.s32.totalorder %s42, %s44
    %p51 = scmp.eq.s32.totalorder %s13, 1
    %p52 = por %p50, %p51
    %p53 = scmp.ne.s32.totalorder %s44, %s45
    %p54 = scmp.eq.s32.totalorder %s13, 0
    %p55 = por %p53, %p54
    %p56 = scmp.ne.s32.totalorder %s44, %s45
    %p57 = scmp.eq.s32.totalorder %s14, 1
    %p58 = por %p56, %p57
    %p60 = scmp.ne.s32.totalorder %s45, %s59
    %p61 = scmp.eq.s32.totalorder %s14, 0
    %p62 = por %p60, %p61
    %s63 = ssub.s32 %s8, %s15
    %p64 = scmp.eq.s32.totalorder %s63, 0
    %s66 = sadd.s32 %s65, 1
    %s67 = scalar_select %p64, %s65, %s66
    %p70 = pneg %p64
    %p71 = scmp.eq.s32.totalorder %s8, 1
    %p72 = por %p70, %p71
    %p73 = scmp.ne.s32.totalorder %s65, %s68
    %p74 = scmp.eq.s32.totalorder %s8, 0
    %p75 = por %p73, %p74
    %p76 = scmp.ne.s32.totalorder %s65, %s68
    %p77 = scmp.eq.s32.totalorder %s13, 1
    %p78 = por %p76, %p77
    %p79 = scmp.ne.s32.totalorder %s68, %s69
    %p80 = scmp.eq.s32.totalorder %s13, 0
    %p81 = por %p79, %p80
    %p82 = scmp.ne.s32.totalorder %s68, %s69
    %p83 = scmp.eq.s32.totalorder %s14, 1
    %p84 = por %p82, %p83
    %p86 = scmp.ne.s32.totalorder %s69, %s85
    %p87 = scmp.eq.s32.totalorder %s14, 0
    %p88 = por %p86, %p87
    %p89 = scmp.le.s32.totalorder 1, %s8
    %p90 = scmp.lt.s32.totalorder %s8, 3
    %p91 = pnand %p89, %p90
    %p92 = pneg %p91
    // Predicated region
    $region9: #{discriminator_forward.6} parent=5 // pred_check
      _
    $region10: #{discriminator_forward.6} parent=5 // pred_check_branch
      %94 = sbr.rel (%p91) target = $region12
    $region11: #{discriminator_forward.6} parent=5 // pred_region
      %s95 = ssub.s32 %s8, 1
      // Predicated region
      $region13: #{discriminator_forward.6} parent=11 // pred_check
        %p96 = pneg %p55
      $region14: #{discriminator_forward.6} parent=11 // pred_check_branch
        %98 = sbr.rel (%p96) target = $region16
      $region15: #{discriminator_forward.6} parent=11 // pred_region
        _
      $region16: #{discriminator_forward.6} parent=11 // pred_fallthru
        _
    $region12: #{discriminator_forward.6} parent=5 // pred_fallthru
      _
    %p99 = scmp.lt.s32.totalorder %s8, 2
    // Predicated region
    $region17: #{discriminator_forward.6} parent=5 // pred_check
      %p100 = pneg %p99
    $region18: #{discriminator_forward.6} parent=5 // pred_check_branch
      %102 = sbr.rel (%p100) target = $region20
    $region19: #{discriminator_forward.6} parent=5 // pred_region
      // Predicated region
      $region21: #{discriminator_forward.6} parent=19 // pred_check
        %p103 = pneg %p28
      $region22: #{discriminator_forward.6} parent=19 // pred_check_branch
        %105 = sbr.rel (%p103) target = $region24
      $region23: #{discriminator_forward.6} parent=19 // pred_region
        %s106 = smul.u32 32, %s8
        %p107 = scmp.lt.s32.totalorder %s106, 63
        %s108 = scalar_select %p107, %s106, 63
        %s109 = smul.addr %s108, 4
        %s110 = scalar_lea.vmem %s0, %s109
        %s111 = smul.u32 32, %s8
      $region24: #{discriminator_forward.6} parent=19 // pred_fallthru
        _
    $region20: #{discriminator_forward.6} parent=5 // pred_fallthru
      _
    %p112 = scmp.le.s32.totalorder 1, %s8
    %p113 = scmp.lt.s32.totalorder %s8, 3
    %p114 = pnand %p112, %p113
    %p115 = pneg %p114
    // Predicated region
    $region25: #{discriminator_forward.6} parent=5 // pred_check
      _
    $region26: #{discriminator_forward.6} parent=5 // pred_check_branch
      %117 = sbr.rel (%p114) target = $region28
    $region27: #{discriminator_forward.6} parent=5 // pred_region
      %s118 = ssub.s32 %s8, 1
      %s119 = smul.u32 32, %s13
      %p120 = scmp.lt.s32.totalorder %s119, 63
      %s121 = scalar_select %p120, %s119, 63
      %s122 = smul.addr %s121, 4
      %s123 = scalar_lea.vmem %s0, %s122
      %p124 = pneg %p34
      %p125 = pneg %p31
      %p126 = pneg %p55
      %p127 = pneg %p52
      %p128 = pneg %p81
      %p129 = pneg %p78
      %s130 = smul.u32 32, %s13
      %p131 = scmp.lt.s32.totalorder %s130, 63
      %s132 = scalar_select %p131, %s130, 63
      %s133 = smul.addr %s132, 8
      %s134 = scalar_lea.vmem %s2, %s133
      %s135 = smul.u32 32, %s13
      %p136 = scmp.lt.s32.totalorder %s135, 63
      %s137 = scalar_select %p136, %s135, 63
      %s138 = smul.addr %s137, 4
      %s139 = scalar_lea.vmem %s0, %s138
      %s140 = smul.u32 32, %s13
      %s141 = smul.u32 32, %s13
      %p142 = scmp.lt.s32.totalorder %s141, 63
      %s143 = scalar_select %p142, %s141, 63
      %s144 = smul.addr %s143, 8
      %s145 = scalar_lea.vmem %s2, %s144
      %s146 = smul.u32 32, %s13
      %v148 = vld [vmem:[%s139] sm:$0xf]
      %v149 = vld [vmem:[%s139 + $0x4] sm:$0xf]
      %v150 = vld [vmem:[%s139 + $0x8] sm:$0xf]
      %v151 = vld [vmem:[%s139 + $0xc] sm:$0xf]
      %v152 = vld [vmem:[%s139 + $0x10] sm:$0xf]
      %v153 = vld [vmem:[%s139 + $0x14] sm:$0xf]
      %v154 = vld [vmem:[%s139 + $0x18] sm:$0xf]
      %v155 = vld [vmem:[%s139 + $0x1c] sm:$0xf]
      %v156 = vld [vmem:[%s139 + $0x20] sm:$0xf]
      %v157 = vld [vmem:[%s139 + $0x24] sm:$0xf]
      %v158 = vld [vmem:[%s139 + $0x28] sm:$0xf]
      %v159 = vld [vmem:[%s139 + $0x2c] sm:$0xf]
      %v160 = vld [vmem:[%s139 + $0x30] sm:$0xf]
      %v161 = vld [vmem:[%s139 + $0x34] sm:$0xf]
      %v162 = vld [vmem:[%s139 + $0x38] sm:$0xf]
      %v163 = vld [vmem:[%s139 + $0x3c] sm:$0xf]
      %v164 = vld [vmem:[%s139 + $0x40] sm:$0xf]
      %v165 = vld [vmem:[%s139 + $0x44] sm:$0xf]
      %v166 = vld [vmem:[%s139 + $0x48] sm:$0xf]
      %v167 = vld [vmem:[%s139 + $0x4c] sm:$0xf]
      %v168 = vld [vmem:[%s139 + $0x50] sm:$0xf]
      %v169 = vld [vmem:[%s139 + $0x54] sm:$0xf]
      %v170 = vld [vmem:[%s139 + $0x58] sm:$0xf]
      %v171 = vld [vmem:[%s139 + $0x5c] sm:$0xf]
      %v172 = vld [vmem:[%s139 + $0x60] sm:$0xf]
      %v173 = vld [vmem:[%s139 + $0x64] sm:$0xf]
      %v174 = vld [vmem:[%s139 + $0x68] sm:$0xf]
      %v175 = vld [vmem:[%s139 + $0x6c] sm:$0xf]
      %v176 = vld [vmem:[%s139 + $0x70] sm:$0xf]
      %v177 = vld [vmem:[%s139 + $0x74] sm:$0xf]
      %v178 = vld [vmem:[%s139 + $0x78] sm:$0xf]
      %v179 = vld [vmem:[%s139 + $0x7c] sm:$0xf]
      %v180 = vld [vmem:[%s1] sm:$0xf]
      %v181 = vld [vmem:[%s1 + $0x4] sm:$0xf]
      %v214 = vunpack.c.l.b16 %v148
      %v215 = vunpack.c.l.b16 %v149
      %v216 = vunpack.c.l.b16 %v150
      %v217 = vunpack.c.l.b16 %v151
      %v218 = vunpack.c.l.b16 %v152
      %v219 = vunpack.c.l.b16 %v153
      %v220 = vunpack.c.l.b16 %v154
      %v221 = vunpack.c.l.b16 %v155
      %v222 = vunpack.c.l.b16 %v156
      %v223 = vunpack.c.l.b16 %v157
      %v224 = vunpack.c.l.b16 %v158
      %v225 = vunpack.c.l.b16 %v159
      %v226 = vunpack.c.l.b16 %v160
      %v227 = vunpack.c.l.b16 %v161
      %v228 = vunpack.c.l.b16 %v162
      %v229 = vunpack.c.l.b16 %v163
      %v230 = vunpack.c.l.b16 %v164
      %v231 = vunpack.c.l.b16 %v165
      %v232 = vunpack.c.l.b16 %v166
      %v233 = vunpack.c.l.b16 %v167
      %v234 = vunpack.c.l.b16 %v168
      %v235 = vunpack.c.l.b16 %v169
      %v236 = vunpack.c.l.b16 %v170
      %v237 = vunpack.c.l.b16 %v171
      %v238 = vunpack.c.l.b16 %v172
      %v239 = vunpack.c.l.b16 %v173
      %v240 = vunpack.c.l.b16 %v174
      %v241 = vunpack.c.l.b16 %v175
      %v242 = vunpack.c.l.b16 %v176
      %v243 = vunpack.c.l.b16 %v177
      %v244 = vunpack.c.l.b16 %v178
      %v245 = vunpack.c.l.b16 %v179
      %v246 = vpack.c.b16 %v215, %v214
      %v247 = vpack.c.b16 %v217, %v216
      %v248 = vpack.c.b16 %v219, %v218
      %v249 = vpack.c.b16 %v221, %v220
      %v250 = vpack.c.b16 %v223, %v222
      %v251 = vpack.c.b16 %v225, %v224
      %v252 = vpack.c.b16 %v227, %v226
      %v253 = vpack.c.b16 %v229, %v228
      %v254 = vpack.c.b16 %v231, %v230
      %v255 = vpack.c.b16 %v233, %v232
      %v256 = vpack.c.b16 %v235, %v234
      %v257 = vpack.c.b16 %v237, %v236
      %v258 = vpack.c.b16 %v239, %v238
      %v259 = vpack.c.b16 %v241, %v240
      %v260 = vpack.c.b16 %v243, %v242
      %v261 = vpack.c.b16 %v245, %v244
      %v264 = vunpack.c.l.b16 %v180
      %v265 = vunpack.c.l.b16 %v181
      %v266 = vpack.c.b16 %v265, %v264
      %vm268 = vcmask 130048
      %v270 = vsel %vm268, %v246, 0
      %v273 = vsel %vm268, %v247, 0
      %v276 = vsel %vm268, %v248, 0
      %v279 = vsel %vm268, %v249, 0
      %v282 = vsel %vm268, %v250, 0
      %v285 = vsel %vm268, %v251, 0
      %v288 = vsel %vm268, %v252, 0
      %v291 = vsel %vm268, %v253, 0
      %v294 = vsel %vm268, %v254, 0
      %v297 = vsel %vm268, %v255, 0
      %v300 = vsel %vm268, %v256, 0
      %v303 = vsel %vm268, %v257, 0
      %v306 = vsel %vm268, %v258, 0
      %v309 = vsel %vm268, %v259, 0
      %v312 = vsel %vm268, %v260, 0
      %v315 = vsel %vm268, %v261, 0
      %317 = vmatprep.subr.bf16.mxu0 0
      %318 = vmatpush1.bf16.msra.mxu0 %v266
      %319 = vmatprep.subr.bf16.mxu0 0
      %320 = vmatpush1.bf16.msra.mxu0 0
      %321 = vmatprep.subr.bf16.mxu0 0
      %322 = vmatpush1.bf16.msra.mxu0 0
      %323 = vmatprep.subr.bf16.mxu0 0
      %324 = vmatpush1.bf16.msra.mxu0 0
      %325 = vmatprep.subr.bf16.mxu0 0
      %326 = vmatpush1.bf16.msra.mxu0 0
      %327 = vmatprep.subr.bf16.mxu0 0
      %328 = vmatpush1.bf16.msra.mxu0 0
      %329 = vmatprep.subr.bf16.mxu0 0
      %330 = vmatpush1.bf16.msra.mxu0 0
      %331 = vmatprep.subr.bf16.mxu0 0
      %332 = vmatpush1.bf16.msra.mxu0 0
      %333 = vmatprep.subr.bf16.mxu0 0
      %334 = vmatpush1.bf16.msra.mxu0 0
      %335 = vmatprep.subr.bf16.mxu0 0
      %336 = vmatpush1.bf16.msra.mxu0 0
      %337 = vmatprep.subr.bf16.mxu0 0
      %338 = vmatpush1.bf16.msra.mxu0 0
      %339 = vmatprep.subr.bf16.mxu0 0
      %340 = vmatpush1.bf16.msra.mxu0 0
      %341 = vmatprep.subr.bf16.mxu0 0
      %342 = vmatpush1.bf16.msra.mxu0 0
      %343 = vmatprep.subr.bf16.mxu0 0
      %344 = vmatpush1.bf16.msra.mxu0 0
      %345 = vmatprep.subr.bf16.mxu0 0
      %346 = vmatpush1.bf16.msra.mxu0 0
      %347 = vmatprep.subr.bf16.mxu0 0
      %348 = vmatpush1.bf16.msra.mxu0 0
      %349 = vmatprep.mubr.bf16.mxu0 0
      %350 = vmatmul.mubr.bf16.gmra.mrb[0].mxu0 %v270
      %v351 = vpop.f32.mrb[0].mxu0
      %v352 = vadd.f32 0.0, %v351
      %v353 = vpop.f32.mrb[0].mxu0
      %v354 = vpop.f32.mrb[0].mxu0
      %v355 = vadd.f32 0.0, %v354
      %v356 = vpop.f32.mrb[0].mxu0
      %357 = vmatprep.mubr.bf16.mxu0 0
      %358 = vmatmul.mubr.bf16.gmra.mrb[0].mxu0 %v273
      %v359 = vpop.f32.mrb[0].mxu0
      %v360 = vadd.f32 0.0, %v359
      %v361 = vpop.f32.mrb[0].mxu0
      %v362 = vpop.f32.mrb[0].mxu0
      %v363 = vadd.f32 0.0, %v362
      %v364 = vpop.f32.mrb[0].mxu0
      %365 = vmatprep.mubr.bf16.mxu0 0
      %366 = vmatmul.mubr.bf16.gmra.mrb[0].mxu0 %v276
      %v367 = vpop.f32.mrb[0].mxu0
      %v368 = vadd.f32 0.0, %v367
      %v369 = vpop.f32.mrb[0].mxu0
      %v370 = vpop.f32.mrb[0].mxu0
      %v371 = vadd.f32 0.0, %v370
      %v372 = vpop.f32.mrb[0].mxu0
      %373 = vmatprep.mubr.bf16.mxu0 0
      %374 = vmatmul.mubr.bf16.gmra.mrb[0].mxu0 %v279
      %v375 = vpop.f32.mrb[0].mxu0
      %v376 = vadd.f32 0.0, %v375
      %v377 = vpop.f32.mrb[0].mxu0
      %v378 = vpop.f32.mrb[0].mxu0
      %v379 = vadd.f32 0.0, %v378
      %v380 = vpop.f32.mrb[0].mxu0
      %381 = vmatprep.mubr.bf16.mxu0 0
      %382 = vmatmul.mubr.bf16.gmra.mrb[0].mxu0 %v282
      %v383 = vpop.f32.mrb[0].mxu0
      %v384 = vadd.f32 0.0, %v383
      %v385 = vpop.f32.mrb[0].mxu0
      %v386 = vpop.f32.mrb[0].mxu0
      %v387 = vadd.f32 0.0, %v386
      %v388 = vpop.f32.mrb[0].mxu0
      %389 = vmatprep.mubr.bf16.mxu0 0
      %390 = vmatmul.mubr.bf16.gmra.mrb[0].mxu0 %v285
      %v391 = vpop.f32.mrb[0].mxu0
      %v392 = vadd.f32 0.0, %v391
      %v393 = vpop.f32.mrb[0].mxu0
      %v394 = vpop.f32.mrb[0].mxu0
      %v395 = vadd.f32 0.0, %v394
      %v396 = vpop.f32.mrb[0].mxu0
      %397 = vmatprep.mubr.bf16.mxu0 0
      %398 = vmatmul.mubr.bf16.gmra.mrb[0].mxu0 %v288
      %v399 = vpop.f32.mrb[0].mxu0
      %v400 = vadd.f32 0.0, %v399
      %v401 = vpop.f32.mrb[0].mxu0
      %v402 = vpop.f32.mrb[0].mxu0
      %v403 = vadd.f32 0.0, %v402
      %v404 = vpop.f32.mrb[0].mxu0
      %405 = vmatprep.mubr.bf16.mxu0 0
      %406 = vmatmul.mubr.bf16.gmra.mrb[0].mxu0 %v291
      %v407 = vpop.f32.mrb[0].mxu0
      %v408 = vadd.f32 0.0, %v407
      %v409 = vpop.f32.mrb[0].mxu0
      %v410 = vpop.f32.mrb[0].mxu0
      %v411 = vadd.f32 0.0, %v410
      %v412 = vpop.f32.mrb[0].mxu0
      %413 = vmatprep.mubr.bf16.mxu0 0
      %414 = vmatmul.mubr.bf16.gmra.mrb[0].mxu0 %v294
      %v415 = vpop.f32.mrb[0].mxu0
      %v416 = vadd.f32 0.0, %v415
      %v417 = vpop.f32.mrb[0].mxu0
      %v418 = vpop.f32.mrb[0].mxu0
      %v419 = vadd.f32 0.0, %v418
      %v420 = vpop.f32.mrb[0].mxu0
      %421 = vmatprep.mubr.bf16.mxu0 0
      %422 = vmatmul.mubr.bf16.gmra.mrb[0].mxu0 %v297
      %v423 = vpop.f32.mrb[0].mxu0
      %v424 = vadd.f32 0.0, %v423
      %v425 = vpop.f32.mrb[0].mxu0
      %v426 = vpop.f32.mrb[0].mxu0
      %v427 = vadd.f32 0.0, %v426
      %v428 = vpop.f32.mrb[0].mxu0
      %429 = vmatprep.mubr.bf16.mxu0 0
      %430 = vmatmul.mubr.bf16.gmra.mrb[0].mxu0 %v300
      %v431 = vpop.f32.mrb[0].mxu0
      %v432 = vadd.f32 0.0, %v431
      %v433 = vpop.f32.mrb[0].mxu0
      %v434 = vpop.f32.mrb[0].mxu0
      %v435 = vadd.f32 0.0, %v434
      %v436 = vpop.f32.mrb[0].mxu0
      %437 = vmatprep.mubr.bf16.mxu0 0
      %438 = vmatmul.mubr.bf16.gmra.mrb[0].mxu0 %v303
      %v439 = vpop.f32.mrb[0].mxu0
      %v440 = vadd.f32 0.0, %v439
      %v441 = vpop.f32.mrb[0].mxu0
      %v442 = vpop.f32.mrb[0].mxu0
      %v443 = vadd.f32 0.0, %v442
      %v444 = vpop.f32.mrb[0].mxu0
      %445 = vmatprep.mubr.bf16.mxu0 0
      %446 = vmatmul.mubr.bf16.gmra.mrb[0].mxu0 %v306
      %v447 = vpop.f32.mrb[0].mxu0
      %v448 = vadd.f32 0.0, %v447
      %v449 = vpop.f32.mrb[0].mxu0
      %v450 = vpop.f32.mrb[0].mxu0
      %v451 = vadd.f32 0.0, %v450
      %v452 = vpop.f32.mrb[0].mxu0
      %453 = vmatprep.mubr.bf16.mxu0 0
      %454 = vmatmul.mubr.bf16.gmra.mrb[0].mxu0 %v309
      %v455 = vpop.f32.mrb[0].mxu0
      %v456 = vadd.f32 0.0, %v455
      %v457 = vpop.f32.mrb[0].mxu0
      %v458 = vpop.f32.mrb[0].mxu0
      %v459 = vadd.f32 0.0, %v458
      %v460 = vpop.f32.mrb[0].mxu0
      %461 = vmatprep.mubr.bf16.mxu0 0
      %462 = vmatmul.mubr.bf16.gmra.mrb[0].mxu0 %v312
      %v463 = vpop.f32.mrb[0].mxu0
      %v464 = vadd.f32 0.0, %v463
      %v465 = vpop.f32.mrb[0].mxu0
      %v466 = vpop.f32.mrb[0].mxu0
      %v467 = vadd.f32 0.0, %v466
      %v468 = vpop.f32.mrb[0].mxu0
      %469 = vmatprep.mubr.bf16.mxu0 0
      %470 = vmatmul.mubr.bf16.gmra.mrb[0].mxu0 %v315
      %v471 = vpop.f32.mrb[0].mxu0
      %v472 = vadd.f32 0.0, %v471
      %v473 = vpop.f32.mrb[0].mxu0
      %v474 = vpop.f32.mrb[0].mxu0
      %v475 = vadd.f32 0.0, %v474
      %v476 = vpop.f32.mrb[0].mxu0
      %477 = vdwg.mxu0
      %vm478 = vcmp.ge.f32.partialorder %v352, 0.0
      %vm479 = vcmp.ge.f32.partialorder %v355, 0.0
      %vm480 = vcmp.ge.f32.partialorder %v360, 0.0
      %vm481 = vcmp.ge.f32.partialorder %v363, 0.0
      %vm482 = vcmp.ge.f32.partialorder %v368, 0.0
      %vm483 = vcmp.ge.f32.partialorder %v371, 0.0
      %vm484 = vcmp.ge.f32.partialorder %v376, 0.0
      %vm485 = vcmp.ge.f32.partialorder %v379, 0.0
      %vm486 = vcmp.ge.f32.partialorder %v384, 0.0
      %vm487 = vcmp.ge.f32.partialorder %v387, 0.0
      %vm488 = vcmp.ge.f32.partialorder %v392, 0.0
      %vm489 = vcmp.ge.f32.partialorder %v395, 0.0
      %vm490 = vcmp.ge.f32.partialorder %v400, 0.0
      %vm491 = vcmp.ge.f32.partialorder %v403, 0.0
      %vm492 = vcmp.ge.f32.partialorder %v408, 0.0
      %vm493 = vcmp.ge.f32.partialorder %v411, 0.0
      %vm494 = vcmp.ge.f32.partialorder %v416, 0.0
      %vm495 = vcmp.ge.f32.partialorder %v419, 0.0
      %vm496 = vcmp.ge.f32.partialorder %v424, 0.0
      %vm497 = vcmp.ge.f32.partialorder %v427, 0.0
      %vm498 = vcmp.ge.f32.partialorder %v432, 0.0
      %vm499 = vcmp.ge.f32.partialorder %v435, 0.0
      %vm500 = vcmp.ge.f32.partialorder %v440, 0.0
      %vm501 = vcmp.ge.f32.partialorder %v443, 0.0
      %vm502 = vcmp.ge.f32.partialorder %v448, 0.0
      %vm503 = vcmp.ge.f32.partialorder %v451, 0.0
      %vm504 = vcmp.ge.f32.partialorder %v456, 0.0
      %vm505 = vcmp.ge.f32.partialorder %v459, 0.0
      %vm506 = vcmp.ge.f32.partialorder %v464, 0.0
      %vm507 = vcmp.ge.f32.partialorder %v467, 0.0
      %vm508 = vcmp.ge.f32.partialorder %v472, 0.0
      %vm509 = vcmp.ge.f32.partialorder %v475, 0.0
      %v510 = vmul.f32 %v352, 0.2
      %v511 = vmul.f32 %v355, 0.2
      %v512 = vmul.f32 %v360, 0.2
      %v513 = vmul.f32 %v363, 0.2
      %v514 = vmul.f32 %v368, 0.2
      %v515 = vmul.f32 %v371, 0.2
      %v516 = vmul.f32 %v376, 0.2
      %v517 = vmul.f32 %v379, 0.2
      %v518 = vmul.f32 %v384, 0.2
      %v519 = vmul.f32 %v387, 0.2
      %v520 = vmul.f32 %v392, 0.2
      %v521 = vmul.f32 %v395, 0.2
      %v522 = vmul.f32 %v400, 0.2
      %v523 = vmul.f32 %v403, 0.2
      %v524 = vmul.f32 %v408, 0.2
      %v525 = vmul.f32 %v411, 0.2
      %v526 = vmul.f32 %v416, 0.2
      %v527 = vmul.f32 %v419, 0.2
      %v528 = vmul.f32 %v424, 0.2
      %v529 = vmul.f32 %v427, 0.2
      %v530 = vmul.f32 %v432, 0.2
      %v531 = vmul.f32 %v435, 0.2
      %v532 = vmul.f32 %v440, 0.2
      %v533 = vmul.f32 %v443, 0.2
      %v534 = vmul.f32 %v448, 0.2
      %v535 = vmul.f32 %v451, 0.2
      %v536 = vmul.f32 %v456, 0.2
      %v537 = vmul.f32 %v459, 0.2
      %v538 = vmul.f32 %v464, 0.2
      %v539 = vmul.f32 %v467, 0.2
      %v540 = vmul.f32 %v472, 0.2
      %v541 = vmul.f32 %v475, 0.2
      %v542 = vsel %vm478, %v352, %v510
      %v543 = vsel %vm479, %v355, %v511
      %v544 = vsel %vm480, %v360, %v512
      %v545 = vsel %vm481, %v363, %v513
      %v546 = vsel %vm482, %v368, %v514
      %v547 = vsel %vm483, %v371, %v515
      %v548 = vsel %vm484, %v376, %v516
      %v549 = vsel %vm485, %v379, %v517
      %v550 = vsel %vm486, %v384, %v518
      %v551 = vsel %vm487, %v387, %v519
      %v552 = vsel %vm488, %v392, %v520
      %v553 = vsel %vm489, %v395, %v521
      %v554 = vsel %vm490, %v400, %v522
      %v555 = vsel %vm491, %v403, %v523
      %v556 = vsel %vm492, %v408, %v524
      %v557 = vsel %vm493, %v411, %v525
      %v558 = vsel %vm494, %v416, %v526
      %v559 = vsel %vm495, %v419, %v527
      %v560 = vsel %vm496, %v424, %v528
      %v561 = vsel %vm497, %v427, %v529
      %v562 = vsel %vm498, %v432, %v530
      %v563 = vsel %vm499, %v435, %v531
      %v564 = vsel %vm500, %v440, %v532
      %v565 = vsel %vm501, %v443, %v533
      %v566 = vsel %vm502, %v448, %v534
      %v567 = vsel %vm503, %v451, %v535
      %v568 = vsel %vm504, %v456, %v536
      %v569 = vsel %vm505, %v459, %v537
      %v570 = vsel %vm506, %v464, %v538
      %v571 = vsel %vm507, %v467, %v539
      %v572 = vsel %vm508, %v472, %v540
      %v573 = vsel %vm509, %v475, %v541
      %vm574 = vcmask 261120
      %575 = vst.msk [vmem:[%s145] sm:$0xff] %vm574, %v542
      %576 = vst.msk [vmem:[%s145 + $0x8] sm:$0xff] %vm574, %v543
      %577 = vst.msk [vmem:[%s145 + $0x10] sm:$0xff] %vm574, %v544
      %578 = vst.msk [vmem:[%s145 + $0x18] sm:$0xff] %vm574, %v545
      %579 = vst.msk [vmem:[%s145 + $0x20] sm:$0xff] %vm574, %v546
      %580 = vst.msk [vmem:[%s145 + $0x28] sm:$0xff] %vm574, %v547
      %581 = vst.msk [vmem:[%s145 + $0x30] sm:$0xff] %vm574, %v548
      %582 = vst.msk [vmem:[%s145 + $0x38] sm:$0xff] %vm574, %v549
      %583 = vst.msk [vmem:[%s145 + $0x40] sm:$0xff] %vm574, %v550
      %584 = vst.msk [vmem:[%s145 + $0x48] sm:$0xff] %vm574, %v551
      %585 = vst.msk [vmem:[%s145 + $0x50] sm:$0xff] %vm574, %v552
      %586 = vst.msk [vmem:[%s145 + $0x58] sm:$0xff] %vm574, %v553
      %587 = vst.msk [vmem:[%s145 + $0x60] sm:$0xff] %vm574, %v554
      %588 = vst.msk [vmem:[%s145 + $0x68] sm:$0xff] %vm574, %v555
      %589 = vst.msk [vmem:[%s145 + $0x70] sm:$0xff] %vm574, %v556
      %590 = vst.msk [vmem:[%s145 + $0x78] sm:$0xff] %vm574, %v557
      %591 = vst.msk [vmem:[%s145 + $0x80] sm:$0xff] %vm574, %v558
      %592 = vst.msk [vmem:[%s145 + $0x88] sm:$0xff] %vm574, %v559
      %593 = vst.msk [vmem:[%s145 + $0x90] sm:$0xff] %vm574, %v560
      %594 = vst.msk [vmem:[%s145 + $0x98] sm:$0xff] %vm574, %v561
      %595 = vst.msk [vmem:[%s145 + $0xa0] sm:$0xff] %vm574, %v562
      %596 = vst.msk [vmem:[%s145 + $0xa8] sm:$0xff] %vm574, %v563
      %597 = vst.msk [vmem:[%s145 + $0xb0] sm:$0xff] %vm574, %v564
      %598 = vst.msk [vmem:[%s145 + $0xb8] sm:$0xff] %vm574, %v565
      %599 = vst.msk [vmem:[%s145 + $0xc0] sm:$0xff] %vm574, %v566
      %600 = vst.msk [vmem:[%s145 + $0xc8] sm:$0xff] %vm574, %v567
      %601 = vst.msk [vmem:[%s145 + $0xd0] sm:$0xff] %vm574, %v568
      %602 = vst.msk [vmem:[%s145 + $0xd8] sm:$0xff] %vm574, %v569
      %603 = vst.msk [vmem:[%s145 + $0xe0] sm:$0xff] %vm574, %v570
      %604 = vst.msk [vmem:[%s145 + $0xe8] sm:$0xff] %vm574, %v571
      %605 = vst.msk [vmem:[%s145 + $0xf0] sm:$0xff] %vm574, %v572
      %606 = vst.msk [vmem:[%s145 + $0xf8] sm:$0xff] %vm574, %v573
      %s607 = smul.u32 32, %s13
      %p608 = scmp.lt.s32.totalorder %s607, 63
      %s609 = scalar_select %p608, %s607, 63
      %s610 = smul.addr %s609, 8
      %s611 = scalar_lea.vmem %s2, %s610
      // Predicated region
      $region29: #{discriminator_forward.6} parent=27 // pred_check
        %p612 = pneg %p78
      $region30: #{discriminator_forward.6} parent=27 // pred_check_branch
        %614 = sbr.rel (%p612) target = $region32
      $region31: #{discriminator_forward.6} parent=27 // pred_region
        %s615 = smul.u32 32, %s13
      $region32: #{discriminator_forward.6} parent=27 // pred_fallthru
        _
    $region28: #{discriminator_forward.6} parent=5 // pred_fallthru
      _
    %p616 = scmp.le.s32.totalorder 2, %s8
    // Predicated region
    $region33: #{discriminator_forward.6} parent=5 // pred_check
      %p617 = pneg %p616
    $region34: #{discriminator_forward.6} parent=5 // pred_check_branch
      %619 = sbr.rel (%p617) target = $region36
    $region35: #{discriminator_forward.6} parent=5 // pred_region
      %s620 = ssub.s32 %s8, 2
      // Predicated region
      $region37: #{discriminator_forward.6} parent=35 // pred_check
        %p621 = pneg %p84
      $region38: #{discriminator_forward.6} parent=35 // pred_check_branch
        %623 = sbr.rel (%p621) target = $region40
      $region39: #{discriminator_forward.6} parent=35 // pred_region
        %s624 = smul.u32 32, %s14
        %p625 = scmp.lt.s32.totalorder %s624, 63
        %s626 = scalar_select %p625, %s624, 63
        %s627 = smul.addr %s626, 8
        %s628 = scalar_lea.vmem %s2, %s627
      $region40: #{discriminator_forward.6} parent=35 // pred_fallthru
        _
    $region36: #{discriminator_forward.6} parent=5 // pred_fallthru
      _
  $region6: #{discriminator_forward.6} parent=0 // loop_footer
    %s12 = sadd.s32 1, %s8
  $region7: #{discriminator_forward.6} parent=0 // loop_footer_branch
    %7 = sbr.rel target = $region3
  $region8: #{discriminator_forward.6} parent=0 // loop_exit
    _

// kernel: discriminator_forward.8
$region0: #{discriminator_forward.8}
  #allocation0 [shape = 'u32[]', space=smem, size = 0x4, offset = 0x4, fixed_abs, tag = 'smem constant byte address 0x4 - core index']
  #allocation1 [shape = 'u32[144,128]{1,0:T(1,128)}', space=vmem, size = 0x12000, scoped, tag = 'internal scratch']
  %s0 = inlined_call_operand.vmem [shape: f32[128,64], index: 0, kind: input, shape index: {}]
  %s1 = inlined_call_operand.vmem [shape: f32[1,64], index: 1, kind: input, shape index: {}]
  %s2 = inlined_call_operand.vmem [shape: f32[1,64], index: 2, kind: input, shape index: {}]
  %s3 = inlined_call_operand.vmem [shape: f32[128,64], index: 3, kind: output, shape index: {}]
  %s4 = sld [smem:[#allocation0]]
  $region22: #{discriminator_forward.8} parent=0
    _
  %s6 = ssub.s32 1, %s4
  %s7 = scalar_select 0, %s6, %s4
  // Predicated region
  $region2: #{discriminator_forward.8} parent=0 // pred_check
    _
  $region3: #{discriminator_forward.8} parent=0 // pred_check_branch
    %9 = sbr.rel (0) target = $region5
  $region4: #{discriminator_forward.8} parent=0 // pred_region
    _
  $region5: #{discriminator_forward.8} parent=0 // pred_fallthru
    _
  // Predicated region
  $region6: #{discriminator_forward.8} parent=0 // pred_check
    _
  $region7: #{discriminator_forward.8} parent=0 // pred_check_branch
    %11 = sbr.rel (0) target = $region9
  $region8: #{discriminator_forward.8} parent=0 // pred_region
    _
  $region9: #{discriminator_forward.8} parent=0 // pred_fallthru
    _
  // Predicated region
  $region10: #{discriminator_forward.8} parent=0 // pred_check
    _
  $region11: #{discriminator_forward.8} parent=0 // pred_check_branch
    %13 = sbr.rel (0) target = $region13
  $region12: #{discriminator_forward.8} parent=0 // pred_region
    _
  $region13: #{discriminator_forward.8} parent=0 // pred_fallthru
    _
  %v14 = vld [vmem:[%s0] sm:$0xff]
  %v15 = vld [vmem:[%s0 + $0x8] sm:$0xff]
  %v16 = vld [vmem:[%s0 + $0x10] sm:$0xff]
  %v17 = vld [vmem:[%s0 + $0x18] sm:$0xff]
  %v18 = vld [vmem:[%s0 + $0x20] sm:$0xff]
  %v19 = vld [vmem:[%s0 + $0x28] sm:$0xff]
  %v20 = vld [vmem:[%s0 + $0x30] sm:$0xff]
  %v21 = vld [vmem:[%s0 + $0x38] sm:$0xff]
  %v22 = vld [vmem:[%s0 + $0x40] sm:$0xff]
  %v23 = vld [vmem:[%s0 + $0x48] sm:$0xff]
  %v24 = vld [vmem:[%s0 + $0x50] sm:$0xff]
  %v25 = vld [vmem:[%s0 + $0x58] sm:$0xff]
  %v26 = vld [vmem:[%s0 + $0x60] sm:$0xff]
  %v27 = vld [vmem:[%s0 + $0x68] sm:$0xff]
  %v28 = vld [vmem:[%s0 + $0x70] sm:$0xff]
  %v29 = vld [vmem:[%s0 + $0x78] sm:$0xff]
  %v30 = vld [vmem:[%s1] sm:$0x1]
  %v32 = vlaneseq
  %v33 = vshrl.u32 %v32, 7
  %v34 = vsub.s32 0, %v33
  %v35 = vrot.slane %v30, %v34
  %v37 = vmul.f32 %v14, %v35
  %v38 = vmul.f32 %v15, %v35
  %v39 = vmul.f32 %v16, %v35
  %v40 = vmul.f32 %v17, %v35
  %v41 = vmul.f32 %v18, %v35
  %v42 = vmul.f32 %v19, %v35
  %v43 = vmul.f32 %v20, %v35
  %v44 = vmul.f32 %v21, %v35
  %v45 = vmul.f32 %v22, %v35
  %v46 = vmul.f32 %v23, %v35
  %v47 = vmul.f32 %v24, %v35
  %v48 = vmul.f32 %v25, %v35
  %v49 = vmul.f32 %v26, %v35
  %v50 = vmul.f32 %v27, %v35
  %v51 = vmul.f32 %v28, %v35
  %v52 = vmul.f32 %v29, %v35
  %v53 = vld [vmem:[%s2] sm:$0x1]
  %v55 = vlaneseq
  %v56 = vshrl.u32 %v55, 7
  %v57 = vsub.s32 0, %v56
  %v58 = vrot.slane %v53, %v57
  %v60 = vadd.f32 %v37, %v58
  %v61 = vadd.f32 %v38, %v58
  %v62 = vadd.f32 %v39, %v58
  %v63 = vadd.f32 %v40, %v58
  %v64 = vadd.f32 %v41, %v58
  %v65 = vadd.f32 %v42, %v58
  %v66 = vadd.f32 %v43, %v58
  %v67 = vadd.f32 %v44, %v58
  %v68 = vadd.f32 %v45, %v58
  %v69 = vadd.f32 %v46, %v58
  %v70 = vadd.f32 %v47, %v58
  %v71 = vadd.f32 %v48, %v58
  %v72 = vadd.f32 %v49, %v58
  %v73 = vadd.f32 %v50, %v58
  %v74 = vadd.f32 %v51, %v58
  %v75 = vadd.f32 %v52, %v58
  %vm76 = vcmp.ge.f32.partialorder %v60, 0.0
  %vm77 = vcmp.ge.f32.partialorder %v61, 0.0
  %vm78 = vcmp.ge.f32.partialorder %v62, 0.0
  %vm79 = vcmp.ge.f32.partialorder %v63, 0.0
  %vm80 = vcmp.ge.f32.partialorder %v64, 0.0
  %vm81 = vcmp.ge.f32.partialorder %v65, 0.0
  %vm82 = vcmp.ge.f32.partialorder %v66, 0.0
  %vm83 = vcmp.ge.f32.partialorder %v67, 0.0
  %vm84 = vcmp.ge.f32.partialorder %v68, 0.0
  %vm85 = vcmp.ge.f32.partialorder %v69, 0.0
  %vm86 = vcmp.ge.f32.partialorder %v70, 0.0
  %vm87 = vcmp.ge.f32.partialorder %v71, 0.0
  %vm88 = vcmp.ge.f32.partialorder %v72, 0.0
  %vm89 = vcmp.ge.f32.partialorder %v73, 0.0
  %vm90 = vcmp.ge.f32.partialorder %v74, 0.0
  %vm91 = vcmp.ge.f32.partialorder %v75, 0.0
  %v92 = vmul.f32 %v60, 0.2
  %v93 = vmul.f32 %v61, 0.2
  %v94 = vmul.f32 %v62, 0.2
  %v95 = vmul.f32 %v63, 0.2
  %v96 = vmul.f32 %v64, 0.2
  %v97 = vmul.f32 %v65, 0.2
  %v98 = vmul.f32 %v66, 0.2
  %v99 = vmul.f32 %v67, 0.2
  %v100 = vmul.f32 %v68, 0.2
  %v101 = vmul.f32 %v69, 0.2
  %v102 = vmul.f32 %v70, 0.2
  %v103 = vmul.f32 %v71, 0.2
  %v104 = vmul.f32 %v72, 0.2
  %v105 = vmul.f32 %v73, 0.2
  %v106 = vmul.f32 %v74, 0.2
  %v107 = vmul.f32 %v75, 0.2
  %v108 = vsel %vm76, %v60, %v92
  %v109 = vsel %vm77, %v61, %v93
  %v110 = vsel %vm78, %v62, %v94
  %v111 = vsel %vm79, %v63, %v95
  %v112 = vsel %vm80, %v64, %v96
  %v113 = vsel %vm81, %v65, %v97
  %v114 = vsel %vm82, %v66, %v98
  %v115 = vsel %vm83, %v67, %v99
  %v116 = vsel %vm84, %v68, %v100
  %v117 = vsel %vm85, %v69, %v101
  %v118 = vsel %vm86, %v70, %v102
  %v119 = vsel %vm87, %v71, %v103
  %v120 = vsel %vm88, %v72, %v104
  %v121 = vsel %vm89, %v73, %v105
  %v122 = vsel %vm90, %v74, %v106
  %v123 = vsel %vm91, %v75, %v107
  %vm124 = vcmask 523264
  %125 = vst.msk [vmem:[%s3] sm:$0xff] %vm124, %v108
  %126 = vst.msk [vmem:[%s3 + $0x8] sm:$0xff] %vm124, %v109
  %127 = vst.msk [vmem:[%s3 + $0x10] sm:$0xff] %vm124, %v110
  %128 = vst.msk [vmem:[%s3 + $0x18] sm:$0xff] %vm124, %v111
  %129 = vst.msk [vmem:[%s3 + $0x20] sm:$0xff] %vm124, %v112
  %130 = vst.msk [vmem:[%s3 + $0x28] sm:$0xff] %vm124, %v113
  %131 = vst.msk [vmem:[%s3 + $0x30] sm:$0xff] %vm124, %v114
  %132 = vst.msk [vmem:[%s3 + $0x38] sm:$0xff] %vm124, %v115
  %133 = vst.msk [vmem:[%s3 + $0x40] sm:$0xff] %vm124, %v116
  %134 = vst.msk [vmem:[%s3 + $0x48] sm:$0xff] %vm124, %v117
  %135 = vst.msk [vmem:[%s3 + $0x50] sm:$0xff] %vm124, %v118
  %136 = vst.msk [vmem:[%s3 + $0x58] sm:$0xff] %vm124, %v119
  %137 = vst.msk [vmem:[%s3 + $0x60] sm:$0xff] %vm124, %v120
  %138 = vst.msk [vmem:[%s3 + $0x68] sm:$0xff] %vm124, %v121
  %139 = vst.msk [vmem:[%s3 + $0x70] sm:$0xff] %vm124, %v122
  %140 = vst.msk [vmem:[%s3 + $0x78] sm:$0xff] %vm124, %v123
  // Predicated region
  $region14: #{discriminator_forward.8} parent=0 // pred_check
    _
  $region15: #{discriminator_forward.8} parent=0 // pred_check_branch
    %142 = sbr.rel (0) target = $region17
  $region16: #{discriminator_forward.8} parent=0 // pred_region
    _
  $region17: #{discriminator_forward.8} parent=0 // pred_fallthru
    _
  // Predicated region
  $region18: #{discriminator_forward.8} parent=0 // pred_check
    _
  $region19: #{discriminator_forward.8} parent=0 // pred_check_branch
    %144 = sbr.rel (0) target = $region21
  $region20: #{discriminator_forward.8} parent=0 // pred_region
    _
  $region21: #{discriminator_forward.8} parent=0 // pred_fallthru
    _

// kernel: discriminator_forward.7
$region0: #{discriminator_forward.7}
  #allocation0 [shape = 'u32[]', space=smem, size = 0x4, offset = 0x4, fixed_abs, tag = 'smem constant byte address 0x4 - core index']
  #allocation1 [shape = 'u32[144,128]{1,0:T(1,128)}', space=vmem, size = 0x12000, scoped, tag = 'internal scratch']
  %s0 = inlined_call_operand.vmem [shape: bf16[128,512], index: 0, kind: input, shape index: {}]
  %s1 = inlined_call_operand.vmem [shape: bf16[512,64], index: 1, kind: input, shape index: {}]
  %s2 = inlined_call_operand.vmem [shape: f32[128,64], index: 2, kind: output, shape index: {0}]
  %s3 = inlined_call_operand.vmem [shape: f32[1,2,64], index: 3, kind: output, shape index: {1}]
  %4 = xla_tuple %s2, %s3
  %s5 = sld [smem:[#allocation0]]
  $region26: #{discriminator_forward.7} parent=0
    _
  %s7 = ssub.s32 1, %s5
  %s8 = scalar_select 0, %s7, %s5
  // Predicated region
  $region2: #{discriminator_forward.7} parent=0 // pred_check
    _
  $region3: #{discriminator_forward.7} parent=0 // pred_check_branch
    %10 = sbr.rel (0) target = $region5
  $region4: #{discriminator_forward.7} parent=0 // pred_region
    _
  $region5: #{discriminator_forward.7} parent=0 // pred_fallthru
    _
  // Predicated region
  $region6: #{discriminator_forward.7} parent=0 // pred_check
    _
  $region7: #{discriminator_forward.7} parent=0 // pred_check_branch
    %12 = sbr.rel (0) target = $region9
  $region8: #{discriminator_forward.7} parent=0 // pred_region
    _
  $region9: #{discriminator_forward.7} parent=0 // pred_fallthru
    _
  %v14 = vld [vmem:[%s0] sm:$0xff]
  %v15 = vld [vmem:[%s0 + $0x8] sm:$0xff]
  %v16 = vld [vmem:[%s0 + $0x10] sm:$0xff]
  %v17 = vld [vmem:[%s0 + $0x18] sm:$0xff]
  %v18 = vld [vmem:[%s0 + $0x20] sm:$0xff]
  %v19 = vld [vmem:[%s0 + $0x28] sm:$0xff]
  %v20 = vld [vmem:[%s0 + $0x30] sm:$0xff]
  %v21 = vld [vmem:[%s0 + $0x38] sm:$0xff]
  %v22 = vld [vmem:[%s0 + $0x40] sm:$0xff]
  %v23 = vld [vmem:[%s0 + $0x48] sm:$0xff]
  %v24 = vld [vmem:[%s0 + $0x50] sm:$0xff]
  %v25 = vld [vmem:[%s0 + $0x58] sm:$0xff]
  %v26 = vld [vmem:[%s0 + $0x60] sm:$0xff]
  %v27 = vld [vmem:[%s0 + $0x68] sm:$0xff]
  %v28 = vld [vmem:[%s0 + $0x70] sm:$0xff]
  %v29 = vld [vmem:[%s0 + $0x78] sm:$0xff]
  %v30 = vld [vmem:[%s0 + $0x80] sm:$0xff]
  %v31 = vld [vmem:[%s0 + $0x88] sm:$0xff]
  %v32 = vld [vmem:[%s0 + $0x90] sm:$0xff]
  %v33 = vld [vmem:[%s0 + $0x98] sm:$0xff]
  %v34 = vld [vmem:[%s0 + $0xa0] sm:$0xff]
  %v35 = vld [vmem:[%s0 + $0xa8] sm:$0xff]
  %v36 = vld [vmem:[%s0 + $0xb0] sm:$0xff]
  %v37 = vld [vmem:[%s0 + $0xb8] sm:$0xff]
  %v38 = vld [vmem:[%s0 + $0xc0] sm:$0xff]
  %v39 = vld [vmem:[%s0 + $0xc8] sm:$0xff]
  %v40 = vld [vmem:[%s0 + $0xd0] sm:$0xff]
  %v41 = vld [vmem:[%s0 + $0xd8] sm:$0xff]
  %v42 = vld [vmem:[%s0 + $0xe0] sm:$0xff]
  %v43 = vld [vmem:[%s0 + $0xe8] sm:$0xff]
  %v44 = vld [vmem:[%s0 + $0xf0] sm:$0xff]
  %v45 = vld [vmem:[%s0 + $0xf8] sm:$0xff]
  %v46 = vld [vmem:[%s1] sm:$0xf]
  %v47 = vld [vmem:[%s1 + $0x4] sm:$0xf]
  %v48 = vld [vmem:[%s1 + $0x8] sm:$0xf]
  %v49 = vld [vmem:[%s1 + $0xc] sm:$0xf]
  %v50 = vld [vmem:[%s1 + $0x10] sm:$0xf]
  %v51 = vld [vmem:[%s1 + $0x14] sm:$0xf]
  %v52 = vld [vmem:[%s1 + $0x18] sm:$0xf]
  %v53 = vld [vmem:[%s1 + $0x1c] sm:$0xf]
  %v54 = vld [vmem:[%s1 + $0x20] sm:$0xf]
  %v55 = vld [vmem:[%s1 + $0x24] sm:$0xf]
  %v56 = vld [vmem:[%s1 + $0x28] sm:$0xf]
  %v57 = vld [vmem:[%s1 + $0x2c] sm:$0xf]
  %v58 = vld [vmem:[%s1 + $0x30] sm:$0xf]
  %v59 = vld [vmem:[%s1 + $0x34] sm:$0xf]
  %v60 = vld [vmem:[%s1 + $0x38] sm:$0xf]
  %v61 = vld [vmem:[%s1 + $0x3c] sm:$0xf]
  %v62 = vld [vmem:[%s1 + $0x40] sm:$0xf]
  %v63 = vld [vmem:[%s1 + $0x44] sm:$0xf]
  %v64 = vld [vmem:[%s1 + $0x48] sm:$0xf]
  %v65 = vld [vmem:[%s1 + $0x4c] sm:$0xf]
  %v66 = vld [vmem:[%s1 + $0x50] sm:$0xf]
  %v67 = vld [vmem:[%s1 + $0x54] sm:$0xf]
  %v68 = vld [vmem:[%s1 + $0x58] sm:$0xf]
  %v69 = vld [vmem:[%s1 + $0x5c] sm:$0xf]
  %v70 = vld [vmem:[%s1 + $0x60] sm:$0xf]
  %v71 = vld [vmem:[%s1 + $0x64] sm:$0xf]
  %v72 = vld [vmem:[%s1 + $0x68] sm:$0xf]
  %v73 = vld [vmem:[%s1 + $0x6c] sm:$0xf]
  %v74 = vld [vmem:[%s1 + $0x70] sm:$0xf]
  %v75 = vld [vmem:[%s1 + $0x74] sm:$0xf]
  %v76 = vld [vmem:[%s1 + $0x78] sm:$0xf]
  %v77 = vld [vmem:[%s1 + $0x7c] sm:$0xf]
  %v78 = vld [vmem:[%s1 + $0x80] sm:$0xf]
  %v79 = vld [vmem:[%s1 + $0x84] sm:$0xf]
  %v80 = vld [vmem:[%s1 + $0x88] sm:$0xf]
  %v81 = vld [vmem:[%s1 + $0x8c] sm:$0xf]
  %v82 = vld [vmem:[%s1 + $0x90] sm:$0xf]
  %v83 = vld [vmem:[%s1 + $0x94] sm:$0xf]
  %v84 = vld [vmem:[%s1 + $0x98] sm:$0xf]
  %v85 = vld [vmem:[%s1 + $0x9c] sm:$0xf]
  %v86 = vld [vmem:[%s1 + $0xa0] sm:$0xf]
  %v87 = vld [vmem:[%s1 + $0xa4] sm:$0xf]
  %v88 = vld [vmem:[%s1 + $0xa8] sm:$0xf]
  %v89 = vld [vmem:[%s1 + $0xac] sm:$0xf]
  %v90 = vld [vmem:[%s1 + $0xb0] sm:$0xf]
  %v91 = vld [vmem:[%s1 + $0xb4] sm:$0xf]
  %v92 = vld [vmem:[%s1 + $0xb8] sm:$0xf]
  %v93 = vld [vmem:[%s1 + $0xbc] sm:$0xf]
  %v94 = vld [vmem:[%s1 + $0xc0] sm:$0xf]
  %v95 = vld [vmem:[%s1 + $0xc4] sm:$0xf]
  %v96 = vld [vmem:[%s1 + $0xc8] sm:$0xf]
  %v97 = vld [vmem:[%s1 + $0xcc] sm:$0xf]
  %v98 = vld [vmem:[%s1 + $0xd0] sm:$0xf]
  %v99 = vld [vmem:[%s1 + $0xd4] sm:$0xf]
  %v100 = vld [vmem:[%s1 + $0xd8] sm:$0xf]
  %v101 = vld [vmem:[%s1 + $0xdc] sm:$0xf]
  %v102 = vld [vmem:[%s1 + $0xe0] sm:$0xf]
  %v103 = vld [vmem:[%s1 + $0xe4] sm:$0xf]
  %v104 = vld [vmem:[%s1 + $0xe8] sm:$0xf]
  %v105 = vld [vmem:[%s1 + $0xec] sm:$0xf]
  %v106 = vld [vmem:[%s1 + $0xf0] sm:$0xf]
  %v107 = vld [vmem:[%s1 + $0xf4] sm:$0xf]
  %v108 = vld [vmem:[%s1 + $0xf8] sm:$0xf]
  %v109 = vld [vmem:[%s1 + $0xfc] sm:$0xf]
  %v142 = vunpack.c.l.b16 %v14
  %v143 = vunpack.c.h.b16 %v14
  %v144 = vunpack.c.l.b16 %v15
  %v145 = vunpack.c.h.b16 %v15
  %v146 = vunpack.c.l.b16 %v16
  %v147 = vunpack.c.h.b16 %v16
  %v148 = vunpack.c.l.b16 %v17
  %v149 = vunpack.c.h.b16 %v17
  %v150 = vunpack.c.l.b16 %v18
  %v151 = vunpack.c.h.b16 %v18
  %v152 = vunpack.c.l.b16 %v19
  %v153 = vunpack.c.h.b16 %v19
  %v154 = vunpack.c.l.b16 %v20
  %v155 = vunpack.c.h.b16 %v20
  %v156 = vunpack.c.l.b16 %v21
  %v157 = vunpack.c.h.b16 %v21
  %v158 = vunpack.c.l.b16 %v22
  %v159 = vunpack.c.h.b16 %v22
  %v160 = vunpack.c.l.b16 %v23
  %v161 = vunpack.c.h.b16 %v23
  %v162 = vunpack.c.l.b16 %v24
  %v163 = vunpack.c.h.b16 %v24
  %v164 = vunpack.c.l.b16 %v25
  %v165 = vunpack.c.h.b16 %v25
  %v166 = vunpack.c.l.b16 %v26
  %v167 = vunpack.c.h.b16 %v26
  %v168 = vunpack.c.l.b16 %v27
  %v169 = vunpack.c.h.b16 %v27
  %v170 = vunpack.c.l.b16 %v28
  %v171 = vunpack.c.h.b16 %v28
  %v172 = vunpack.c.l.b16 %v29
  %v173 = vunpack.c.h.b16 %v29
  %v174 = vunpack.c.l.b16 %v30
  %v175 = vunpack.c.h.b16 %v30
  %v176 = vunpack.c.l.b16 %v31
  %v177 = vunpack.c.h.b16 %v31
  %v178 = vunpack.c.l.b16 %v32
  %v179 = vunpack.c.h.b16 %v32
  %v180 = vunpack.c.l.b16 %v33
  %v181 = vunpack.c.h.b16 %v33
  %v182 = vunpack.c.l.b16 %v34
  %v183 = vunpack.c.h.b16 %v34
  %v184 = vunpack.c.l.b16 %v35
  %v185 = vunpack.c.h.b16 %v35
  %v186 = vunpack.c.l.b16 %v36
  %v187 = vunpack.c.h.b16 %v36
  %v188 = vunpack.c.l.b16 %v37
  %v189 = vunpack.c.h.b16 %v37
  %v190 = vunpack.c.l.b16 %v38
  %v191 = vunpack.c.h.b16 %v38
  %v192 = vunpack.c.l.b16 %v39
  %v193 = vunpack.c.h.b16 %v39
  %v194 = vunpack.c.l.b16 %v40
  %v195 = vunpack.c.h.b16 %v40
  %v196 = vunpack.c.l.b16 %v41
  %v197 = vunpack.c.h.b16 %v41
  %v198 = vunpack.c.l.b16 %v42
  %v199 = vunpack.c.h.b16 %v42
  %v200 = vunpack.c.l.b16 %v43
  %v201 = vunpack.c.h.b16 %v43
  %v202 = vunpack.c.l.b16 %v44
  %v203 = vunpack.c.h.b16 %v44
  %v204 = vunpack.c.l.b16 %v45
  %v205 = vunpack.c.h.b16 %v45
  %v206 = vpack.c.b16 %v146, %v142
  %v207 = vpack.c.b16 %v147, %v143
  %v208 = vpack.c.b16 %v148, %v144
  %v209 = vpack.c.b16 %v149, %v145
  %v210 = vpack.c.b16 %v154, %v150
  %v211 = vpack.c.b16 %v155, %v151
  %v212 = vpack.c.b16 %v156, %v152
  %v213 = vpack.c.b16 %v157, %v153
  %v214 = vpack.c.b16 %v162, %v158
  %v215 = vpack.c.b16 %v163, %v159
  %v216 = vpack.c.b16 %v164, %v160
  %v217 = vpack.c.b16 %v165, %v161
  %v218 = vpack.c.b16 %v170, %v166
  %v219 = vpack.c.b16 %v171, %v167
  %v220 = vpack.c.b16 %v172, %v168
  %v221 = vpack.c.b16 %v173, %v169
  %v222 = vpack.c.b16 %v178, %v174
  %v223 = vpack.c.b16 %v179, %v175
  %v224 = vpack.c.b16 %v180, %v176
  %v225 = vpack.c.b16 %v181, %v177
  %v226 = vpack.c.b16 %v186, %v182
  %v227 = vpack.c.b16 %v187, %v183
  %v228 = vpack.c.b16 %v188, %v184
  %v229 = vpack.c.b16 %v189, %v185
  %v230 = vpack.c.b16 %v194, %v190
  %v231 = vpack.c.b16 %v195, %v191
  %v232 = vpack.c.b16 %v196, %v192
  %v233 = vpack.c.b16 %v197, %v193
  %v234 = vpack.c.b16 %v202, %v198
  %v235 = vpack.c.b16 %v203, %v199
  %v236 = vpack.c.b16 %v204, %v200
  %v237 = vpack.c.b16 %v205, %v201
  %v334 = vunpack.c.l.b16 %v46
  %v335 = vunpack.c.l.b16 %v47
  %v336 = vunpack.c.l.b16 %v48
  %v337 = vunpack.c.l.b16 %v49
  %v338 = vunpack.c.l.b16 %v50
  %v339 = vunpack.c.l.b16 %v51
  %v340 = vunpack.c.l.b16 %v52
  %v341 = vunpack.c.l.b16 %v53
  %v342 = vunpack.c.l.b16 %v54
  %v343 = vunpack.c.l.b16 %v55
  %v344 = vunpack.c.l.b16 %v56
  %v345 = vunpack.c.l.b16 %v57
  %v346 = vunpack.c.l.b16 %v58
  %v347 = vunpack.c.l.b16 %v59
  %v348 = vunpack.c.l.b16 %v60
  %v349 = vunpack.c.l.b16 %v61
  %v350 = vunpack.c.l.b16 %v62
  %v351 = vunpack.c.l.b16 %v63
  %v352 = vunpack.c.l.b16 %v64
  %v353 = vunpack.c.l.b16 %v65
  %v354 = vunpack.c.l.b16 %v66
  %v355 = vunpack.c.l.b16 %v67
  %v356 = vunpack.c.l.b16 %v68
  %v357 = vunpack.c.l.b16 %v69
  %v358 = vunpack.c.l.b16 %v70
  %v359 = vunpack.c.l.b16 %v71
  %v360 = vunpack.c.l.b16 %v72
  %v361 = vunpack.c.l.b16 %v73
  %v362 = vunpack.c.l.b16 %v74
  %v363 = vunpack.c.l.b16 %v75
  %v364 = vunpack.c.l.b16 %v76
  %v365 = vunpack.c.l.b16 %v77
  %v366 = vunpack.c.l.b16 %v78
  %v367 = vunpack.c.l.b16 %v79
  %v368 = vunpack.c.l.b16 %v80
  %v369 = vunpack.c.l.b16 %v81
  %v370 = vunpack.c.l.b16 %v82
  %v371 = vunpack.c.l.b16 %v83
  %v372 = vunpack.c.l.b16 %v84
  %v373 = vunpack.c.l.b16 %v85
  %v374 = vunpack.c.l.b16 %v86
  %v375 = vunpack.c.l.b16 %v87
  %v376 = vunpack.c.l.b16 %v88
  %v377 = vunpack.c.l.b16 %v89
  %v378 = vunpack.c.l.b16 %v90
  %v379 = vunpack.c.l.b16 %v91
  %v380 = vunpack.c.l.b16 %v92
  %v381 = vunpack.c.l.b16 %v93
  %v382 = vunpack.c.l.b16 %v94
  %v383 = vunpack.c.l.b16 %v95
  %v384 = vunpack.c.l.b16 %v96
  %v385 = vunpack.c.l.b16 %v97
  %v386 = vunpack.c.l.b16 %v98
  %v387 = vunpack.c.l.b16 %v99
  %v388 = vunpack.c.l.b16 %v100
  %v389 = vunpack.c.l.b16 %v101
  %v390 = vunpack.c.l.b16 %v102
  %v391 = vunpack.c.l.b16 %v103
  %v392 = vunpack.c.l.b16 %v104
  %v393 = vunpack.c.l.b16 %v105
  %v394 = vunpack.c.l.b16 %v106
  %v395 = vunpack.c.l.b16 %v107
  %v396 = vunpack.c.l.b16 %v108
  %v397 = vunpack.c.l.b16 %v109
  %v398 = vpack.c.b16 %v335, %v334
  %v399 = vpack.c.b16 %v337, %v336
  %v400 = vpack.c.b16 %v339, %v338
  %v401 = vpack.c.b16 %v341, %v340
  %v402 = vpack.c.b16 %v343, %v342
  %v403 = vpack.c.b16 %v345, %v344
  %v404 = vpack.c.b16 %v347, %v346
  %v405 = vpack.c.b16 %v349, %v348
  %v406 = vpack.c.b16 %v351, %v350
  %v407 = vpack.c.b16 %v353, %v352
  %v408 = vpack.c.b16 %v355, %v354
  %v409 = vpack.c.b16 %v357, %v356
  %v410 = vpack.c.b16 %v359, %v358
  %v411 = vpack.c.b16 %v361, %v360
  %v412 = vpack.c.b16 %v363, %v362
  %v413 = vpack.c.b16 %v365, %v364
  %v414 = vpack.c.b16 %v367, %v366
  %v415 = vpack.c.b16 %v369, %v368
  %v416 = vpack.c.b16 %v371, %v370
  %v417 = vpack.c.b16 %v373, %v372
  %v418 = vpack.c.b16 %v375, %v374
  %v419 = vpack.c.b16 %v377, %v376
  %v420 = vpack.c.b16 %v379, %v378
  %v421 = vpack.c.b16 %v381, %v380
  %v422 = vpack.c.b16 %v383, %v382
  %v423 = vpack.c.b16 %v385, %v384
  %v424 = vpack.c.b16 %v387, %v386
  %v425 = vpack.c.b16 %v389, %v388
  %v426 = vpack.c.b16 %v391, %v390
  %v427 = vpack.c.b16 %v393, %v392
  %v428 = vpack.c.b16 %v395, %v394
  %v429 = vpack.c.b16 %v397, %v396
  %462 = vmatprep.subr.bf16.mxu0 0
  %463 = vmatpush1.bf16.msra.mxu0 %v398
  %464 = vmatprep.subr.bf16.mxu0 0
  %465 = vmatpush1.bf16.msra.mxu0 %v399
  %466 = vmatprep.subr.bf16.mxu0 0
  %467 = vmatpush1.bf16.msra.mxu0 %v400
  %468 = vmatprep.subr.bf16.mxu0 0
  %469 = vmatpush1.bf16.msra.mxu0 %v401
  %470 = vmatprep.subr.bf16.mxu0 0
  %471 = vmatpush1.bf16.msra.mxu0 %v402
  %472 = vmatprep.subr.bf16.mxu0 0
  %473 = vmatpush1.bf16.msra.mxu0 %v403
  %474 = vmatprep.subr.bf16.mxu0 0
  %475 = vmatpush1.bf16.msra.mxu0 %v404
  %476 = vmatprep.subr.bf16.mxu0 0
  %477 = vmatpush1.bf16.msra.mxu0 %v405
  %478 = vmatprep.subr.bf16.mxu0 0
  %479 = vmatpush1.bf16.msra.mxu0 %v406
  %480 = vmatprep.subr.bf16.mxu0 0
  %481 = vmatpush1.bf16.msra.mxu0 %v407
  %482 = vmatprep.subr.bf16.mxu0 0
  %483 = vmatpush1.bf16.msra.mxu0 %v408
  %484 = vmatprep.subr.bf16.mxu0 0
  %485 = vmatpush1.bf16.msra.mxu0 %v409
  %486 = vmatprep.subr.bf16.mxu0 0
  %487 = vmatpush1.bf16.msra.mxu0 %v410
  %488 = vmatprep.subr.bf16.mxu0 0
  %489 = vmatpush1.bf16.msra.mxu0 %v411
  %490 = vmatprep.subr.bf16.mxu0 0
  %491 = vmatpush1.bf16.msra.mxu0 %v412
  %492 = vmatprep.subr.bf16.mxu0 0
  %493 = vmatpush1.bf16.msra.mxu0 %v413
  %494 = vmatprep.mubr.bf16.mxu0 %v207
  %495 = vmatmul.mubr.bf16.gmra.mrb[0].mxu0 %v206
  %v496 = vpop.f32.mrb[0].mxu0
  %v497 = vadd.f32 0.0, %v496
  %v498 = vpop.f32.mrb[0].mxu0
  %v499 = vpop.f32.mrb[0].mxu0
  %v500 = vadd.f32 0.0, %v499
  %v501 = vpop.f32.mrb[0].mxu0
  %502 = vmatprep.mubr.bf16.mxu0 %v211
  %503 = vmatmul.mubr.bf16.gmra.mrb[0].mxu0 %v210
  %v504 = vpop.f32.mrb[0].mxu0
  %v505 = vadd.f32 0.0, %v504
  %v506 = vpop.f32.mrb[0].mxu0
  %v507 = vpop.f32.mrb[0].mxu0
  %v508 = vadd.f32 0.0, %v507
  %v509 = vpop.f32.mrb[0].mxu0
  %510 = vmatprep.mubr.bf16.mxu0 %v215
  %511 = vmatmul.mubr.bf16.gmra.mrb[0].mxu0 %v214
  %v512 = vpop.f32.mrb[0].mxu0
  %v513 = vadd.f32 0.0, %v512
  %v514 = vpop.f32.mrb[0].mxu0
  %v515 = vpop.f32.mrb[0].mxu0
  %v516 = vadd.f32 0.0, %v515
  %v517 = vpop.f32.mrb[0].mxu0
  %518 = vmatprep.mubr.bf16.mxu0 %v219
  %519 = vmatmul.mubr.bf16.gmra.mrb[0].mxu0 %v218
  %v520 = vpop.f32.mrb[0].mxu0
  %v521 = vadd.f32 0.0, %v520
  %v522 = vpop.f32.mrb[0].mxu0
  %v523 = vpop.f32.mrb[0].mxu0
  %v524 = vadd.f32 0.0, %v523
  %v525 = vpop.f32.mrb[0].mxu0
  %526 = vmatprep.mubr.bf16.mxu0 %v223
  %527 = vmatmul.mubr.bf16.gmra.mrb[0].mxu0 %v222
  %v528 = vpop.f32.mrb[0].mxu0
  %v529 = vadd.f32 0.0, %v528
  %v530 = vpop.f32.mrb[0].mxu0
  %v531 = vpop.f32.mrb[0].mxu0
  %v532 = vadd.f32 0.0, %v531
  %v533 = vpop.f32.mrb[0].mxu0
  %534 = vmatprep.mubr.bf16.mxu0 %v227
  %535 = vmatmul.mubr.bf16.gmra.mrb[0].mxu0 %v226
  %v536 = vpop.f32.mrb[0].mxu0
  %v537 = vadd.f32 0.0, %v536
  %v538 = vpop.f32.mrb[0].mxu0
  %v539 = vpop.f32.mrb[0].mxu0
  %v540 = vadd.f32 0.0, %v539
  %v541 = vpop.f32.mrb[0].mxu0
  %542 = vmatprep.mubr.bf16.mxu0 %v231
  %543 = vmatmul.mubr.bf16.gmra.mrb[0].mxu0 %v230
  %v544 = vpop.f32.mrb[0].mxu0
  %v545 = vadd.f32 0.0, %v544
  %v546 = vpop.f32.mrb[0].mxu0
  %v547 = vpop.f32.mrb[0].mxu0
  %v548 = vadd.f32 0.0, %v547
  %v549 = vpop.f32.mrb[0].mxu0
  %550 = vmatprep.mubr.bf16.mxu0 %v235
  %551 = vmatmul.mubr.bf16.gmra.mrb[0].mxu0 %v234
  %v552 = vpop.f32.mrb[0].mxu0
  %v553 = vadd.f32 0.0, %v552
  %v554 = vpop.f32.mrb[0].mxu0
  %v555 = vpop.f32.mrb[0].mxu0
  %v556 = vadd.f32 0.0, %v555
  %v557 = vpop.f32.mrb[0].mxu0
  %558 = vdwg.mxu0
  %559 = vmatprep.subr.bf16.mxu0 0
  %560 = vmatpush1.bf16.msra.mxu0 %v414
  %561 = vmatprep.subr.bf16.mxu0 0
  %562 = vmatpush1.bf16.msra.mxu0 %v415
  %563 = vmatprep.subr.bf16.mxu0 0
  %564 = vmatpush1.bf16.msra.mxu0 %v416
  %565 = vmatprep.subr.bf16.mxu0 0
  %566 = vmatpush1.bf16.msra.mxu0 %v417
  %567 = vmatprep.subr.bf16.mxu0 0
  %568 = vmatpush1.bf16.msra.mxu0 %v418
  %569 = vmatprep.subr.bf16.mxu0 0
  %570 = vmatpush1.bf16.msra.mxu0 %v419
  %571 = vmatprep.subr.bf16.mxu0 0
  %572 = vmatpush1.bf16.msra.mxu0 %v420
  %573 = vmatprep.subr.bf16.mxu0 0
  %574 = vmatpush1.bf16.msra.mxu0 %v421
  %575 = vmatprep.subr.bf16.mxu0 0
  %576 = vmatpush1.bf16.msra.mxu0 %v422
  %577 = vmatprep.subr.bf16.mxu0 0
  %578 = vmatpush1.bf16.msra.mxu0 %v423
  %579 = vmatprep.subr.bf16.mxu0 0
  %580 = vmatpush1.bf16.msra.mxu0 %v424
  %581 = vmatprep.subr.bf16.mxu0 0
  %582 = vmatpush1.bf16.msra.mxu0 %v425
  %583 = vmatprep.subr.bf16.mxu0 0
  %584 = vmatpush1.bf16.msra.mxu0 %v426
  %585 = vmatprep.subr.bf16.mxu0 0
  %586 = vmatpush1.bf16.msra.mxu0 %v427
  %587 = vmatprep.subr.bf16.mxu0 0
  %588 = vmatpush1.bf16.msra.mxu0 %v428
  %589 = vmatprep.subr.bf16.mxu0 0
  %590 = vmatpush1.bf16.msra.mxu0 %v429
  %591 = vmatprep.mubr.bf16.mxu0 %v209
  %592 = vmatmul.mubr.bf16.gmra.mrb[0].mxu0 %v208
  %v593 = vpop.f32.mrb[0].mxu0
  %v594 = vadd.f32 %v497, %v593
  %v595 = vpop.f32.mrb[0].mxu0
  %v596 = vpop.f32.mrb[0].mxu0
  %v597 = vadd.f32 %v500, %v596
  %v598 = vpop.f32.mrb[0].mxu0
  %599 = vmatprep.mubr.bf16.mxu0 %v213
  %600 = vmatmul.mubr.bf16.gmra.mrb[0].mxu0 %v212
  %v601 = vpop.f32.mrb[0].mxu0
  %v602 = vadd.f32 %v505, %v601
  %v603 = vpop.f32.mrb[0].mxu0
  %v604 = vpop.f32.mrb[0].mxu0
  %v605 = vadd.f32 %v508, %v604
  %v606 = vpop.f32.mrb[0].mxu0
  %607 = vmatprep.mubr.bf16.mxu0 %v217
  %608 = vmatmul.mubr.bf16.gmra.mrb[0].mxu0 %v216
  %v609 = vpop.f32.mrb[0].mxu0
  %v610 = vadd.f32 %v513, %v609
  %v611 = vpop.f32.mrb[0].mxu0
  %v612 = vpop.f32.mrb[0].mxu0
  %v613 = vadd.f32 %v516, %v612
  %v614 = vpop.f32.mrb[0].mxu0
  %615 = vmatprep.mubr.bf16.mxu0 %v221
  %616 = vmatmul.mubr.bf16.gmra.mrb[0].mxu0 %v220
  %v617 = vpop.f32.mrb[0].mxu0
  %v618 = vadd.f32 %v521, %v617
  %v619 = vpop.f32.mrb[0].mxu0
  %v620 = vpop.f32.mrb[0].mxu0
  %v621 = vadd.f32 %v524, %v620
  %v622 = vpop.f32.mrb[0].mxu0
  %623 = vmatprep.mubr.bf16.mxu0 %v225
  %624 = vmatmul.mubr.bf16.gmra.mrb[0].mxu0 %v224
  %v625 = vpop.f32.mrb[0].mxu0
  %v626 = vadd.f32 %v529, %v625
  %v627 = vpop.f32.mrb[0].mxu0
  %v628 = vpop.f32.mrb[0].mxu0
  %v629 = vadd.f32 %v532, %v628
  %v630 = vpop.f32.mrb[0].mxu0
  %631 = vmatprep.mubr.bf16.mxu0 %v229
  %632 = vmatmul.mubr.bf16.gmra.mrb[0].mxu0 %v228
  %v633 = vpop.f32.mrb[0].mxu0
  %v634 = vadd.f32 %v537, %v633
  %v635 = vpop.f32.mrb[0].mxu0
  %v636 = vpop.f32.mrb[0].mxu0
  %v637 = vadd.f32 %v540, %v636
  %v638 = vpop.f32.mrb[0].mxu0
  %639 = vmatprep.mubr.bf16.mxu0 %v233
  %640 = vmatmul.mubr.bf16.gmra.mrb[0].mxu0 %v232
  %v641 = vpop.f32.mrb[0].mxu0
  %v642 = vadd.f32 %v545, %v641
  %v643 = vpop.f32.mrb[0].mxu0
  %v644 = vpop.f32.mrb[0].mxu0
  %v645 = vadd.f32 %v548, %v644
  %v646 = vpop.f32.mrb[0].mxu0
  %647 = vmatprep.mubr.bf16.mxu0 %v237
  %648 = vmatmul.mubr.bf16.gmra.mrb[0].mxu0 %v236
  %v649 = vpop.f32.mrb[0].mxu0
  %v650 = vadd.f32 %v553, %v649
  %v651 = vpop.f32.mrb[0].mxu0
  %v652 = vpop.f32.mrb[0].mxu0
  %v653 = vadd.f32 %v556, %v652
  %v654 = vpop.f32.mrb[0].mxu0
  %655 = vdwg.mxu0
  %vm656 = vcmask 523264
  %657 = vst.msk [vmem:[%s2] sm:$0xff] %vm656, %v594
  %658 = vst.msk [vmem:[%s2 + $0x8] sm:$0xff] %vm656, %v597
  %659 = vst.msk [vmem:[%s2 + $0x10] sm:$0xff] %vm656, %v602
  %660 = vst.msk [vmem:[%s2 + $0x18] sm:$0xff] %vm656, %v605
  %661 = vst.msk [vmem:[%s2 + $0x20] sm:$0xff] %vm656, %v610
  %662 = vst.msk [vmem:[%s2 + $0x28] sm:$0xff] %vm656, %v613
  %663 = vst.msk [vmem:[%s2 + $0x30] sm:$0xff] %vm656, %v618
  %664 = vst.msk [vmem:[%s2 + $0x38] sm:$0xff] %vm656, %v621
  %665 = vst.msk [vmem:[%s2 + $0x40] sm:$0xff] %vm656, %v626
  %666 = vst.msk [vmem:[%s2 + $0x48] sm:$0xff] %vm656, %v629
  %667 = vst.msk [vmem:[%s2 + $0x50] sm:$0xff] %vm656, %v634
  %668 = vst.msk [vmem:[%s2 + $0x58] sm:$0xff] %vm656, %v637
  %669 = vst.msk [vmem:[%s2 + $0x60] sm:$0xff] %vm656, %v642
  %670 = vst.msk [vmem:[%s2 + $0x68] sm:$0xff] %vm656, %v645
  %671 = vst.msk [vmem:[%s2 + $0x70] sm:$0xff] %vm656, %v650
  %672 = vst.msk [vmem:[%s2 + $0x78] sm:$0xff] %vm656, %v653
  %v673 = vsel %vm656, %v594, 0.0
  %v674 = vsel %vm656, %v597, 0.0
  %v675 = vadd.f32 %v673, %v674
  %v676 = vsel %vm656, %v602, 0.0
  %v677 = vadd.f32 %v675, %v676
  %v678 = vsel %vm656, %v605, 0.0
  %v679 = vadd.f32 %v677, %v678
  %v680 = vsel %vm656, %v610, 0.0
  %v681 = vadd.f32 %v679, %v680
  %v682 = vsel %vm656, %v613, 0.0
  %v683 = vadd.f32 %v681, %v682
  %v684 = vsel %vm656, %v618, 0.0
  %v685 = vadd.f32 %v683, %v684
  %v686 = vsel %vm656, %v621, 0.0
  %v687 = vadd.f32 %v685, %v686
  %v688 = vsel %vm656, %v626, 0.0
  %v689 = vadd.f32 %v687, %v688
  %v690 = vsel %vm656, %v629, 0.0
  %v691 = vadd.f32 %v689, %v690
  %v692 = vsel %vm656, %v634, 0.0
  %v693 = vadd.f32 %v691, %v692
  %v694 = vsel %vm656, %v637, 0.0
  %v695 = vadd.f32 %v693, %v694
  %v696 = vsel %vm656, %v642, 0.0
  %v697 = vadd.f32 %v695, %v696
  %v698 = vsel %vm656, %v645, 0.0
  %v699 = vadd.f32 %v697, %v698
  %v700 = vsel %vm656, %v650, 0.0
  %v701 = vadd.f32 %v699, %v700
  %v702 = vsel %vm656, %v653, 0.0
  %v703 = vadd.f32 %v701, %v702
  %v704 = vrot.slane %v703, 4
  %v705 = vadd.f32 %v703, %v704
  %v706 = vrot.slane %v705, 2
  %v707 = vadd.f32 %v705, %v706
  %v708 = vrot.slane %v707, 1
  %v709 = vadd.f32 %v707, %v708
  %v710 = vmul.f32 %v594, %v594
  %v711 = vmul.f32 %v597, %v597
  %v712 = vmul.f32 %v602, %v602
  %v713 = vmul.f32 %v605, %v605
  %v714 = vmul.f32 %v610, %v610
  %v715 = vmul.f32 %v613, %v613
  %v716 = vmul.f32 %v618, %v618
  %v717 = vmul.f32 %v621, %v621
  %v718 = vmul.f32 %v626, %v626
  %v719 = vmul.f32 %v629, %v629
  %v720 = vmul.f32 %v634, %v634
  %v721 = vmul.f32 %v637, %v637
  %v722 = vmul.f32 %v642, %v642
  %v723 = vmul.f32 %v645, %v645
  %v724 = vmul.f32 %v650, %v650
  %v725 = vmul.f32 %v653, %v653
  %v726 = vsel %vm656, %v710, 0.0
  %v727 = vsel %vm656, %v711, 0.0
  %v728 = vadd.f32 %v726, %v727
  %v729 = vsel %vm656, %v712, 0.0
  %v730 = vadd.f32 %v728, %v729
  %v731 = vsel %vm656, %v713, 0.0
  %v732 = vadd.f32 %v730, %v731
  %v733 = vsel %vm656, %v714, 0.0
  %v734 = vadd.f32 %v732, %v733
  %v735 = vsel %vm656, %v715, 0.0
  %v736 = vadd.f32 %v734, %v735
  %v737 = vsel %vm656, %v716, 0.0
  %v738 = vadd.f32 %v736, %v737
  %v739 = vsel %vm656, %v717, 0.0
  %v740 = vadd.f32 %v738, %v739
  %v741 = vsel %vm656, %v718, 0.0
  %v742 = vadd.f32 %v740, %v741
  %v743 = vsel %vm656, %v719, 0.0
  %v744 = vadd.f32 %v742, %v743
  %v745 = vsel %vm656, %v720, 0.0
  %v746 = vadd.f32 %v744, %v745
  %v747 = vsel %vm656, %v721, 0.0
  %v748 = vadd.f32 %v746, %v747
  %v749 = vsel %vm656, %v722, 0.0
  %v750 = vadd.f32 %v748, %v749
  %v751 = vsel %vm656, %v723, 0.0
  %v752 = vadd.f32 %v750, %v751
  %v753 = vsel %vm656, %v724, 0.0
  %v754 = vadd.f32 %v752, %v753
  %v755 = vsel %vm656, %v725, 0.0
  %v756 = vadd.f32 %v754, %v755
  %v757 = vrot.slane %v756, 4
  %v758 = vadd.f32 %v756, %v757
  %v759 = vrot.slane %v758, 2
  %v760 = vadd.f32 %v758, %v759
  %v761 = vrot.slane %v760, 1
  %v762 = vadd.f32 %v760, %v761
  %vm763 = vcmask 1040384
  %v764 = vsel %vm763, %v709, %v762
  %vm765 = vcmask 517120
  %766 = vst.msk [vmem:[%s3] sm:$0x3] %vm765, %v764
  // Predicated region
  $region10: #{discriminator_forward.7} parent=0 // pred_check
    _
  $region11: #{discriminator_forward.7} parent=0 // pred_check_branch
    %768 = sbr.rel (0) target = $region13
  $region12: #{discriminator_forward.7} parent=0 // pred_region
    _
  $region13: #{discriminator_forward.7} parent=0 // pred_fallthru
    _
  // Predicated region
  $region14: #{discriminator_forward.7} parent=0 // pred_check
    _
  $region15: #{discriminator_forward.7} parent=0 // pred_check_branch
    %770 = sbr.rel (0) target = $region17
  $region16: #{discriminator_forward.7} parent=0 // pred_region
    _
  $region17: #{discriminator_forward.7} parent=0 // pred_fallthru
    _
  // Predicated region
  $region18: #{discriminator_forward.7} parent=0 // pred_check
    _
  $region19: #{discriminator_forward.7} parent=0 // pred_check_branch
    %772 = sbr.rel (0) target = $region21
  $region20: #{discriminator_forward.7} parent=0 // pred_region
    _
  $region21: #{discriminator_forward.7} parent=0 // pred_fallthru
    _
  // Predicated region
  $region22: #{discriminator_forward.7} parent=0 // pred_check
    _
  $region23: #{discriminator_forward.7} parent=0 // pred_check_branch
    %774 = sbr.rel (0) target = $region25
  $region24: #{discriminator_forward.7} parent=0 // pred_region
    _
  $region25: #{discriminator_forward.7} parent=0 // pred_fallthru
    _

// kernel: discriminator_forward.10
$region0: #{discriminator_forward.10}
  #allocation0 [shape = 'u32[]', space=smem, size = 0x4, offset = 0x4, fixed_abs, tag = 'smem constant byte address 0x4 - core index']
  #allocation1 [shape = 'u32[144,128]{1,0:T(1,128)}', space=vmem, size = 0x12000, scoped, tag = 'internal scratch']
  %s0 = inlined_call_operand.vmem [shape: f32[32,128], index: 0, kind: input, shape index: {}]
  %s1 = inlined_call_operand.vmem [shape: f32[1,128], index: 1, kind: input, shape index: {}]
  %s2 = inlined_call_operand.vmem [shape: f32[1,128], index: 2, kind: input, shape index: {}]
  %s3 = inlined_call_operand.vmem [shape: f32[32,128], index: 3, kind: output, shape index: {}]
  %s4 = sld [smem:[#allocation0]]
  $region22: #{discriminator_forward.10} parent=0
    _
  %s6 = ssub.s32 1, %s4
  %s7 = scalar_select 0, %s6, %s4
  // Predicated region
  $region2: #{discriminator_forward.10} parent=0 // pred_check
    _
  $region3: #{discriminator_forward.10} parent=0 // pred_check_branch
    %9 = sbr.rel (0) target = $region5
  $region4: #{discriminator_forward.10} parent=0 // pred_region
    _
  $region5: #{discriminator_forward.10} parent=0 // pred_fallthru
    _
  // Predicated region
  $region6: #{discriminator_forward.10} parent=0 // pred_check
    _
  $region7: #{discriminator_forward.10} parent=0 // pred_check_branch
    %11 = sbr.rel (0) target = $region9
  $region8: #{discriminator_forward.10} parent=0 // pred_region
    _
  $region9: #{discriminator_forward.10} parent=0 // pred_fallthru
    _
  // Predicated region
  $region10: #{discriminator_forward.10} parent=0 // pred_check
    _
  $region11: #{discriminator_forward.10} parent=0 // pred_check_branch
    %13 = sbr.rel (0) target = $region13
  $region12: #{discriminator_forward.10} parent=0 // pred_region
    _
  $region13: #{discriminator_forward.10} parent=0 // pred_fallthru
    _
  %v14 = vld [vmem:[%s0] sm:$0xff]
  %v15 = vld [vmem:[%s0 + $0x8] sm:$0xff]
  %v16 = vld [vmem:[%s0 + $0x10] sm:$0xff]
  %v17 = vld [vmem:[%s0 + $0x18] sm:$0xff]
  %v18 = vld [vmem:[%s1] sm:$0x1]
  %v20 = vlaneseq
  %v21 = vshrl.u32 %v20, 7
  %v22 = vsub.s32 0, %v21
  %v23 = vrot.slane %v18, %v22
  %v25 = vmul.f32 %v14, %v23
  %v26 = vmul.f32 %v15, %v23
  %v27 = vmul.f32 %v16, %v23
  %v28 = vmul.f32 %v17, %v23
  %v29 = vld [vmem:[%s2] sm:$0x1]
  %v31 = vlaneseq
  %v32 = vshrl.u32 %v31, 7
  %v33 = vsub.s32 0, %v32
  %v34 = vrot.slane %v29, %v33
  %v36 = vadd.f32 %v25, %v34
  %v37 = vadd.f32 %v26, %v34
  %v38 = vadd.f32 %v27, %v34
  %v39 = vadd.f32 %v28, %v34
  %vm40 = vcmp.ge.f32.partialorder %v36, 0.0
  %vm41 = vcmp.ge.f32.partialorder %v37, 0.0
  %vm42 = vcmp.ge.f32.partialorder %v38, 0.0
  %vm43 = vcmp.ge.f32.partialorder %v39, 0.0
  %v44 = vmul.f32 %v36, 0.2
  %v45 = vmul.f32 %v37, 0.2
  %v46 = vmul.f32 %v38, 0.2
  %v47 = vmul.f32 %v39, 0.2
  %v48 = vsel %vm40, %v36, %v44
  %v49 = vsel %vm41, %v37, %v45
  %v50 = vsel %vm42, %v38, %v46
  %v51 = vsel %vm43, %v39, %v47
  %52 = vst [vmem:[%s3] sm:$0xff] %v48
  %53 = vst [vmem:[%s3 + $0x8] sm:$0xff] %v49
  %54 = vst [vmem:[%s3 + $0x10] sm:$0xff] %v50
  %55 = vst [vmem:[%s3 + $0x18] sm:$0xff] %v51
  // Predicated region
  $region14: #{discriminator_forward.10} parent=0 // pred_check
    _
  $region15: #{discriminator_forward.10} parent=0 // pred_check_branch
    %57 = sbr.rel (0) target = $region17
  $region16: #{discriminator_forward.10} parent=0 // pred_region
    _
  $region17: #{discriminator_forward.10} parent=0 // pred_fallthru
    _
  // Predicated region
  $region18: #{discriminator_forward.10} parent=0 // pred_check
    _
  $region19: #{discriminator_forward.10} parent=0 // pred_check_branch
    %59 = sbr.rel (0) target = $region21
  $region20: #{discriminator_forward.10} parent=0 // pred_region
    _
  $region21: #{discriminator_forward.10} parent=0 // pred_fallthru
    _

// kernel: discriminator_forward.9
$region0: #{discriminator_forward.9}
  #allocation0 [shape = 'u32[]', space=smem, size = 0x4, offset = 0x4, fixed_abs, tag = 'smem constant byte address 0x4 - core index']
  #allocation1 [shape = 'u32[144,128]{1,0:T(1,128)}', space=vmem, size = 0x12000, scoped, tag = 'internal scratch']
  %s0 = inlined_call_operand.vmem [shape: bf16[32,576], index: 0, kind: input, shape index: {}]
  %s1 = inlined_call_operand.vmem [shape: bf16[576,128], index: 1, kind: input, shape index: {}]
  %s2 = inlined_call_operand.vmem [shape: f32[32,128], index: 2, kind: output, shape index: {0}]
  %s3 = inlined_call_operand.vmem [shape: f32[1,2,128], index: 3, kind: output, shape index: {1}]
  %4 = xla_tuple %s2, %s3
  %s5 = sld [smem:[#allocation0]]
  $region26: #{discriminator_forward.9} parent=0
    _
  %s7 = ssub.s32 1, %s5
  %s8 = scalar_select 0, %s7, %s5
  // Predicated region
  $region2: #{discriminator_forward.9} parent=0 // pred_check
    _
  $region3: #{discriminator_forward.9} parent=0 // pred_check_branch
    %10 = sbr.rel (0) target = $region5
  $region4: #{discriminator_forward.9} parent=0 // pred_region
    _
  $region5: #{discriminator_forward.9} parent=0 // pred_fallthru
    _
  // Predicated region
  $region6: #{discriminator_forward.9} parent=0 // pred_check
    _
  $region7: #{discriminator_forward.9} parent=0 // pred_check_branch
    %12 = sbr.rel (0) target = $region9
  $region8: #{discriminator_forward.9} parent=0 // pred_region
    _
  $region9: #{discriminator_forward.9} parent=0 // pred_fallthru
    _
  %v14 = vld [vmem:[%s0] sm:$0xff]
  %v15 = vld [vmem:[%s0 + $0x8] sm:$0xff]
  %v16 = vld [vmem:[%s0 + $0x10] sm:$0xf]
  %v17 = vld [vmem:[%s0 + $0x14] sm:$0xff]
  %v18 = vld [vmem:[%s0 + $0x1c] sm:$0xff]
  %v19 = vld [vmem:[%s0 + $0x24] sm:$0xf]
  %v20 = vld [vmem:[%s0 + $0x28] sm:$0xff]
  %v21 = vld [vmem:[%s0 + $0x30] sm:$0xff]
  %v22 = vld [vmem:[%s0 + $0x38] sm:$0xf]
  %v23 = vld [vmem:[%s0 + $0x3c] sm:$0xff]
  %v24 = vld [vmem:[%s0 + $0x44] sm:$0xff]
  %v25 = vld [vmem:[%s0 + $0x4c] sm:$0xf]
  %v26 = vld [vmem:[%s1] sm:$0xf]
  %v27 = vld [vmem:[%s1 + $0x4] sm:$0xf]
  %v28 = vld [vmem:[%s1 + $0x8] sm:$0xf]
  %v29 = vld [vmem:[%s1 + $0xc] sm:$0xf]
  %v30 = vld [vmem:[%s1 + $0x10] sm:$0xf]
  %v31 = vld [vmem:[%s1 + $0x14] sm:$0xf]
  %v32 = vld [vmem:[%s1 + $0x18] sm:$0xf]
  %v33 = vld [vmem:[%s1 + $0x1c] sm:$0xf]
  %v34 = vld [vmem:[%s1 + $0x20] sm:$0xf]
  %v35 = vld [vmem:[%s1 + $0x24] sm:$0xf]
  %v36 = vld [vmem:[%s1 + $0x28] sm:$0xf]
  %v37 = vld [vmem:[%s1 + $0x2c] sm:$0xf]
  %v38 = vld [vmem:[%s1 + $0x30] sm:$0xf]
  %v39 = vld [vmem:[%s1 + $0x34] sm:$0xf]
  %v40 = vld [vmem:[%s1 + $0x38] sm:$0xf]
  %v41 = vld [vmem:[%s1 + $0x3c] sm:$0xf]
  %v42 = vld [vmem:[%s1 + $0x40] sm:$0xf]
  %v43 = vld [vmem:[%s1 + $0x44] sm:$0xf]
  %v44 = vld [vmem:[%s1 + $0x48] sm:$0xf]
  %v45 = vld [vmem:[%s1 + $0x4c] sm:$0xf]
  %v46 = vld [vmem:[%s1 + $0x50] sm:$0xf]
  %v47 = vld [vmem:[%s1 + $0x54] sm:$0xf]
  %v48 = vld [vmem:[%s1 + $0x58] sm:$0xf]
  %v49 = vld [vmem:[%s1 + $0x5c] sm:$0xf]
  %v50 = vld [vmem:[%s1 + $0x60] sm:$0xf]
  %v51 = vld [vmem:[%s1 + $0x64] sm:$0xf]
  %v52 = vld [vmem:[%s1 + $0x68] sm:$0xf]
  %v53 = vld [vmem:[%s1 + $0x6c] sm:$0xf]
  %v54 = vld [vmem:[%s1 + $0x70] sm:$0xf]
  %v55 = vld [vmem:[%s1 + $0x74] sm:$0xf]
  %v56 = vld [vmem:[%s1 + $0x78] sm:$0xf]
  %v57 = vld [vmem:[%s1 + $0x7c] sm:$0xf]
  %v58 = vld [vmem:[%s1 + $0x80] sm:$0xf]
  %v59 = vld [vmem:[%s1 + $0x84] sm:$0xf]
  %v60 = vld [vmem:[%s1 + $0x88] sm:$0xf]
  %v61 = vld [vmem:[%s1 + $0x8c] sm:$0xf]
  %v62 = vld [vmem:[%s1 + $0x90] sm:$0xf]
  %v63 = vld [vmem:[%s1 + $0x94] sm:$0xf]
  %v64 = vld [vmem:[%s1 + $0x98] sm:$0xf]
  %v65 = vld [vmem:[%s1 + $0x9c] sm:$0xf]
  %v66 = vld [vmem:[%s1 + $0xa0] sm:$0xf]
  %v67 = vld [vmem:[%s1 + $0xa4] sm:$0xf]
  %v68 = vld [vmem:[%s1 + $0xa8] sm:$0xf]
  %v69 = vld [vmem:[%s1 + $0xac] sm:$0xf]
  %v70 = vld [vmem:[%s1 + $0xb0] sm:$0xf]
  %v71 = vld [vmem:[%s1 + $0xb4] sm:$0xf]
  %v72 = vld [vmem:[%s1 + $0xb8] sm:$0xf]
  %v73 = vld [vmem:[%s1 + $0xbc] sm:$0xf]
  %v74 = vld [vmem:[%s1 + $0xc0] sm:$0xf]
  %v75 = vld [vmem:[%s1 + $0xc4] sm:$0xf]
  %v76 = vld [vmem:[%s1 + $0xc8] sm:$0xf]
  %v77 = vld [vmem:[%s1 + $0xcc] sm:$0xf]
  %v78 = vld [vmem:[%s1 + $0xd0] sm:$0xf]
  %v79 = vld [vmem:[%s1 + $0xd4] sm:$0xf]
  %v80 = vld [vmem:[%s1 + $0xd8] sm:$0xf]
  %v81 = vld [vmem:[%s1 + $0xdc] sm:$0xf]
  %v82 = vld [vmem:[%s1 + $0xe0] sm:$0xf]
  %v83 = vld [vmem:[%s1 + $0xe4] sm:$0xf]
  %v84 = vld [vmem:[%s1 + $0xe8] sm:$0xf]
  %v85 = vld [vmem:[%s1 + $0xec] sm:$0xf]
  %v86 = vld [vmem:[%s1 + $0xf0] sm:$0xf]
  %v87 = vld [vmem:[%s1 + $0xf4] sm:$0xf]
  %v88 = vld [vmem:[%s1 + $0xf8] sm:$0xf]
  %v89 = vld [vmem:[%s1 + $0xfc] sm:$0xf]
  %v90 = vld [vmem:[%s1 + $0x100] sm:$0xf]
  %v91 = vld [vmem:[%s1 + $0x104] sm:$0xf]
  %v92 = vld [vmem:[%s1 + $0x108] sm:$0xf]
  %v93 = vld [vmem:[%s1 + $0x10c] sm:$0xf]
  %v94 = vld [vmem:[%s1 + $0x110] sm:$0xf]
  %v95 = vld [vmem:[%s1 + $0x114] sm:$0xf]
  %v96 = vld [vmem:[%s1 + $0x118] sm:$0xf]
  %v97 = vld [vmem:[%s1 + $0x11c] sm:$0xf]
  %v110 = vunpack.c.l.b16 %v14
  %v111 = vunpack.c.h.b16 %v14
  %v112 = vunpack.c.l.b16 %v15
  %v113 = vunpack.c.h.b16 %v15
  %v114 = vunpack.c.l.b16 %v16
  %v115 = vunpack.c.l.b16 %v17
  %v116 = vunpack.c.h.b16 %v17
  %v117 = vunpack.c.l.b16 %v18
  %v118 = vunpack.c.h.b16 %v18
  %v119 = vunpack.c.l.b16 %v19
  %v120 = vunpack.c.l.b16 %v20
  %v121 = vunpack.c.h.b16 %v20
  %v122 = vunpack.c.l.b16 %v21
  %v123 = vunpack.c.h.b16 %v21
  %v124 = vunpack.c.l.b16 %v22
  %v125 = vunpack.c.l.b16 %v23
  %v126 = vunpack.c.h.b16 %v23
  %v127 = vunpack.c.l.b16 %v24
  %v128 = vunpack.c.h.b16 %v24
  %v129 = vunpack.c.l.b16 %v25
  %v130 = vpack.c.b16 %v115, %v110
  %v131 = vpack.c.b16 %v116, %v111
  %v132 = vpack.c.b16 %v117, %v112
  %v133 = vpack.c.b16 %v118, %v113
  %v134 = vpack.c.b16 %v119, %v114
  %v135 = vpack.c.b16 %v125, %v120
  %v136 = vpack.c.b16 %v126, %v121
  %v137 = vpack.c.b16 %v127, %v122
  %v138 = vpack.c.b16 %v128, %v123
  %v139 = vpack.c.b16 %v129, %v124
  %v220 = vunpack.c.l.b16 %v26
  %v221 = vunpack.c.l.b16 %v27
  %v222 = vunpack.c.l.b16 %v28
  %v223 = vunpack.c.l.b16 %v29
  %v224 = vunpack.c.l.b16 %v30
  %v225 = vunpack.c.l.b16 %v31
  %v226 = vunpack.c.l.b16 %v32
  %v227 = vunpack.c.l.b16 %v33
  %v228 = vunpack.c.l.b16 %v34
  %v229 = vunpack.c.l.b16 %v35
  %v230 = vunpack.c.l.b16 %v36
  %v231 = vunpack.c.l.b16 %v37
  %v232 = vunpack.c.l.b16 %v38
  %v233 = vunpack.c.l.b16 %v39
  %v234 = vunpack.c.l.b16 %v40
  %v235 = vunpack.c.l.b16 %v41
  %v236 = vunpack.c.l.b16 %v42
  %v237 = vunpack.c.l.b16 %v43
  %v238 = vunpack.c.l.b16 %v44
  %v239 = vunpack.c.l.b16 %v45
  %v240 = vunpack.c.l.b16 %v46
  %v241 = vunpack.c.l.b16 %v47
  %v242 = vunpack.c.l.b16 %v48
  %v243 = vunpack.c.l.b16 %v49
  %v244 = vunpack.c.l.b16 %v50
  %v245 = vunpack.c.l.b16 %v51
  %v246 = vunpack.c.l.b16 %v52
  %v247 = vunpack.c.l.b16 %v53
  %v248 = vunpack.c.l.b16 %v54
  %v249 = vunpack.c.l.b16 %v55
  %v250 = vunpack.c.l.b16 %v56
  %v251 = vunpack.c.l.b16 %v57
  %v252 = vunpack.c.l.b16 %v58
  %v253 = vunpack.c.l.b16 %v59
  %v254 = vunpack.c.l.b16 %v60
  %v255 = vunpack.c.l.b16 %v61
  %v256 = vunpack.c.l.b16 %v62
  %v257 = vunpack.c.l.b16 %v63
  %v258 = vunpack.c.l.b16 %v64
  %v259 = vunpack.c.l.b16 %v65
  %v260 = vunpack.c.l.b16 %v66
  %v261 = vunpack.c.l.b16 %v67
  %v262 = vunpack.c.l.b16 %v68
  %v263 = vunpack.c.l.b16 %v69
  %v264 = vunpack.c.l.b16 %v70
  %v265 = vunpack.c.l.b16 %v71
  %v266 = vunpack.c.l.b16 %v72
  %v267 = vunpack.c.l.b16 %v73
  %v268 = vunpack.c.l.b16 %v74
  %v269 = vunpack.c.l.b16 %v75
  %v270 = vunpack.c.l.b16 %v76
  %v271 = vunpack.c.l.b16 %v77
  %v272 = vunpack.c.l.b16 %v78
  %v273 = vunpack.c.l.b16 %v79
  %v274 = vunpack.c.l.b16 %v80
  %v275 = vunpack.c.l.b16 %v81
  %v276 = vunpack.c.l.b16 %v82
  %v277 = vunpack.c.l.b16 %v83
  %v278 = vunpack.c.l.b16 %v84
  %v279 = vunpack.c.l.b16 %v85
  %v280 = vunpack.c.l.b16 %v86
  %v281 = vunpack.c.l.b16 %v87
  %v282 = vunpack.c.l.b16 %v88
  %v283 = vunpack.c.l.b16 %v89
  %v284 = vunpack.c.l.b16 %v90
  %v285 = vunpack.c.l.b16 %v91
  %v286 = vunpack.c.l.b16 %v92
  %v287 = vunpack.c.l.b16 %v93
  %v288 = vunpack.c.l.b16 %v94
  %v289 = vunpack.c.l.b16 %v95
  %v290 = vunpack.c.l.b16 %v96
  %v291 = vunpack.c.l.b16 %v97
  %v292 = vpack.c.b16 %v221, %v220
  %v293 = vpack.c.b16 %v223, %v222
  %v294 = vpack.c.b16 %v225, %v224
  %v295 = vpack.c.b16 %v227, %v226
  %v296 = vpack.c.b16 %v229, %v228
  %v297 = vpack.c.b16 %v231, %v230
  %v298 = vpack.c.b16 %v233, %v232
  %v299 = vpack.c.b16 %v235, %v234
  %v300 = vpack.c.b16 %v237, %v236
  %v301 = vpack.c.b16 %v239, %v238
  %v302 = vpack.c.b16 %v241, %v240
  %v303 = vpack.c.b16 %v243, %v242
  %v304 = vpack.c.b16 %v245, %v244
  %v305 = vpack.c.b16 %v247, %v246
  %v306 = vpack.c.b16 %v249, %v248
  %v307 = vpack.c.b16 %v251, %v250
  %v308 = vpack.c.b16 %v253, %v252
  %v309 = vpack.c.b16 %v255, %v254
  %v310 = vpack.c.b16 %v257, %v256
  %v311 = vpack.c.b16 %v259, %v258
  %v312 = vpack.c.b16 %v261, %v260
  %v313 = vpack.c.b16 %v263, %v262
  %v314 = vpack.c.b16 %v265, %v264
  %v315 = vpack.c.b16 %v267, %v266
  %v316 = vpack.c.b16 %v269, %v268
  %v317 = vpack.c.b16 %v271, %v270
  %v318 = vpack.c.b16 %v273, %v272
  %v319 = vpack.c.b16 %v275, %v274
  %v320 = vpack.c.b16 %v277, %v276
  %v321 = vpack.c.b16 %v279, %v278
  %v322 = vpack.c.b16 %v281, %v280
  %v323 = vpack.c.b16 %v283, %v282
  %v324 = vpack.c.b16 %v285, %v284
  %v325 = vpack.c.b16 %v287, %v286
  %v326 = vpack.c.b16 %v289, %v288
  %v327 = vpack.c.b16 %v291, %v290
  %vm364 = vcmask 523264
  %v366 = vsel %vm364, %v134, 0
  %v369 = vsel %vm364, %v139, 0
  %371 = vmatprep.subr.bf16.mxu0 0
  %372 = vmatpush1.bf16.msra.mxu0 %v292
  %373 = vmatprep.subr.bf16.mxu0 0
  %374 = vmatpush1.bf16.msra.mxu0 %v293
  %375 = vmatprep.subr.bf16.mxu0 0
  %376 = vmatpush1.bf16.msra.mxu0 %v294
  %377 = vmatprep.subr.bf16.mxu0 0
  %378 = vmatpush1.bf16.msra.mxu0 %v295
  %379 = vmatprep.subr.bf16.mxu0 0
  %380 = vmatpush1.bf16.msra.mxu0 %v296
  %381 = vmatprep.subr.bf16.mxu0 0
  %382 = vmatpush1.bf16.msra.mxu0 %v297
  %383 = vmatprep.subr.bf16.mxu0 0
  %384 = vmatpush1.bf16.msra.mxu0 %v298
  %385 = vmatprep.subr.bf16.mxu0 0
  %386 = vmatpush1.bf16.msra.mxu0 %v299
  %387 = vmatprep.subr.bf16.mxu0 0
  %388 = vmatpush1.bf16.msra.mxu0 %v300
  %389 = vmatprep.subr.bf16.mxu0 0
  %390 = vmatpush1.bf16.msra.mxu0 %v301
  %391 = vmatprep.subr.bf16.mxu0 0
  %392 = vmatpush1.bf16.msra.mxu0 %v302
  %393 = vmatprep.subr.bf16.mxu0 0
  %394 = vmatpush1.bf16.msra.mxu0 %v303
  %395 = vmatprep.subr.bf16.mxu0 0
  %396 = vmatpush1.bf16.msra.mxu0 %v304
  %397 = vmatprep.subr.bf16.mxu0 0
  %398 = vmatpush1.bf16.msra.mxu0 %v305
  %399 = vmatprep.subr.bf16.mxu0 0
  %400 = vmatpush1.bf16.msra.mxu0 %v306
  %401 = vmatprep.subr.bf16.mxu0 0
  %402 = vmatpush1.bf16.msra.mxu0 %v307
  %403 = vmatprep.mubr.bf16.mxu0 %v131
  %404 = vmatmul.mubr.bf16.gmra.mrb[0].mxu0 %v130
  %v405 = vpop.f32.mrb[0].mxu0
  %v406 = vadd.f32 0.0, %v405
  %v407 = vpop.f32.mrb[0].mxu0
  %v408 = vpop.f32.mrb[0].mxu0
  %v409 = vadd.f32 0.0, %v408
  %v410 = vpop.f32.mrb[0].mxu0
  %411 = vmatprep.mubr.bf16.mxu0 %v136
  %412 = vmatmul.mubr.bf16.gmra.mrb[0].mxu0 %v135
  %v413 = vpop.f32.mrb[0].mxu0
  %v414 = vadd.f32 0.0, %v413
  %v415 = vpop.f32.mrb[0].mxu0
  %v416 = vpop.f32.mrb[0].mxu0
  %v417 = vadd.f32 0.0, %v416
  %v418 = vpop.f32.mrb[0].mxu0
  %419 = vdwg.mxu0
  %420 = vmatprep.subr.bf16.mxu0 0
  %421 = vmatpush1.bf16.msra.mxu0 %v308
  %422 = vmatprep.subr.bf16.mxu0 0
  %423 = vmatpush1.bf16.msra.mxu0 %v309
  %424 = vmatprep.subr.bf16.mxu0 0
  %425 = vmatpush1.bf16.msra.mxu0 %v310
  %426 = vmatprep.subr.bf16.mxu0 0
  %427 = vmatpush1.bf16.msra.mxu0 %v311
  %428 = vmatprep.subr.bf16.mxu0 0
  %429 = vmatpush1.bf16.msra.mxu0 %v312
  %430 = vmatprep.subr.bf16.mxu0 0
  %431 = vmatpush1.bf16.msra.mxu0 %v313
  %432 = vmatprep.subr.bf16.mxu0 0
  %433 = vmatpush1.bf16.msra.mxu0 %v314
  %434 = vmatprep.subr.bf16.mxu0 0
  %435 = vmatpush1.bf16.msra.mxu0 %v315
  %436 = vmatprep.subr.bf16.mxu0 0
  %437 = vmatpush1.bf16.msra.mxu0 %v316
  %438 = vmatprep.subr.bf16.mxu0 0
  %439 = vmatpush1.bf16.msra.mxu0 %v317
  %440 = vmatprep.subr.bf16.mxu0 0
  %441 = vmatpush1.bf16.msra.mxu0 %v318
  %442 = vmatprep.subr.bf16.mxu0 0
  %443 = vmatpush1.bf16.msra.mxu0 %v319
  %444 = vmatprep.subr.bf16.mxu0 0
  %445 = vmatpush1.bf16.msra.mxu0 %v320
  %446 = vmatprep.subr.bf16.mxu0 0
  %447 = vmatpush1.bf16.msra.mxu0 %v321
  %448 = vmatprep.subr.bf16.mxu0 0
  %449 = vmatpush1.bf16.msra.mxu0 %v322
  %450 = vmatprep.subr.bf16.mxu0 0
  %451 = vmatpush1.bf16.msra.mxu0 %v323
  %452 = vmatprep.mubr.bf16.mxu0 %v133
  %453 = vmatmul.mubr.bf16.gmra.mrb[0].mxu0 %v132
  %v454 = vpop.f32.mrb[0].mxu0
  %v455 = vadd.f32 %v406, %v454
  %v456 = vpop.f32.mrb[0].mxu0
  %v457 = vpop.f32.mrb[0].mxu0
  %v458 = vadd.f32 %v409, %v457
  %v459 = vpop.f32.mrb[0].mxu0
  %460 = vmatprep.mubr.bf16.mxu0 %v138
  %461 = vmatmul.mubr.bf16.gmra.mrb[0].mxu0 %v137
  %v462 = vpop.f32.mrb[0].mxu0
  %v463 = vadd.f32 %v414, %v462
  %v464 = vpop.f32.mrb[0].mxu0
  %v465 = vpop.f32.mrb[0].mxu0
  %v466 = vadd.f32 %v417, %v465
  %v467 = vpop.f32.mrb[0].mxu0
  %468 = vdwg.mxu0
  %469 = vmatprep.subr.bf16.mxu0 0
  %470 = vmatpush1.bf16.msra.mxu0 %v324
  %471 = vmatprep.subr.bf16.mxu0 0
  %472 = vmatpush1.bf16.msra.mxu0 %v325
  %473 = vmatprep.subr.bf16.mxu0 0
  %474 = vmatpush1.bf16.msra.mxu0 %v326
  %475 = vmatprep.subr.bf16.mxu0 0
  %476 = vmatpush1.bf16.msra.mxu0 %v327
  %477 = vmatprep.subr.bf16.mxu0 0
  %478 = vmatpush1.bf16.msra.mxu0 0
  %479 = vmatprep.subr.bf16.mxu0 0
  %480 = vmatpush1.bf16.msra.mxu0 0
  %481 = vmatprep.subr.bf16.mxu0 0
  %482 = vmatpush1.bf16.msra.mxu0 0
  %483 = vmatprep.subr.bf16.mxu0 0
  %484 = vmatpush1.bf16.msra.mxu0 0
  %485 = vmatprep.subr.bf16.mxu0 0
  %486 = vmatpush1.bf16.msra.mxu0 0
  %487 = vmatprep.subr.bf16.mxu0 0
  %488 = vmatpush1.bf16.msra.mxu0 0
  %489 = vmatprep.subr.bf16.mxu0 0
  %490 = vmatpush1.bf16.msra.mxu0 0
  %491 = vmatprep.subr.bf16.mxu0 0
  %492 = vmatpush1.bf16.msra.mxu0 0
  %493 = vmatprep.subr.bf16.mxu0 0
  %494 = vmatpush1.bf16.msra.mxu0 0
  %495 = vmatprep.subr.bf16.mxu0 0
  %496 = vmatpush1.bf16.msra.mxu0 0
  %497 = vmatprep.subr.bf16.mxu0 0
  %498 = vmatpush1.bf16.msra.mxu0 0
  %499 = vmatprep.subr.bf16.mxu0 0
  %500 = vmatpush1.bf16.msra.mxu0 0
  %501 = vmatprep.mubr.bf16.mxu0 0
  %502 = vmatmul.mubr.bf16.gmra.mrb[0].mxu0 %v366
  %v503 = vpop.f32.mrb[0].mxu0
  %v504 = vadd.f32 %v455, %v503
  %v505 = vpop.f32.mrb[0].mxu0
  %v506 = vpop.f32.mrb[0].mxu0
  %v507 = vadd.f32 %v458, %v506
  %v508 = vpop.f32.mrb[0].mxu0
  %509 = vmatprep.mubr.bf16.mxu0 0
  %510 = vmatmul.mubr.bf16.gmra.mrb[0].mxu0 %v369
  %v511 = vpop.f32.mrb[0].mxu0
  %v512 = vadd.f32 %v463, %v511
  %v513 = vpop.f32.mrb[0].mxu0
  %v514 = vpop.f32.mrb[0].mxu0
  %v515 = vadd.f32 %v466, %v514
  %v516 = vpop.f32.mrb[0].mxu0
  %517 = vdwg.mxu0
  %518 = vst [vmem:[%s2] sm:$0xff] %v504
  %519 = vst [vmem:[%s2 + $0x8] sm:$0xff] %v507
  %520 = vst [vmem:[%s2 + $0x10] sm:$0xff] %v512
  %521 = vst [vmem:[%s2 + $0x18] sm:$0xff] %v515
  %v522 = vadd.f32 %v504, %v507
  %v523 = vadd.f32 %v522, %v512
  %v524 = vadd.f32 %v523, %v515
  %v525 = vrot.slane %v524, 4
  %v526 = vadd.f32 %v524, %v525
  %v527 = vrot.slane %v526, 2
  %v528 = vadd.f32 %v526, %v527
  %v529 = vrot.slane %v528, 1
  %v530 = vadd.f32 %v528, %v529
  %v531 = vmul.f32 %v504, %v504
  %v532 = vmul.f32 %v507, %v507
  %v533 = vmul.f32 %v512, %v512
  %v534 = vmul.f32 %v515, %v515
  %v535 = vadd.f32 %v531, %v532
  %v536 = vadd.f32 %v535, %v533
  %v537 = vadd.f32 %v536, %v534
  %v538 = vrot.slane %v537, 4
  %v539 = vadd.f32 %v537, %v538
  %v540 = vrot.slane %v539, 2
  %v541 = vadd.f32 %v539, %v540
  %v542 = vrot.slane %v541, 1
  %v543 = vadd.f32 %v541, %v542
  %vm544 = vcmask 1040384
  %v545 = vsel %vm544, %v530, %v543
  %546 = vst [vmem:[%s3] sm:$0x3] %v545
  // Predicated region
  $region10: #{discriminator_forward.9} parent=0 // pred_check
    _
  $region11: #{discriminator_forward.9} parent=0 // pred_check_branch
    %548 = sbr.rel (0) target = $region13
  $region12: #{discriminator_forward.9} parent=0 // pred_region
    _
  $region13: #{discriminator_forward.9} parent=0 // pred_fallthru
    _
  // Predicated region
  $region14: #{discriminator_forward.9} parent=0 // pred_check
    _
  $region15: #{discriminator_forward.9} parent=0 // pred_check_branch
    %550 = sbr.rel (0) target = $region17
  $region16: #{discriminator_forward.9} parent=0 // pred_region
    _
  $region17: #{discriminator_forward.9} parent=0 // pred_fallthru
    _
  // Predicated region
  $region18: #{discriminator_forward.9} parent=0 // pred_check
    _
  $region19: #{discriminator_forward.9} parent=0 // pred_check_branch
    %552 = sbr.rel (0) target = $region21
  $region20: #{discriminator_forward.9} parent=0 // pred_region
    _
  $region21: #{discriminator_forward.9} parent=0 // pred_fallthru
    _
  // Predicated region
  $region22: #{discriminator_forward.9} parent=0 // pred_check
    _
  $region23: #{discriminator_forward.9} parent=0 // pred_check_branch
    %554 = sbr.rel (0) target = $region25
  $region24: #{discriminator_forward.9} parent=0 // pred_region
    _
  $region25: #{discriminator_forward.9} parent=0 // pred_fallthru
    _

// kernel: discriminator_forward.11
$region0: #{discriminator_forward.11}
  #allocation0 [shape = 'u32[]', space=smem, size = 0x4, offset = 0x4, fixed_abs, tag = 'smem constant byte address 0x4 - core index']
  #allocation1 [shape = 'u32[144,128]{1,0:T(1,128)}', space=vmem, size = 0x12000, scoped, tag = 'internal scratch']
  %s0 = inlined_call_operand.vmem [shape: bf16[8,2048], index: 0, kind: input, shape index: {}]
  %s1 = inlined_call_operand.vmem [shape: bf16[2048,128], index: 1, kind: input, shape index: {}]
  %s2 = inlined_call_operand.vmem [shape: f32[8,128], index: 2, kind: output, shape index: {}]
  %s3 = sld [smem:[#allocation0]]
  $region18: #{discriminator_forward.11} parent=0
    _
  %s5 = ssub.s32 1, %s3
  %s6 = scalar_select 0, %s5, %s3
  // Predicated region
  $region2: #{discriminator_forward.11} parent=0 // pred_check
    _
  $region3: #{discriminator_forward.11} parent=0 // pred_check_branch
    %8 = sbr.rel (0) target = $region5
  $region4: #{discriminator_forward.11} parent=0 // pred_region
    _
  $region5: #{discriminator_forward.11} parent=0 // pred_fallthru
    _
  // Predicated region
  $region6: #{discriminator_forward.11} parent=0 // pred_check
    _
  $region7: #{discriminator_forward.11} parent=0 // pred_check_branch
    %10 = sbr.rel (0) target = $region9
  $region8: #{discriminator_forward.11} parent=0 // pred_region
    _
  $region9: #{discriminator_forward.11} parent=0 // pred_fallthru
    _
  %v12 = vld [vmem:[%s0] sm:$0xff]
  %v13 = vld [vmem:[%s0 + $0x8] sm:$0xff]
  %v14 = vld [vmem:[%s0 + $0x10] sm:$0xff]
  %v15 = vld [vmem:[%s0 + $0x18] sm:$0xff]
  %v16 = vld [vmem:[%s0 + $0x20] sm:$0xff]
  %v17 = vld [vmem:[%s0 + $0x28] sm:$0xff]
  %v18 = vld [vmem:[%s0 + $0x30] sm:$0xff]
  %v19 = vld [vmem:[%s0 + $0x38] sm:$0xff]
  %v20 = vld [vmem:[%s1] sm:$0xf]
  %v21 = vld [vmem:[%s1 + $0x4] sm:$0xf]
  %v22 = vld [vmem:[%s1 + $0x8] sm:$0xf]
  %v23 = vld [vmem:[%s1 + $0xc] sm:$0xf]
  %v24 = vld [vmem:[%s1 + $0x10] sm:$0xf]
  %v25 = vld [vmem:[%s1 + $0x14] sm:$0xf]
  %v26 = vld [vmem:[%s1 + $0x18] sm:$0xf]
  %v27 = vld [vmem:[%s1 + $0x1c] sm:$0xf]
  %v28 = vld [vmem:[%s1 + $0x20] sm:$0xf]
  %v29 = vld [vmem:[%s1 + $0x24] sm:$0xf]
  %v30 = vld [vmem:[%s1 + $0x28] sm:$0xf]
  %v31 = vld [vmem:[%s1 + $0x2c] sm:$0xf]
  %v32 = vld [vmem:[%s1 + $0x30] sm:$0xf]
  %v33 = vld [vmem:[%s1 + $0x34] sm:$0xf]
  %v34 = vld [vmem:[%s1 + $0x38] sm:$0xf]
  %v35 = vld [vmem:[%s1 + $0x3c] sm:$0xf]
  %v36 = vld [vmem:[%s1 + $0x40] sm:$0xf]
  %v37 = vld [vmem:[%s1 + $0x44] sm:$0xf]
  %v38 = vld [vmem:[%s1 + $0x48] sm:$0xf]
  %v39 = vld [vmem:[%s1 + $0x4c] sm:$0xf]
  %v40 = vld [vmem:[%s1 + $0x50] sm:$0xf]
  %v41 = vld [vmem:[%s1 + $0x54] sm:$0xf]
  %v42 = vld [vmem:[%s1 + $0x58] sm:$0xf]
  %v43 = vld [vmem:[%s1 + $0x5c] sm:$0xf]
  %v44 = vld [vmem:[%s1 + $0x60] sm:$0xf]
  %v45 = vld [vmem:[%s1 + $0x64] sm:$0xf]
  %v46 = vld [vmem:[%s1 + $0x68] sm:$0xf]
  %v47 = vld [vmem:[%s1 + $0x6c] sm:$0xf]
  %v48 = vld [vmem:[%s1 + $0x70] sm:$0xf]
  %v49 = vld [vmem:[%s1 + $0x74] sm:$0xf]
  %v50 = vld [vmem:[%s1 + $0x78] sm:$0xf]
  %v51 = vld [vmem:[%s1 + $0x7c] sm:$0xf]
  %v52 = vld [vmem:[%s1 + $0x80] sm:$0xf]
  %v53 = vld [vmem:[%s1 + $0x84] sm:$0xf]
  %v54 = vld [vmem:[%s1 + $0x88] sm:$0xf]
  %v55 = vld [vmem:[%s1 + $0x8c] sm:$0xf]
  %v56 = vld [vmem:[%s1 + $0x90] sm:$0xf]
  %v57 = vld [vmem:[%s1 + $0x94] sm:$0xf]
  %v58 = vld [vmem:[%s1 + $0x98] sm:$0xf]
  %v59 = vld [vmem:[%s1 + $0x9c] sm:$0xf]
  %v60 = vld [vmem:[%s1 + $0xa0] sm:$0xf]
  %v61 = vld [vmem:[%s1 + $0xa4] sm:$0xf]
  %v62 = vld [vmem:[%s1 + $0xa8] sm:$0xf]
  %v63 = vld [vmem:[%s1 + $0xac] sm:$0xf]
  %v64 = vld [vmem:[%s1 + $0xb0] sm:$0xf]
  %v65 = vld [vmem:[%s1 + $0xb4] sm:$0xf]
  %v66 = vld [vmem:[%s1 + $0xb8] sm:$0xf]
  %v67 = vld [vmem:[%s1 + $0xbc] sm:$0xf]
  %v68 = vld [vmem:[%s1 + $0xc0] sm:$0xf]
  %v69 = vld [vmem:[%s1 + $0xc4] sm:$0xf]
  %v70 = vld [vmem:[%s1 + $0xc8] sm:$0xf]
  %v71 = vld [vmem:[%s1 + $0xcc] sm:$0xf]
  %v72 = vld [vmem:[%s1 + $0xd0] sm:$0xf]
  %v73 = vld [vmem:[%s1 + $0xd4] sm:$0xf]
  %v74 = vld [vmem:[%s1 + $0xd8] sm:$0xf]
  %v75 = vld [vmem:[%s1 + $0xdc] sm:$0xf]
  %v76 = vld [vmem:[%s1 + $0xe0] sm:$0xf]
  %v77 = vld [vmem:[%s1 + $0xe4] sm:$0xf]
  %v78 = vld [vmem:[%s1 + $0xe8] sm:$0xf]
  %v79 = vld [vmem:[%s1 + $0xec] sm:$0xf]
  %v80 = vld [vmem:[%s1 + $0xf0] sm:$0xf]
  %v81 = vld [vmem:[%s1 + $0xf4] sm:$0xf]
  %v82 = vld [vmem:[%s1 + $0xf8] sm:$0xf]
  %v83 = vld [vmem:[%s1 + $0xfc] sm:$0xf]
  %v84 = vld [vmem:[%s1 + $0x100] sm:$0xf]
  %v85 = vld [vmem:[%s1 + $0x104] sm:$0xf]
  %v86 = vld [vmem:[%s1 + $0x108] sm:$0xf]
  %v87 = vld [vmem:[%s1 + $0x10c] sm:$0xf]
  %v88 = vld [vmem:[%s1 + $0x110] sm:$0xf]
  %v89 = vld [vmem:[%s1 + $0x114] sm:$0xf]
  %v90 = vld [vmem:[%s1 + $0x118] sm:$0xf]
  %v91 = vld [vmem:[%s1 + $0x11c] sm:$0xf]
  %v92 = vld [vmem:[%s1 + $0x120] sm:$0xf]
  %v93 = vld [vmem:[%s1 + $0x124] sm:$0xf]
  %v94 = vld [vmem:[%s1 + $0x128] sm:$0xf]
  %v95 = vld [vmem:[%s1 + $0x12c] sm:$0xf]
  %v96 = vld [vmem:[%s1 + $0x130] sm:$0xf]
  %v97 = vld [vmem:[%s1 + $0x134] sm:$0xf]
  %v98 = vld [vmem:[%s1 + $0x138] sm:$0xf]
  %v99 = vld [vmem:[%s1 + $0x13c] sm:$0xf]
  %v100 = vld [vmem:[%s1 + $0x140] sm:$0xf]
  %v101 = vld [vmem:[%s1 + $0x144] sm:$0xf]
  %v102 = vld [vmem:[%s1 + $0x148] sm:$0xf]
  %v103 = vld [vmem:[%s1 + $0x14c] sm:$0xf]
  %v104 = vld [vmem:[%s1 + $0x150] sm:$0xf]
  %v105 = vld [vmem:[%s1 + $0x154] sm:$0xf]
  %v106 = vld [vmem:[%s1 + $0x158] sm:$0xf]
  %v107 = vld [vmem:[%s1 + $0x15c] sm:$0xf]
  %v108 = vld [vmem:[%s1 + $0x160] sm:$0xf]
  %v109 = vld [vmem:[%s1 + $0x164] sm:$0xf]
  %v110 = vld [vmem:[%s1 + $0x168] sm:$0xf]
  %v111 = vld [vmem:[%s1 + $0x16c] sm:$0xf]
  %v112 = vld [vmem:[%s1 + $0x170] sm:$0xf]
  %v113 = vld [vmem:[%s1 + $0x174] sm:$0xf]
  %v114 = vld [vmem:[%s1 + $0x178] sm:$0xf]
  %v115 = vld [vmem:[%s1 + $0x17c] sm:$0xf]
  %v116 = vld [vmem:[%s1 + $0x180] sm:$0xf]
  %v117 = vld [vmem:[%s1 + $0x184] sm:$0xf]
  %v118 = vld [vmem:[%s1 + $0x188] sm:$0xf]
  %v119 = vld [vmem:[%s1 + $0x18c] sm:$0xf]
  %v120 = vld [vmem:[%s1 + $0x190] sm:$0xf]
  %v121 = vld [vmem:[%s1 + $0x194] sm:$0xf]
  %v122 = vld [vmem:[%s1 + $0x198] sm:$0xf]
  %v123 = vld [vmem:[%s1 + $0x19c] sm:$0xf]
  %v124 = vld [vmem:[%s1 + $0x1a0] sm:$0xf]
  %v125 = vld [vmem:[%s1 + $0x1a4] sm:$0xf]
  %v126 = vld [vmem:[%s1 + $0x1a8] sm:$0xf]
  %v127 = vld [vmem:[%s1 + $0x1ac] sm:$0xf]
  %v128 = vld [vmem:[%s1 + $0x1b0] sm:$0xf]
  %v129 = vld [vmem:[%s1 + $0x1b4] sm:$0xf]
  %v130 = vld [vmem:[%s1 + $0x1b8] sm:$0xf]
  %v131 = vld [vmem:[%s1 + $0x1bc] sm:$0xf]
  %v132 = vld [vmem:[%s1 + $0x1c0] sm:$0xf]
  %v133 = vld [vmem:[%s1 + $0x1c4] sm:$0xf]
  %v134 = vld [vmem:[%s1 + $0x1c8] sm:$0xf]
  %v135 = vld [vmem:[%s1 + $0x1cc] sm:$0xf]
  %v136 = vld [vmem:[%s1 + $0x1d0] sm:$0xf]
  %v137 = vld [vmem:[%s1 + $0x1d4] sm:$0xf]
  %v138 = vld [vmem:[%s1 + $0x1d8] sm:$0xf]
  %v139 = vld [vmem:[%s1 + $0x1dc] sm:$0xf]
  %v140 = vld [vmem:[%s1 + $0x1e0] sm:$0xf]
  %v141 = vld [vmem:[%s1 + $0x1e4] sm:$0xf]
  %v142 = vld [vmem:[%s1 + $0x1e8] sm:$0xf]
  %v143 = vld [vmem:[%s1 + $0x1ec] sm:$0xf]
  %v144 = vld [vmem:[%s1 + $0x1f0] sm:$0xf]
  %v145 = vld [vmem:[%s1 + $0x1f4] sm:$0xf]
  %v146 = vld [vmem:[%s1 + $0x1f8] sm:$0xf]
  %v147 = vld [vmem:[%s1 + $0x1fc] sm:$0xf]
  %v148 = vld [vmem:[%s1 + $0x200] sm:$0xf]
  %v149 = vld [vmem:[%s1 + $0x204] sm:$0xf]
  %v150 = vld [vmem:[%s1 + $0x208] sm:$0xf]
  %v151 = vld [vmem:[%s1 + $0x20c] sm:$0xf]
  %v152 = vld [vmem:[%s1 + $0x210] sm:$0xf]
  %v153 = vld [vmem:[%s1 + $0x214] sm:$0xf]
  %v154 = vld [vmem:[%s1 + $0x218] sm:$0xf]
  %v155 = vld [vmem:[%s1 + $0x21c] sm:$0xf]
  %v156 = vld [vmem:[%s1 + $0x220] sm:$0xf]
  %v157 = vld [vmem:[%s1 + $0x224] sm:$0xf]
  %v158 = vld [vmem:[%s1 + $0x228] sm:$0xf]
  %v159 = vld [vmem:[%s1 + $0x22c] sm:$0xf]
  %v160 = vld [vmem:[%s1 + $0x230] sm:$0xf]
  %v161 = vld [vmem:[%s1 + $0x234] sm:$0xf]
  %v162 = vld [vmem:[%s1 + $0x238] sm:$0xf]
  %v163 = vld [vmem:[%s1 + $0x23c] sm:$0xf]
  %v164 = vld [vmem:[%s1 + $0x240] sm:$0xf]
  %v165 = vld [vmem:[%s1 + $0x244] sm:$0xf]
  %v166 = vld [vmem:[%s1 + $0x248] sm:$0xf]
  %v167 = vld [vmem:[%s1 + $0x24c] sm:$0xf]
  %v168 = vld [vmem:[%s1 + $0x250] sm:$0xf]
  %v169 = vld [vmem:[%s1 + $0x254] sm:$0xf]
  %v170 = vld [vmem:[%s1 + $0x258] sm:$0xf]
  %v171 = vld [vmem:[%s1 + $0x25c] sm:$0xf]
  %v172 = vld [vmem:[%s1 + $0x260] sm:$0xf]
  %v173 = vld [vmem:[%s1 + $0x264] sm:$0xf]
  %v174 = vld [vmem:[%s1 + $0x268] sm:$0xf]
  %v175 = vld [vmem:[%s1 + $0x26c] sm:$0xf]
  %v176 = vld [vmem:[%s1 + $0x270] sm:$0xf]
  %v177 = vld [vmem:[%s1 + $0x274] sm:$0xf]
  %v178 = vld [vmem:[%s1 + $0x278] sm:$0xf]
  %v179 = vld [vmem:[%s1 + $0x27c] sm:$0xf]
  %v180 = vld [vmem:[%s1 + $0x280] sm:$0xf]
  %v181 = vld [vmem:[%s1 + $0x284] sm:$0xf]
  %v182 = vld [vmem:[%s1 + $0x288] sm:$0xf]
  %v183 = vld [vmem:[%s1 + $0x28c] sm:$0xf]
  %v184 = vld [vmem:[%s1 + $0x290] sm:$0xf]
  %v185 = vld [vmem:[%s1 + $0x294] sm:$0xf]
  %v186 = vld [vmem:[%s1 + $0x298] sm:$0xf]
  %v187 = vld [vmem:[%s1 + $0x29c] sm:$0xf]
  %v188 = vld [vmem:[%s1 + $0x2a0] sm:$0xf]
  %v189 = vld [vmem:[%s1 + $0x2a4] sm:$0xf]
  %v190 = vld [vmem:[%s1 + $0x2a8] sm:$0xf]
  %v191 = vld [vmem:[%s1 + $0x2ac] sm:$0xf]
  %v192 = vld [vmem:[%s1 + $0x2b0] sm:$0xf]
  %v193 = vld [vmem:[%s1 + $0x2b4] sm:$0xf]
  %v194 = vld [vmem:[%s1 + $0x2b8] sm:$0xf]
  %v195 = vld [vmem:[%s1 + $0x2bc] sm:$0xf]
  %v196 = vld [vmem:[%s1 + $0x2c0] sm:$0xf]
  %v197 = vld [vmem:[%s1 + $0x2c4] sm:$0xf]
  %v198 = vld [vmem:[%s1 + $0x2c8] sm:$0xf]
  %v199 = vld [vmem:[%s1 + $0x2cc] sm:$0xf]
  %v200 = vld [vmem:[%s1 + $0x2d0] sm:$0xf]
  %v201 = vld [vmem:[%s1 + $0x2d4] sm:$0xf]
  %v202 = vld [vmem:[%s1 + $0x2d8] sm:$0xf]
  %v203 = vld [vmem:[%s1 + $0x2dc] sm:$0xf]
  %v204 = vld [vmem:[%s1 + $0x2e0] sm:$0xf]
  %v205 = vld [vmem:[%s1 + $0x2e4] sm:$0xf]
  %v206 = vld [vmem:[%s1 + $0x2e8] sm:$0xf]
  %v207 = vld [vmem:[%s1 + $0x2ec] sm:$0xf]
  %v208 = vld [vmem:[%s1 + $0x2f0] sm:$0xf]
  %v209 = vld [vmem:[%s1 + $0x2f4] sm:$0xf]
  %v210 = vld [vmem:[%s1 + $0x2f8] sm:$0xf]
  %v211 = vld [vmem:[%s1 + $0x2fc] sm:$0xf]
  %v212 = vld [vmem:[%s1 + $0x300] sm:$0xf]
  %v213 = vld [vmem:[%s1 + $0x304] sm:$0xf]
  %v214 = vld [vmem:[%s1 + $0x308] sm:$0xf]
  %v215 = vld [vmem:[%s1 + $0x30c] sm:$0xf]
  %v216 = vld [vmem:[%s1 + $0x310] sm:$0xf]
  %v217 = vld [vmem:[%s1 + $0x314] sm:$0xf]
  %v218 = vld [vmem:[%s1 + $0x318] sm:$0xf]
  %v219 = vld [vmem:[%s1 + $0x31c] sm:$0xf]
  %v220 = vld [vmem:[%s1 + $0x320] sm:$0xf]
  %v221 = vld [vmem:[%s1 + $0x324] sm:$0xf]
  %v222 = vld [vmem:[%s1 + $0x328] sm:$0xf]
  %v223 = vld [vmem:[%s1 + $0x32c] sm:$0xf]
  %v224 = vld [vmem:[%s1 + $0x330] sm:$0xf]
  %v225 = vld [vmem:[%s1 + $0x334] sm:$0xf]
  %v226 = vld [vmem:[%s1 + $0x338] sm:$0xf]
  %v227 = vld [vmem:[%s1 + $0x33c] sm:$0xf]
  %v228 = vld [vmem:[%s1 + $0x340] sm:$0xf]
  %v229 = vld [vmem:[%s1 + $0x344] sm:$0xf]
  %v230 = vld [vmem:[%s1 + $0x348] sm:$0xf]
  %v231 = vld [vmem:[%s1 + $0x34c] sm:$0xf]
  %v232 = vld [vmem:[%s1 + $0x350] sm:$0xf]
  %v233 = vld [vmem:[%s1 + $0x354] sm:$0xf]
  %v234 = vld [vmem:[%s1 + $0x358] sm:$0xf]
  %v235 = vld [vmem:[%s1 + $0x35c] sm:$0xf]
  %v236 = vld [vmem:[%s1 + $0x360] sm:$0xf]
  %v237 = vld [vmem:[%s1 + $0x364] sm:$0xf]
  %v238 = vld [vmem:[%s1 + $0x368] sm:$0xf]
  %v239 = vld [vmem:[%s1 + $0x36c] sm:$0xf]
  %v240 = vld [vmem:[%s1 + $0x370] sm:$0xf]
  %v241 = vld [vmem:[%s1 + $0x374] sm:$0xf]
  %v242 = vld [vmem:[%s1 + $0x378] sm:$0xf]
  %v243 = vld [vmem:[%s1 + $0x37c] sm:$0xf]
  %v244 = vld [vmem:[%s1 + $0x380] sm:$0xf]
  %v245 = vld [vmem:[%s1 + $0x384] sm:$0xf]
  %v246 = vld [vmem:[%s1 + $0x388] sm:$0xf]
  %v247 = vld [vmem:[%s1 + $0x38c] sm:$0xf]
  %v248 = vld [vmem:[%s1 + $0x390] sm:$0xf]
  %v249 = vld [vmem:[%s1 + $0x394] sm:$0xf]
  %v250 = vld [vmem:[%s1 + $0x398] sm:$0xf]
  %v251 = vld [vmem:[%s1 + $0x39c] sm:$0xf]
  %v252 = vld [vmem:[%s1 + $0x3a0] sm:$0xf]
  %v253 = vld [vmem:[%s1 + $0x3a4] sm:$0xf]
  %v254 = vld [vmem:[%s1 + $0x3a8] sm:$0xf]
  %v255 = vld [vmem:[%s1 + $0x3ac] sm:$0xf]
  %v256 = vld [vmem:[%s1 + $0x3b0] sm:$0xf]
  %v257 = vld [vmem:[%s1 + $0x3b4] sm:$0xf]
  %v258 = vld [vmem:[%s1 + $0x3b8] sm:$0xf]
  %v259 = vld [vmem:[%s1 + $0x3bc] sm:$0xf]
  %v260 = vld [vmem:[%s1 + $0x3c0] sm:$0xf]
  %v261 = vld [vmem:[%s1 + $0x3c4] sm:$0xf]
  %v262 = vld [vmem:[%s1 + $0x3c8] sm:$0xf]
  %v263 = vld [vmem:[%s1 + $0x3cc] sm:$0xf]
  %v264 = vld [vmem:[%s1 + $0x3d0] sm:$0xf]
  %v265 = vld [vmem:[%s1 + $0x3d4] sm:$0xf]
  %v266 = vld [vmem:[%s1 + $0x3d8] sm:$0xf]
  %v267 = vld [vmem:[%s1 + $0x3dc] sm:$0xf]
  %v268 = vld [vmem:[%s1 + $0x3e0] sm:$0xf]
  %v269 = vld [vmem:[%s1 + $0x3e4] sm:$0xf]
  %v270 = vld [vmem:[%s1 + $0x3e8] sm:$0xf]
  %v271 = vld [vmem:[%s1 + $0x3ec] sm:$0xf]
  %v272 = vld [vmem:[%s1 + $0x3f0] sm:$0xf]
  %v273 = vld [vmem:[%s1 + $0x3f4] sm:$0xf]
  %v274 = vld [vmem:[%s1 + $0x3f8] sm:$0xf]
  %v275 = vld [vmem:[%s1 + $0x3fc] sm:$0xf]
  %v284 = vunpack.c.l.b16 %v12
  %v285 = vunpack.c.h.b16 %v12
  %v286 = vunpack.c.l.b16 %v13
  %v287 = vunpack.c.h.b16 %v13
  %v288 = vunpack.c.l.b16 %v14
  %v289 = vunpack.c.h.b16 %v14
  %v290 = vunpack.c.l.b16 %v15
  %v291 = vunpack.c.h.b16 %v15
  %v292 = vunpack.c.l.b16 %v16
  %v293 = vunpack.c.h.b16 %v16
  %v294 = vunpack.c.l.b16 %v17
  %v295 = vunpack.c.h.b16 %v17
  %v296 = vunpack.c.l.b16 %v18
  %v297 = vunpack.c.h.b16 %v18
  %v298 = vunpack.c.l.b16 %v19
  %v299 = vunpack.c.h.b16 %v19
  %v300 = vpack.c.b16 %v284, %v284
  %v301 = vpack.c.b16 %v285, %v285
  %v302 = vpack.c.b16 %v286, %v286
  %v303 = vpack.c.b16 %v287, %v287
  %v304 = vpack.c.b16 %v288, %v288
  %v305 = vpack.c.b16 %v289, %v289
  %v306 = vpack.c.b16 %v290, %v290
  %v307 = vpack.c.b16 %v291, %v291
  %v308 = vpack.c.b16 %v292, %v292
  %v309 = vpack.c.b16 %v293, %v293
  %v310 = vpack.c.b16 %v294, %v294
  %v311 = vpack.c.b16 %v295, %v295
  %v312 = vpack.c.b16 %v296, %v296
  %v313 = vpack.c.b16 %v297, %v297
  %v314 = vpack.c.b16 %v298, %v298
  %v315 = vpack.c.b16 %v299, %v299
  %v588 = vunpack.c.l.b16 %v20
  %v589 = vunpack.c.l.b16 %v21
  %v590 = vunpack.c.l.b16 %v22
  %v591 = vunpack.c.l.b16 %v23
  %v592 = vunpack.c.l.b16 %v24
  %v593 = vunpack.c.l.b16 %v25
  %v594 = vunpack.c.l.b16 %v26
  %v595 = vunpack.c.l.b16 %v27
  %v596 = vunpack.c.l.b16 %v28
  %v597 = vunpack.c.l.b16 %v29
  %v598 = vunpack.c.l.b16 %v30
  %v599 = vunpack.c.l.b16 %v31
  %v600 = vunpack.c.l.b16 %v32
  %v601 = vunpack.c.l.b16 %v33
  %v602 = vunpack.c.l.b16 %v34
  %v603 = vunpack.c.l.b16 %v35
  %v604 = vunpack.c.l.b16 %v36
  %v605 = vunpack.c.l.b16 %v37
  %v606 = vunpack.c.l.b16 %v38
  %v607 = vunpack.c.l.b16 %v39
  %v608 = vunpack.c.l.b16 %v40
  %v609 = vunpack.c.l.b16 %v41
  %v610 = vunpack.c.l.b16 %v42
  %v611 = vunpack.c.l.b16 %v43
  %v612 = vunpack.c.l.b16 %v44
  %v613 = vunpack.c.l.b16 %v45
  %v614 = vunpack.c.l.b16 %v46
  %v615 = vunpack.c.l.b16 %v47
  %v616 = vunpack.c.l.b16 %v48
  %v617 = vunpack.c.l.b16 %v49
  %v618 = vunpack.c.l.b16 %v50
  %v619 = vunpack.c.l.b16 %v51
  %v620 = vunpack.c.l.b16 %v52
  %v621 = vunpack.c.l.b16 %v53
  %v622 = vunpack.c.l.b16 %v54
  %v623 = vunpack.c.l.b16 %v55
  %v624 = vunpack.c.l.b16 %v56
  %v625 = vunpack.c.l.b16 %v57
  %v626 = vunpack.c.l.b16 %v58
  %v627 = vunpack.c.l.b16 %v59
  %v628 = vunpack.c.l.b16 %v60
  %v629 = vunpack.c.l.b16 %v61
  %v630 = vunpack.c.l.b16 %v62
  %v631 = vunpack.c.l.b16 %v63
  %v632 = vunpack.c.l.b16 %v64
  %v633 = vunpack.c.l.b16 %v65
  %v634 = vunpack.c.l.b16 %v66
  %v635 = vunpack.c.l.b16 %v67
  %v636 = vunpack.c.l.b16 %v68
  %v637 = vunpack.c.l.b16 %v69
  %v638 = vunpack.c.l.b16 %v70
  %v639 = vunpack.c.l.b16 %v71
  %v640 = vunpack.c.l.b16 %v72
  %v641 = vunpack.c.l.b16 %v73
  %v642 = vunpack.c.l.b16 %v74
  %v643 = vunpack.c.l.b16 %v75
  %v644 = vunpack.c.l.b16 %v76
  %v645 = vunpack.c.l.b16 %v77
  %v646 = vunpack.c.l.b16 %v78
  %v647 = vunpack.c.l.b16 %v79
  %v648 = vunpack.c.l.b16 %v80
  %v649 = vunpack.c.l.b16 %v81
  %v650 = vunpack.c.l.b16 %v82
  %v651 = vunpack.c.l.b16 %v83
  %v652 = vunpack.c.l.b16 %v84
  %v653 = vunpack.c.l.b16 %v85
  %v654 = vunpack.c.l.b16 %v86
  %v655 = vunpack.c.l.b16 %v87
  %v656 = vunpack.c.l.b16 %v88
  %v657 = vunpack.c.l.b16 %v89
  %v658 = vunpack.c.l.b16 %v90
  %v659 = vunpack.c.l.b16 %v91
  %v660 = vunpack.c.l.b16 %v92
  %v661 = vunpack.c.l.b16 %v93
  %v662 = vunpack.c.l.b16 %v94
  %v663 = vunpack.c.l.b16 %v95
  %v664 = vunpack.c.l.b16 %v96
  %v665 = vunpack.c.l.b16 %v97
  %v666 = vunpack.c.l.b16 %v98
  %v667 = vunpack.c.l.b16 %v99
  %v668 = vunpack.c.l.b16 %v100
  %v669 = vunpack.c.l.b16 %v101
  %v670 = vunpack.c.l.b16 %v102
  %v671 = vunpack.c.l.b16 %v103
  %v672 = vunpack.c.l.b16 %v104
  %v673 = vunpack.c.l.b16 %v105
  %v674 = vunpack.c.l.b16 %v106
  %v675 = vunpack.c.l.b16 %v107
  %v676 = vunpack.c.l.b16 %v108
  %v677 = vunpack.c.l.b16 %v109
  %v678 = vunpack.c.l.b16 %v110
  %v679 = vunpack.c.l.b16 %v111
  %v680 = vunpack.c.l.b16 %v112
  %v681 = vunpack.c.l.b16 %v113
  %v682 = vunpack.c.l.b16 %v114
  %v683 = vunpack.c.l.b16 %v115
  %v684 = vunpack.c.l.b16 %v116
  %v685 = vunpack.c.l.b16 %v117
  %v686 = vunpack.c.l.b16 %v118
  %v687 = vunpack.c.l.b16 %v119
  %v688 = vunpack.c.l.b16 %v120
  %v689 = vunpack.c.l.b16 %v121
  %v690 = vunpack.c.l.b16 %v122
  %v691 = vunpack.c.l.b16 %v123
  %v692 = vunpack.c.l.b16 %v124
  %v693 = vunpack.c.l.b16 %v125
  %v694 = vunpack.c.l.b16 %v126
  %v695 = vunpack.c.l.b16 %v127
  %v696 = vunpack.c.l.b16 %v128
  %v697 = vunpack.c.l.b16 %v129
  %v698 = vunpack.c.l.b16 %v130
  %v699 = vunpack.c.l.b16 %v131
  %v700 = vunpack.c.l.b16 %v132
  %v701 = vunpack.c.l.b16 %v133
  %v702 = vunpack.c.l.b16 %v134
  %v703 = vunpack.c.l.b16 %v135
  %v704 = vunpack.c.l.b16 %v136
  %v705 = vunpack.c.l.b16 %v137
  %v706 = vunpack.c.l.b16 %v138
  %v707 = vunpack.c.l.b16 %v139
  %v708 = vunpack.c.l.b16 %v140
  %v709 = vunpack.c.l.b16 %v141
  %v710 = vunpack.c.l.b16 %v142
  %v711 = vunpack.c.l.b16 %v143
  %v712 = vunpack.c.l.b16 %v144
  %v713 = vunpack.c.l.b16 %v145
  %v714 = vunpack.c.l.b16 %v146
  %v715 = vunpack.c.l.b16 %v147
  %v716 = vunpack.c.l.b16 %v148
  %v717 = vunpack.c.l.b16 %v149
  %v718 = vunpack.c.l.b16 %v150
  %v719 = vunpack.c.l.b16 %v151
  %v720 = vunpack.c.l.b16 %v152
  %v721 = vunpack.c.l.b16 %v153
  %v722 = vunpack.c.l.b16 %v154
  %v723 = vunpack.c.l.b16 %v155
  %v724 = vunpack.c.l.b16 %v156
  %v725 = vunpack.c.l.b16 %v157
  %v726 = vunpack.c.l.b16 %v158
  %v727 = vunpack.c.l.b16 %v159
  %v728 = vunpack.c.l.b16 %v160
  %v729 = vunpack.c.l.b16 %v161
  %v730 = vunpack.c.l.b16 %v162
  %v731 = vunpack.c.l.b16 %v163
  %v732 = vunpack.c.l.b16 %v164
  %v733 = vunpack.c.l.b16 %v165
  %v734 = vunpack.c.l.b16 %v166
  %v735 = vunpack.c.l.b16 %v167
  %v736 = vunpack.c.l.b16 %v168
  %v737 = vunpack.c.l.b16 %v169
  %v738 = vunpack.c.l.b16 %v170
  %v739 = vunpack.c.l.b16 %v171
  %v740 = vunpack.c.l.b16 %v172
  %v741 = vunpack.c.l.b16 %v173
  %v742 = vunpack.c.l.b16 %v174
  %v743 = vunpack.c.l.b16 %v175
  %v744 = vunpack.c.l.b16 %v176
  %v745 = vunpack.c.l.b16 %v177
  %v746 = vunpack.c.l.b16 %v178
  %v747 = vunpack.c.l.b16 %v179
  %v748 = vunpack.c.l.b16 %v180
  %v749 = vunpack.c.l.b16 %v181
  %v750 = vunpack.c.l.b16 %v182
  %v751 = vunpack.c.l.b16 %v183
  %v752 = vunpack.c.l.b16 %v184
  %v753 = vunpack.c.l.b16 %v185
  %v754 = vunpack.c.l.b16 %v186
  %v755 = vunpack.c.l.b16 %v187
  %v756 = vunpack.c.l.b16 %v188
  %v757 = vunpack.c.l.b16 %v189
  %v758 = vunpack.c.l.b16 %v190
  %v759 = vunpack.c.l.b16 %v191
  %v760 = vunpack.c.l.b16 %v192
  %v761 = vunpack.c.l.b16 %v193
  %v762 = vunpack.c.l.b16 %v194
  %v763 = vunpack.c.l.b16 %v195
  %v764 = vunpack.c.l.b16 %v196
  %v765 = vunpack.c.l.b16 %v197
  %v766 = vunpack.c.l.b16 %v198
  %v767 = vunpack.c.l.b16 %v199
  %v768 = vunpack.c.l.b16 %v200
  %v769 = vunpack.c.l.b16 %v201
  %v770 = vunpack.c.l.b16 %v202
  %v771 = vunpack.c.l.b16 %v203
  %v772 = vunpack.c.l.b16 %v204
  %v773 = vunpack.c.l.b16 %v205
  %v774 = vunpack.c.l.b16 %v206
  %v775 = vunpack.c.l.b16 %v207
  %v776 = vunpack.c.l.b16 %v208
  %v777 = vunpack.c.l.b16 %v209
  %v778 = vunpack.c.l.b16 %v210
  %v779 = vunpack.c.l.b16 %v211
  %v780 = vunpack.c.l.b16 %v212
  %v781 = vunpack.c.l.b16 %v213
  %v782 = vunpack.c.l.b16 %v214
  %v783 = vunpack.c.l.b16 %v215
  %v784 = vunpack.c.l.b16 %v216
  %v785 = vunpack.c.l.b16 %v217
  %v786 = vunpack.c.l.b16 %v218
  %v787 = vunpack.c.l.b16 %v219
  %v788 = vunpack.c.l.b16 %v220
  %v789 = vunpack.c.l.b16 %v221
  %v790 = vunpack.c.l.b16 %v222
  %v791 = vunpack.c.l.b16 %v223
  %v792 = vunpack.c.l.b16 %v224
  %v793 = vunpack.c.l.b16 %v225
  %v794 = vunpack.c.l.b16 %v226
  %v795 = vunpack.c.l.b16 %v227
  %v796 = vunpack.c.l.b16 %v228
  %v797 = vunpack.c.l.b16 %v229
  %v798 = vunpack.c.l.b16 %v230
  %v799 = vunpack.c.l.b16 %v231
  %v800 = vunpack.c.l.b16 %v232
  %v801 = vunpack.c.l.b16 %v233
  %v802 = vunpack.c.l.b16 %v234
  %v803 = vunpack.c.l.b16 %v235
  %v804 = vunpack.c.l.b16 %v236
  %v805 = vunpack.c.l.b16 %v237
  %v806 = vunpack.c.l.b16 %v238
  %v807 = vunpack.c.l.b16 %v239
  %v808 = vunpack.c.l.b16 %v240
  %v809 = vunpack.c.l.b16 %v241
  %v810 = vunpack.c.l.b16 %v242
  %v811 = vunpack.c.l.b16 %v243
  %v812 = vunpack.c.l.b16 %v244
  %v813 = vunpack.c.l.b16 %v245
  %v814 = vunpack.c.l.b16 %v246
  %v815 = vunpack.c.l.b16 %v247
  %v816 = vunpack.c.l.b16 %v248
  %v817 = vunpack.c.l.b16 %v249
  %v818 = vunpack.c.l.b16 %v250
  %v819 = vunpack.c.l.b16 %v251
  %v820 = vunpack.c.l.b16 %v252
  %v821 = vunpack.c.l.b16 %v253
  %v822 = vunpack.c.l.b16 %v254
  %v823 = vunpack.c.l.b16 %v255
  %v824 = vunpack.c.l.b16 %v256
  %v825 = vunpack.c.l.b16 %v257
  %v826 = vunpack.c.l.b16 %v258
  %v827 = vunpack.c.l.b16 %v259
  %v828 = vunpack.c.l.b16 %v260
  %v829 = vunpack.c.l.b16 %v261
  %v830 = vunpack.c.l.b16 %v262
  %v831 = vunpack.c.l.b16 %v263
  %v832 = vunpack.c.l.b16 %v264
  %v833 = vunpack.c.l.b16 %v265
  %v834 = vunpack.c.l.b16 %v266
  %v835 = vunpack.c.l.b16 %v267
  %v836 = vunpack.c.l.b16 %v268
  %v837 = vunpack.c.l.b16 %v269
  %v838 = vunpack.c.l.b16 %v270
  %v839 = vunpack.c.l.b16 %v271
  %v840 = vunpack.c.l.b16 %v272
  %v841 = vunpack.c.l.b16 %v273
  %v842 = vunpack.c.l.b16 %v274
  %v843 = vunpack.c.l.b16 %v275
  %v844 = vpack.c.b16 %v589, %v588
  %v845 = vpack.c.b16 %v591, %v590
  %v846 = vpack.c.b16 %v593, %v592
  %v847 = vpack.c.b16 %v595, %v594
  %v848 = vpack.c.b16 %v597, %v596
  %v849 = vpack.c.b16 %v599, %v598
  %v850 = vpack.c.b16 %v601, %v600
  %v851 = vpack.c.b16 %v603, %v602
  %v852 = vpack.c.b16 %v605, %v604
  %v853 = vpack.c.b16 %v607, %v606
  %v854 = vpack.c.b16 %v609, %v608
  %v855 = vpack.c.b16 %v611, %v610
  %v856 = vpack.c.b16 %v613, %v612
  %v857 = vpack.c.b16 %v615, %v614
  %v858 = vpack.c.b16 %v617, %v616
  %v859 = vpack.c.b16 %v619, %v618
  %v860 = vpack.c.b16 %v621, %v620
  %v861 = vpack.c.b16 %v623, %v622
  %v862 = vpack.c.b16 %v625, %v624
  %v863 = vpack.c.b16 %v627, %v626
  %v864 = vpack.c.b16 %v629, %v628
  %v865 = vpack.c.b16 %v631, %v630
  %v866 = vpack.c.b16 %v633, %v632
  %v867 = vpack.c.b16 %v635, %v634
  %v868 = vpack.c.b16 %v637, %v636
  %v869 = vpack.c.b16 %v639, %v638
  %v870 = vpack.c.b16 %v641, %v640
  %v871 = vpack.c.b16 %v643, %v642
  %v872 = vpack.c.b16 %v645, %v644
  %v873 = vpack.c.b16 %v647, %v646
  %v874 = vpack.c.b16 %v649, %v648
  %v875 = vpack.c.b16 %v651, %v650
  %v876 = vpack.c.b16 %v653, %v652
  %v877 = vpack.c.b16 %v655, %v654
  %v878 = vpack.c.b16 %v657, %v656
  %v879 = vpack.c.b16 %v659, %v658
  %v880 = vpack.c.b16 %v661, %v660
  %v881 = vpack.c.b16 %v663, %v662
  %v882 = vpack.c.b16 %v665, %v664
  %v883 = vpack.c.b16 %v667, %v666
  %v884 = vpack.c.b16 %v669, %v668
  %v885 = vpack.c.b16 %v671, %v670
  %v886 = vpack.c.b16 %v673, %v672
  %v887 = vpack.c.b16 %v675, %v674
  %v888 = vpack.c.b16 %v677, %v676
  %v889 = vpack.c.b16 %v679, %v678
  %v890 = vpack.c.b16 %v681, %v680
  %v891 = vpack.c.b16 %v683, %v682
  %v892 = vpack.c.b16 %v685, %v684
  %v893 = vpack.c.b16 %v687, %v686
  %v894 = vpack.c.b16 %v689, %v688
  %v895 = vpack.c.b16 %v691, %v690
  %v896 = vpack.c.b16 %v693, %v692
  %v897 = vpack.c.b16 %v695, %v694
  %v898 = vpack.c.b16 %v697, %v696
  %v899 = vpack.c.b16 %v699, %v698
  %v900 = vpack.c.b16 %v701, %v700
  %v901 = vpack.c.b16 %v703, %v702
  %v902 = vpack.c.b16 %v705, %v704
  %v903 = vpack.c.b16 %v707, %v706
  %v904 = vpack.c.b16 %v709, %v708
  %v905 = vpack.c.b16 %v711, %v710
  %v906 = vpack.c.b16 %v713, %v712
  %v907 = vpack.c.b16 %v715, %v714
  %v908 = vpack.c.b16 %v717, %v716
  %v909 = vpack.c.b16 %v719, %v718
  %v910 = vpack.c.b16 %v721, %v720
  %v911 = vpack.c.b16 %v723, %v722
  %v912 = vpack.c.b16 %v725, %v724
  %v913 = vpack.c.b16 %v727, %v726
  %v914 = vpack.c.b16 %v729, %v728
  %v915 = vpack.c.b16 %v731, %v730
  %v916 = vpack.c.b16 %v733, %v732
  %v917 = vpack.c.b16 %v735, %v734
  %v918 = vpack.c.b16 %v737, %v736
  %v919 = vpack.c.b16 %v739, %v738
  %v920 = vpack.c.b16 %v741, %v740
  %v921 = vpack.c.b16 %v743, %v742
  %v922 = vpack.c.b16 %v745, %v744
  %v923 = vpack.c.b16 %v747, %v746
  %v924 = vpack.c.b16 %v749, %v748
  %v925 = vpack.c.b16 %v751, %v750
  %v926 = vpack.c.b16 %v753, %v752
  %v927 = vpack.c.b16 %v755, %v754
  %v928 = vpack.c.b16 %v757, %v756
  %v929 = vpack.c.b16 %v759, %v758
  %v930 = vpack.c.b16 %v761, %v760
  %v931 = vpack.c.b16 %v763, %v762
  %v932 = vpack.c.b16 %v765, %v764
  %v933 = vpack.c.b16 %v767, %v766
  %v934 = vpack.c.b16 %v769, %v768
  %v935 = vpack.c.b16 %v771, %v770
  %v936 = vpack.c.b16 %v773, %v772
  %v937 = vpack.c.b16 %v775, %v774
  %v938 = vpack.c.b16 %v777, %v776
  %v939 = vpack.c.b16 %v779, %v778
  %v940 = vpack.c.b16 %v781, %v780
  %v941 = vpack.c.b16 %v783, %v782
  %v942 = vpack.c.b16 %v785, %v784
  %v943 = vpack.c.b16 %v787, %v786
  %v944 = vpack.c.b16 %v789, %v788
  %v945 = vpack.c.b16 %v791, %v790
  %v946 = vpack.c.b16 %v793, %v792
  %v947 = vpack.c.b16 %v795, %v794
  %v948 = vpack.c.b16 %v797, %v796
  %v949 = vpack.c.b16 %v799, %v798
  %v950 = vpack.c.b16 %v801, %v800
  %v951 = vpack.c.b16 %v803, %v802
  %v952 = vpack.c.b16 %v805, %v804
  %v953 = vpack.c.b16 %v807, %v806
  %v954 = vpack.c.b16 %v809, %v808
  %v955 = vpack.c.b16 %v811, %v810
  %v956 = vpack.c.b16 %v813, %v812
  %v957 = vpack.c.b16 %v815, %v814
  %v958 = vpack.c.b16 %v817, %v816
  %v959 = vpack.c.b16 %v819, %v818
  %v960 = vpack.c.b16 %v821, %v820
  %v961 = vpack.c.b16 %v823, %v822
  %v962 = vpack.c.b16 %v825, %v824
  %v963 = vpack.c.b16 %v827, %v826
  %v964 = vpack.c.b16 %v829, %v828
  %v965 = vpack.c.b16 %v831, %v830
  %v966 = vpack.c.b16 %v833, %v832
  %v967 = vpack.c.b16 %v835, %v834
  %v968 = vpack.c.b16 %v837, %v836
  %v969 = vpack.c.b16 %v839, %v838
  %v970 = vpack.c.b16 %v841, %v840
  %v971 = vpack.c.b16 %v843, %v842
  %1100 = vmatprep.subr.bf16.mxu0 0
  %1101 = vmatpush1.bf16.msra.mxu0 %v844
  %1102 = vmatprep.subr.bf16.mxu0 0
  %1103 = vmatpush1.bf16.msra.mxu0 %v845
  %1104 = vmatprep.subr.bf16.mxu0 0
  %1105 = vmatpush1.bf16.msra.mxu0 %v846
  %1106 = vmatprep.subr.bf16.mxu0 0
  %1107 = vmatpush1.bf16.msra.mxu0 %v847
  %1108 = vmatprep.subr.bf16.mxu0 0
  %1109 = vmatpush1.bf16.msra.mxu0 %v848
  %1110 = vmatprep.subr.bf16.mxu0 0
  %1111 = vmatpush1.bf16.msra.mxu0 %v849
  %1112 = vmatprep.subr.bf16.mxu0 0
  %1113 = vmatpush1.bf16.msra.mxu0 %v850
  %1114 = vmatprep.subr.bf16.mxu0 0
  %1115 = vmatpush1.bf16.msra.mxu0 %v851
  %1116 = vmatprep.subr.bf16.mxu0 0
  %1117 = vmatpush1.bf16.msra.mxu0 %v852
  %1118 = vmatprep.subr.bf16.mxu0 0
  %1119 = vmatpush1.bf16.msra.mxu0 %v853
  %1120 = vmatprep.subr.bf16.mxu0 0
  %1121 = vmatpush1.bf16.msra.mxu0 %v854
  %1122 = vmatprep.subr.bf16.mxu0 0
  %1123 = vmatpush1.bf16.msra.mxu0 %v855
  %1124 = vmatprep.subr.bf16.mxu0 0
  %1125 = vmatpush1.bf16.msra.mxu0 %v856
  %1126 = vmatprep.subr.bf16.mxu0 0
  %1127 = vmatpush1.bf16.msra.mxu0 %v857
  %1128 = vmatprep.subr.bf16.mxu0 0
  %1129 = vmatpush1.bf16.msra.mxu0 %v858
  %1130 = vmatprep.subr.bf16.mxu0 0
  %1131 = vmatpush1.bf16.msra.mxu0 %v859
  %1132 = vmatprep.mubr.bf16.mxu0 %v301
  %1133 = vmatmul.mubr.bf16.gmra.mrb[0].mxu0 %v300
  %v1134 = vpop.f32.mrb[0].mxu0
  %v1135 = vadd.f32 0.0, %v1134
  %v1136 = vpop.f32.mrb[0].mxu0
  %v1137 = vpop.f32.mrb[0].mxu0
  %v1138 = vpop.f32.mrb[0].mxu0
  %1139 = vdwg.mxu0
  %1140 = vmatprep.subr.bf16.mxu0 0
  %1141 = vmatpush1.bf16.msra.mxu0 %v860
  %1142 = vmatprep.subr.bf16.mxu0 0
  %1143 = vmatpush1.bf16.msra.mxu0 %v861
  %1144 = vmatprep.subr.bf16.mxu0 0
  %1145 = vmatpush1.bf16.msra.mxu0 %v862
  %1146 = vmatprep.subr.bf16.mxu0 0
  %1147 = vmatpush1.bf16.msra.mxu0 %v863
  %1148 = vmatprep.subr.bf16.mxu0 0
  %1149 = vmatpush1.bf16.msra.mxu0 %v864
  %1150 = vmatprep.subr.bf16.mxu0 0
  %1151 = vmatpush1.bf16.msra.mxu0 %v865
  %1152 = vmatprep.subr.bf16.mxu0 0
  %1153 = vmatpush1.bf16.msra.mxu0 %v866
  %1154 = vmatprep.subr.bf16.mxu0 0
  %1155 = vmatpush1.bf16.msra.mxu0 %v867
  %1156 = vmatprep.subr.bf16.mxu0 0
  %1157 = vmatpush1.bf16.msra.mxu0 %v868
  %1158 = vmatprep.subr.bf16.mxu0 0
  %1159 = vmatpush1.bf16.msra.mxu0 %v869
  %1160 = vmatprep.subr.bf16.mxu0 0
  %1161 = vmatpush1.bf16.msra.mxu0 %v870
  %1162 = vmatprep.subr.bf16.mxu0 0
  %1163 = vmatpush1.bf16.msra.mxu0 %v871
  %1164 = vmatprep.subr.bf16.mxu0 0
  %1165 = vmatpush1.bf16.msra.mxu0 %v872
  %1166 = vmatprep.subr.bf16.mxu0 0
  %1167 = vmatpush1.bf16.msra.mxu0 %v873
  %1168 = vmatprep.subr.bf16.mxu0 0
  %1169 = vmatpush1.bf16.msra.mxu0 %v874
  %1170 = vmatprep.subr.bf16.mxu0 0
  %1171 = vmatpush1.bf16.msra.mxu0 %v875
  %1172 = vmatprep.mubr.bf16.mxu0 %v303
  %1173 = vmatmul.mubr.bf16.gmra.mrb[0].mxu0 %v302
  %v1174 = vpop.f32.mrb[0].mxu0
  %v1175 = vadd.f32 %v1135, %v1174
  %v1176 = vpop.f32.mrb[0].mxu0
  %v1177 = vpop.f32.mrb[0].mxu0
  %v1178 = vpop.f32.mrb[0].mxu0
  %1179 = vdwg.mxu0
  %1180 = vmatprep.subr.bf16.mxu0 0
  %1181 = vmatpush1.bf16.msra.mxu0 %v876
  %1182 = vmatprep.subr.bf16.mxu0 0
  %1183 = vmatpush1.bf16.msra.mxu0 %v877
  %1184 = vmatprep.subr.bf16.mxu0 0
  %1185 = vmatpush1.bf16.msra.mxu0 %v878
  %1186 = vmatprep.subr.bf16.mxu0 0
  %1187 = vmatpush1.bf16.msra.mxu0 %v879
  %1188 = vmatprep.subr.bf16.mxu0 0
  %1189 = vmatpush1.bf16.msra.mxu0 %v880
  %1190 = vmatprep.subr.bf16.mxu0 0
  %1191 = vmatpush1.bf16.msra.mxu0 %v881
  %1192 = vmatprep.subr.bf16.mxu0 0
  %1193 = vmatpush1.bf16.msra.mxu0 %v882
  %1194 = vmatprep.subr.bf16.mxu0 0
  %1195 = vmatpush1.bf16.msra.mxu0 %v883
  %1196 = vmatprep.subr.bf16.mxu0 0
  %1197 = vmatpush1.bf16.msra.mxu0 %v884
  %1198 = vmatprep.subr.bf16.mxu0 0
  %1199 = vmatpush1.bf16.msra.mxu0 %v885
  %1200 = vmatprep.subr.bf16.mxu0 0
  %1201 = vmatpush1.bf16.msra.mxu0 %v886
  %1202 = vmatprep.subr.bf16.mxu0 0
  %1203 = vmatpush1.bf16.msra.mxu0 %v887
  %1204 = vmatprep.subr.bf16.mxu0 0
  %1205 = vmatpush1.bf16.msra.mxu0 %v888
  %1206 = vmatprep.subr.bf16.mxu0 0
  %1207 = vmatpush1.bf16.msra.mxu0 %v889
  %1208 = vmatprep.subr.bf16.mxu0 0
  %1209 = vmatpush1.bf16.msra.mxu0 %v890
  %1210 = vmatprep.subr.bf16.mxu0 0
  %1211 = vmatpush1.bf16.msra.mxu0 %v891
  %1212 = vmatprep.mubr.bf16.mxu0 %v305
  %1213 = vmatmul.mubr.bf16.gmra.mrb[0].mxu0 %v304
  %v1214 = vpop.f32.mrb[0].mxu0
  %v1215 = vadd.f32 %v1175, %v1214
  %v1216 = vpop.f32.mrb[0].mxu0
  %v1217 = vpop.f32.mrb[0].mxu0
  %v1218 = vpop.f32.mrb[0].mxu0
  %1219 = vdwg.mxu0
  %1220 = vmatprep.subr.bf16.mxu0 0
  %1221 = vmatpush1.bf16.msra.mxu0 %v892
  %1222 = vmatprep.subr.bf16.mxu0 0
  %1223 = vmatpush1.bf16.msra.mxu0 %v893
  %1224 = vmatprep.subr.bf16.mxu0 0
  %1225 = vmatpush1.bf16.msra.mxu0 %v894
  %1226 = vmatprep.subr.bf16.mxu0 0
  %1227 = vmatpush1.bf16.msra.mxu0 %v895
  %1228 = vmatprep.subr.bf16.mxu0 0
  %1229 = vmatpush1.bf16.msra.mxu0 %v896
  %1230 = vmatprep.subr.bf16.mxu0 0
  %1231 = vmatpush1.bf16.msra.mxu0 %v897
  %1232 = vmatprep.subr.bf16.mxu0 0
  %1233 = vmatpush1.bf16.msra.mxu0 %v898
  %1234 = vmatprep.subr.bf16.mxu0 0
  %1235 = vmatpush1.bf16.msra.mxu0 %v899
  %1236 = vmatprep.subr.bf16.mxu0 0
  %1237 = vmatpush1.bf16.msra.mxu0 %v900
  %1238 = vmatprep.subr.bf16.mxu0 0
  %1239 = vmatpush1.bf16.msra.mxu0 %v901
  %1240 = vmatprep.subr.bf16.mxu0 0
  %1241 = vmatpush1.bf16.msra.mxu0 %v902
  %1242 = vmatprep.subr.bf16.mxu0 0
  %1243 = vmatpush1.bf16.msra.mxu0 %v903
  %1244 = vmatprep.subr.bf16.mxu0 0
  %1245 = vmatpush1.bf16.msra.mxu0 %v904
  %1246 = vmatprep.subr.bf16.mxu0 0
  %1247 = vmatpush1.bf16.msra.mxu0 %v905
  %1248 = vmatprep.subr.bf16.mxu0 0
  %1249 = vmatpush1.bf16.msra.mxu0 %v906
  %1250 = vmatprep.subr.bf16.mxu0 0
  %1251 = vmatpush1.bf16.msra.mxu0 %v907
  %1252 = vmatprep.mubr.bf16.mxu0 %v307
  %1253 = vmatmul.mubr.bf16.gmra.mrb[0].mxu0 %v306
  %v1254 = vpop.f32.mrb[0].mxu0
  %v1255 = vadd.f32 %v1215, %v1254
  %v1256 = vpop.f32.mrb[0].mxu0
  %v1257 = vpop.f32.mrb[0].mxu0
  %v1258 = vpop.f32.mrb[0].mxu0
  %1259 = vdwg.mxu0
  %1260 = vmatprep.subr.bf16.mxu0 0
  %1261 = vmatpush1.bf16.msra.mxu0 %v908
  %1262 = vmatprep.subr.bf16.mxu0 0
  %1263 = vmatpush1.bf16.msra.mxu0 %v909
  %1264 = vmatprep.subr.bf16.mxu0 0
  %1265 = vmatpush1.bf16.msra.mxu0 %v910
  %1266 = vmatprep.subr.bf16.mxu0 0
  %1267 = vmatpush1.bf16.msra.mxu0 %v911
  %1268 = vmatprep.subr.bf16.mxu0 0
  %1269 = vmatpush1.bf16.msra.mxu0 %v912
  %1270 = vmatprep.subr.bf16.mxu0 0
  %1271 = vmatpush1.bf16.msra.mxu0 %v913
  %1272 = vmatprep.subr.bf16.mxu0 0
  %1273 = vmatpush1.bf16.msra.mxu0 %v914
  %1274 = vmatprep.subr.bf16.mxu0 0
  %1275 = vmatpush1.bf16.msra.mxu0 %v915
  %1276 = vmatprep.subr.bf16.mxu0 0
  %1277 = vmatpush1.bf16.msra.mxu0 %v916
  %1278 = vmatprep.subr.bf16.mxu0 0
  %1279 = vmatpush1.bf16.msra.mxu0 %v917
  %1280 = vmatprep.subr.bf16.mxu0 0
  %1281 = vmatpush1.bf16.msra.mxu0 %v918
  %1282 = vmatprep.subr.bf16.mxu0 0
  %1283 = vmatpush1.bf16.msra.mxu0 %v919
  %1284 = vmatprep.subr.bf16.mxu0 0
  %1285 = vmatpush1.bf16.msra.mxu0 %v920
  %1286 = vmatprep.subr.bf16.mxu0 0
  %1287 = vmatpush1.bf16.msra.mxu0 %v921
  %1288 = vmatprep.subr.bf16.mxu0 0
  %1289 = vmatpush1.bf16.msra.mxu0 %v922
  %1290 = vmatprep.subr.bf16.mxu0 0
  %1291 = vmatpush1.bf16.msra.mxu0 %v923
  %1292 = vmatprep.mubr.bf16.mxu0 %v309
  %1293 = vmatmul.mubr.bf16.gmra.mrb[0].mxu0 %v308
  %v1294 = vpop.f32.mrb[0].mxu0
  %v1295 = vadd.f32 %v1255, %v1294
  %v1296 = vpop.f32.mrb[0].mxu0
  %v1297 = vpop.f32.mrb[0].mxu0
  %v1298 = vpop.f32.mrb[0].mxu0
  %1299 = vdwg.mxu0
  %1300 = vmatprep.subr.bf16.mxu0 0
  %1301 = vmatpush1.bf16.msra.mxu0 %v924
  %1302 = vmatprep.subr.bf16.mxu0 0
  %1303 = vmatpush1.bf16.msra.mxu0 %v925
  %1304 = vmatprep.subr.bf16.mxu0 0
  %1305 = vmatpush1.bf16.msra.mxu0 %v926
  %1306 = vmatprep.subr.bf16.mxu0 0
  %1307 = vmatpush1.bf16.msra.mxu0 %v927
  %1308 = vmatprep.subr.bf16.mxu0 0
  %1309 = vmatpush1.bf16.msra.mxu0 %v928
  %1310 = vmatprep.subr.bf16.mxu0 0
  %1311 = vmatpush1.bf16.msra.mxu0 %v929
  %1312 = vmatprep.subr.bf16.mxu0 0
  %1313 = vmatpush1.bf16.msra.mxu0 %v930
  %1314 = vmatprep.subr.bf16.mxu0 0
  %1315 = vmatpush1.bf16.msra.mxu0 %v931
  %1316 = vmatprep.subr.bf16.mxu0 0
  %1317 = vmatpush1.bf16.msra.mxu0 %v932
  %1318 = vmatprep.subr.bf16.mxu0 0
  %1319 = vmatpush1.bf16.msra.mxu0 %v933
  %1320 = vmatprep.subr.bf16.mxu0 0
  %1321 = vmatpush1.bf16.msra.mxu0 %v934
  %1322 = vmatprep.subr.bf16.mxu0 0
  %1323 = vmatpush1.bf16.msra.mxu0 %v935
  %1324 = vmatprep.subr.bf16.mxu0 0
  %1325 = vmatpush1.bf16.msra.mxu0 %v936
  %1326 = vmatprep.subr.bf16.mxu0 0
  %1327 = vmatpush1.bf16.msra.mxu0 %v937
  %1328 = vmatprep.subr.bf16.mxu0 0
  %1329 = vmatpush1.bf16.msra.mxu0 %v938
  %1330 = vmatprep.subr.bf16.mxu0 0
  %1331 = vmatpush1.bf16.msra.mxu0 %v939
  %1332 = vmatprep.mubr.bf16.mxu0 %v311
  %1333 = vmatmul.mubr.bf16.gmra.mrb[0].mxu0 %v310
  %v1334 = vpop.f32.mrb[0].mxu0
  %v1335 = vadd.f32 %v1295, %v1334
  %v1336 = vpop.f32.mrb[0].mxu0
  %v1337 = vpop.f32.mrb[0].mxu0
  %v1338 = vpop.f32.mrb[0].mxu0
  %1339 = vdwg.mxu0
  %1340 = vmatprep.subr.bf16.mxu0 0
  %1341 = vmatpush1.bf16.msra.mxu0 %v940
  %1342 = vmatprep.subr.bf16.mxu0 0
  %1343 = vmatpush1.bf16.msra.mxu0 %v941
  %1344 = vmatprep.subr.bf16.mxu0 0
  %1345 = vmatpush1.bf16.msra.mxu0 %v942
  %1346 = vmatprep.subr.bf16.mxu0 0
  %1347 = vmatpush1.bf16.msra.mxu0 %v943
  %1348 = vmatprep.subr.bf16.mxu0 0
  %1349 = vmatpush1.bf16.msra.mxu0 %v944
  %1350 = vmatprep.subr.bf16.mxu0 0
  %1351 = vmatpush1.bf16.msra.mxu0 %v945
  %1352 = vmatprep.subr.bf16.mxu0 0
  %1353 = vmatpush1.bf16.msra.mxu0 %v946
  %1354 = vmatprep.subr.bf16.mxu0 0
  %1355 = vmatpush1.bf16.msra.mxu0 %v947
  %1356 = vmatprep.subr.bf16.mxu0 0
  %1357 = vmatpush1.bf16.msra.mxu0 %v948
  %1358 = vmatprep.subr.bf16.mxu0 0
  %1359 = vmatpush1.bf16.msra.mxu0 %v949
  %1360 = vmatprep.subr.bf16.mxu0 0
  %1361 = vmatpush1.bf16.msra.mxu0 %v950
  %1362 = vmatprep.subr.bf16.mxu0 0
  %1363 = vmatpush1.bf16.msra.mxu0 %v951
  %1364 = vmatprep.subr.bf16.mxu0 0
  %1365 = vmatpush1.bf16.msra.mxu0 %v952
  %1366 = vmatprep.subr.bf16.mxu0 0
  %1367 = vmatpush1.bf16.msra.mxu0 %v953
  %1368 = vmatprep.subr.bf16.mxu0 0
  %1369 = vmatpush1.bf16.msra.mxu0 %v954
  %1370 = vmatprep.subr.bf16.mxu0 0
  %1371 = vmatpush1.bf16.msra.mxu0 %v955
  %1372 = vmatprep.mubr.bf16.mxu0 %v313
  %1373 = vmatmul.mubr.bf16.gmra.mrb[0].mxu0 %v312
  %v1374 = vpop.f32.mrb[0].mxu0
  %v1375 = vadd.f32 %v1335, %v1374
  %v1376 = vpop.f32.mrb[0].mxu0
  %v1377 = vpop.f32.mrb[0].mxu0
  %v1378 = vpop.f32.mrb[0].mxu0
  %1379 = vdwg.mxu0
  %1380 = vmatprep.subr.bf16.mxu0 0
  %1381 = vmatpush1.bf16.msra.mxu0 %v956
  %1382 = vmatprep.subr.bf16.mxu0 0
  %1383 = vmatpush1.bf16.msra.mxu0 %v957
  %1384 = vmatprep.subr.bf16.mxu0 0
  %1385 = vmatpush1.bf16.msra.mxu0 %v958
  %1386 = vmatprep.subr.bf16.mxu0 0
  %1387 = vmatpush1.bf16.msra.mxu0 %v959
  %1388 = vmatprep.subr.bf16.mxu0 0
  %1389 = vmatpush1.bf16.msra.mxu0 %v960
  %1390 = vmatprep.subr.bf16.mxu0 0
  %1391 = vmatpush1.bf16.msra.mxu0 %v961
  %1392 = vmatprep.subr.bf16.mxu0 0
  %1393 = vmatpush1.bf16.msra.mxu0 %v962
  %1394 = vmatprep.subr.bf16.mxu0 0
  %1395 = vmatpush1.bf16.msra.mxu0 %v963
  %1396 = vmatprep.subr.bf16.mxu0 0
  %1397 = vmatpush1.bf16.msra.mxu0 %v964
  %1398 = vmatprep.subr.bf16.mxu0 0
  %1399 = vmatpush1.bf16.msra.mxu0 %v965
  %1400 = vmatprep.subr.bf16.mxu0 0
  %1401 = vmatpush1.bf16.msra.mxu0 %v966
  %1402 = vmatprep.subr.bf16.mxu0 0
  %1403 = vmatpush1.bf16.msra.mxu0 %v967
  %1404 = vmatprep.subr.bf16.mxu0 0
  %1405 = vmatpush1.bf16.msra.mxu0 %v968
  %1406 = vmatprep.subr.bf16.mxu0 0
  %1407 = vmatpush1.bf16.msra.mxu0 %v969
  %1408 = vmatprep.subr.bf16.mxu0 0
  %1409 = vmatpush1.bf16.msra.mxu0 %v970
  %1410 = vmatprep.subr.bf16.mxu0 0
  %1411 = vmatpush1.bf16.msra.mxu0 %v971
  %1412 = vmatprep.mubr.bf16.mxu0 %v315
  %1413 = vmatmul.mubr.bf16.gmra.mrb[0].mxu0 %v314
  %v1414 = vpop.f32.mrb[0].mxu0
  %v1415 = vadd.f32 %v1375, %v1414
  %v1416 = vpop.f32.mrb[0].mxu0
  %v1417 = vpop.f32.mrb[0].mxu0
  %v1418 = vpop.f32.mrb[0].mxu0
  %1419 = vdwg.mxu0
  %1420 = vst [vmem:[%s2] sm:$0xff] %v1415
  // Predicated region
  $region10: #{discriminator_forward.11} parent=0 // pred_check
    _
  $region11: #{discriminator_forward.11} parent=0 // pred_check_branch
    %1422 = sbr.rel (0) target = $region13
  $region12: #{discriminator_forward.11} parent=0 // pred_region
    _
  $region13: #{discriminator_forward.11} parent=0 // pred_fallthru
    _
  // Predicated region
  $region14: #{discriminator_forward.11} parent=0 // pred_check
    _
  $region15: #{discriminator_forward.11} parent=0 // pred_check_branch
    %1424 = sbr.rel (0) target = $region17
  $region16: #{discriminator_forward.11} parent=0 // pred_region
    _
  $region17: #{discriminator_forward.11} parent=0 // pred_fallthru
    _

</llo_original>
